<compile_context>
chip_gen: v5e
topology: v5e:2x2
jax: 0.10.0
libtpu: 0.0.40
codegen_flags: <defaults>
</compile_context>

<pallas_src>
import functools

import jax
import jax.numpy as jnp
from jax.experimental import pallas as pl
from jax.experimental.pallas import tpu as pltpu

IN_DIM = 768
HIDDEN = 1024
NUM_CLASSES = 128            # stand-in for len(os.listdir(EMBEDS))
BN_EPS = 1e-5

TM_DEFAULT = 1024            # row tile (TM=512 left ~30% per-step overhead)
VMEM_LIMIT = 32 << 20        # safe scoped VMEM limit on v5e / v6e / v7x
FUSED_BYTES_MAX = 20 << 20   # budget for the single-kernel small-batch path


def _round_up(a, b):
    return (a + b - 1) // b * b


def _const_spec(block_shape, index_map):
    """BlockSpec for operands whose block index never changes: single-buffer
    them to save VMEM; silently fall back if this JAX has no pipeline_mode."""
    try:
        return pl.BlockSpec(block_shape, index_map, pipeline_mode=pl.Buffered(1))
    except (TypeError, AttributeError):
        return pl.BlockSpec(block_shape, index_map)


# ---------------------------------------------------------------------------
# Small-batch fused kernel: matmul1 -> exact batch stats -> BN -> ReLU -> matmul2
# ---------------------------------------------------------------------------
def _fused_kernel(x_ref, w1_ref, gamma_ref, beta_ref, w2_ref, b2_ref, o_ref,
                  *, n_valid):
    h = jnp.dot(x_ref[...], w1_ref[...], preferred_element_type=jnp.float32)
    inv_n = jnp.float32(1.0 / n_valid)
    # zero-padded rows contribute 0 to the sum (no b1 added -> h rows are 0)
    mean = jnp.sum(h, axis=0, keepdims=True) * inv_n
    centred = h - mean
    if h.shape[0] != n_valid:
        # mask padded rows out of the (shifted, cancellation-safe) variance
        row = jax.lax.broadcasted_iota(jnp.int32, (h.shape[0], 1), 0)
        centred = jnp.where(row < n_valid, centred, 0.0)
    var = jnp.sum(centred * centred, axis=0, keepdims=True) * inv_n
    scale = gamma_ref[...] * jax.lax.rsqrt(var + BN_EPS)
    shift = beta_ref[...] - mean * scale
    a = jnp.maximum(h * scale + shift, 0.0)
    out = jnp.dot(a.astype(jnp.bfloat16), w2_ref[...],
                  preferred_element_type=jnp.float32) + b2_ref[...]
    o_ref[...] = out.astype(o_ref.dtype)


# ---------------------------------------------------------------------------
# Pass 1: per-core column sum / sum-of-squares of h = x @ W1  (b1 cancels in BN)
# grid = (n_split, tiles_per_split); axis 0 is "parallel" (v7x megacore).
# ---------------------------------------------------------------------------
def _stats_kernel(x_ref, w1_ref, sum_ref, sq_ref):
    @pl.when(pl.program_id(1) == 0)
    def _():
        sum_ref[...] = jnp.zeros_like(sum_ref)
        sq_ref[...] = jnp.zeros_like(sq_ref)

    h = jnp.dot(x_ref[...], w1_ref[...], preferred_element_type=jnp.float32)
    sum_ref[...] += jnp.sum(h, axis=0, keepdims=True)[None]
    sq_ref[...] += jnp.sum(h * h, axis=0, keepdims=True)[None]


# ---------------------------------------------------------------------------
# Pass 2: in-kernel BN fold, recompute h ONCE per row tile (cached in VMEM
# scratch), fused scale/shift + ReLU, C-tiled second matmul (+ b2).
# grid = (n_row_tiles, n_c_tiles); row axis "parallel", C axis "arbitrary".
# ---------------------------------------------------------------------------
def _apply_kernel(sum_ref, sq_ref, gamma_ref, beta_ref, x_ref, w1_ref,
                  w2_ref, b2_ref, o_ref, a_ref, *, inv_n):
    @pl.when(pl.program_id(1) == 0)
    def _():
        mean = jnp.sum(sum_ref[...], axis=0) * inv_n      # sums per-core partials
        ex2 = jnp.sum(sq_ref[...], axis=0) * inv_n
        var = jnp.maximum(ex2 - mean * mean, 0.0)
        scale = gamma_ref[...] * jax.lax.rsqrt(var + BN_EPS)
        shift = beta_ref[...] - mean * scale
        h = jnp.dot(x_ref[...], w1_ref[...], preferred_element_type=jnp.float32)
        a_ref[...] = jnp.maximum(h * scale + shift, 0.0).astype(a_ref.dtype)

    out = jnp.dot(a_ref[...], w2_ref[...],
                  preferred_element_type=jnp.float32) + b2_ref[...]
    o_ref[...] = out.astype(o_ref.dtype)


def mlp_forward(x, w1, b1, gamma, beta, w2, b2, force_two_pass=False):
    """x: (..., 768). Weights pre-transposed to (in, out). Returns (N, C) f32.

    Matches PyTorch train-mode Linear -> BatchNorm1d -> ReLU -> Linear.
    b1 is accepted for API parity but cancels exactly under train-mode BN.
    """
    del b1  # exact cancellation: BN subtracts the batch mean of (x @ W1 + b1)

    xb = x.reshape(-1, IN_DIM).astype(jnp.float32)
    n = xb.shape[0]
    c = w2.shape[1]

    # lane-dense class padding; tile C at 512 when W2 is too big to keep resident
    c_pad = _round_up(c, 128)
    if c_pad <= 1024:
        tc = c_pad
    else:
        tc = 512
        c_pad = _round_up(c_pad, tc)
    n_ctiles = c_pad // tc

    w1_bf = w1.astype(jnp.bfloat16)
    w2_bf = jnp.pad(w2, ((0, 0), (0, c_pad - c))).astype(jnp.bfloat16)
    b2_p = jnp.pad(b2, ((0, c_pad - c),)).reshape(1, c_pad).astype(jnp.float32)
    gamma_p = gamma.reshape(1, HIDDEN).astype(jnp.float32)
    beta_p = beta.reshape(1, HIDDEN).astype(jnp.float32)

    # ------------------ small-batch fast path: one fused kernel --------------
    n_pad8 = _round_up(max(n, 8), 8)
    fused_bytes = (n_pad8 * IN_DIM * 2            # x (bf16)
                   + IN_DIM * HIDDEN * 2          # W1 (bf16)
                   + n_pad8 * HIDDEN * (4 + 2)    # h (f32) + a (bf16)
                   + HIDDEN * c_pad * 2           # W2 (bf16)
                   + n_pad8 * c_pad * 4)          # out (f32)
    if (not force_two_pass) and fused_bytes <= FUSED_BYTES_MAX:
        x_bf = jnp.pad(xb, ((0, n_pad8 - n), (0, 0))).astype(jnp.bfloat16)
        out = pl.pallas_call(
            functools.partial(_fused_kernel, n_valid=n),
            out_shape=jax.ShapeDtypeStruct((n_pad8, c_pad), jnp.float32),
            grid=(1,),
            in_specs=[
                _const_spec((n_pad8, IN_DIM), lambda i: (0, 0)),
                _const_spec((IN_DIM, HIDDEN), lambda i: (0, 0)),
                _const_spec((1, HIDDEN), lambda i: (0, 0)),
                _const_spec((1, HIDDEN), lambda i: (0, 0)),
                _const_spec((HIDDEN, c_pad), lambda i: (0, 0)),
                _const_spec((1, c_pad), lambda i: (0, 0)),
            ],
            out_specs=pl.BlockSpec((n_pad8, c_pad), lambda i: (0, 0)),
            compiler_params=pltpu.CompilerParams(
                dimension_semantics=("arbitrary",),
                vmem_limit_bytes=VMEM_LIMIT),
            cost_estimate=pl.CostEstimate(
                flops=2 * n_pad8 * HIDDEN * (IN_DIM + c_pad) + 8 * n_pad8 * HIDDEN,
                transcendentals=HIDDEN,
                bytes_accessed=fused_bytes),
        )(x_bf, w1_bf, gamma_p, beta_p, w2_bf, b2_p)
        return out[:n, :c]

    # ------------------ large-batch two-pass path ----------------------------
    tm = min(TM_DEFAULT, _round_up(n, 8))
    n_tiles = -(-n // tm)                       # ceil
    n_split = 2 if n_tiles >= 2 else 1          # shard pass-1 rows across v7x TCs
    n_tiles = _round_up(n_tiles, n_split)
    tiles_per_split = n_tiles // n_split
    n_pad = n_tiles * tm
    x_bf = jnp.pad(xb, ((0, n_pad - n), (0, 0))).astype(jnp.bfloat16)

    # ---- pass 1: per-core column sum / sum-of-squares of h = x @ W1 --------
    # NOTE: E[h^2]-E[h]^2 in f32 can cancel for strongly non-centred data at
    # very large N; a shifted/Welford accumulation would be safer if needed.
    col_sum, col_sq = pl.pallas_call(
        _stats_kernel,
        out_shape=(jax.ShapeDtypeStruct((n_split, 1, HIDDEN), jnp.float32),
                   jax.ShapeDtypeStruct((n_split, 1, HIDDEN), jnp.float32)),
        grid=(n_split, tiles_per_split),
        in_specs=[
            pl.BlockSpec((tm, IN_DIM),
                         lambda s, i: (s * tiles_per_split + i, 0)),
            _const_spec((IN_DIM, HIDDEN), lambda s, i: (0, 0)),
        ],
        out_specs=(pl.BlockSpec((1, 1, HIDDEN), lambda s, i: (s, 0, 0)),
                   pl.BlockSpec((1, 1, HIDDEN), lambda s, i: (s, 0, 0))),
        compiler_params=pltpu.CompilerParams(
            dimension_semantics=("parallel", "arbitrary"),
            vmem_limit_bytes=VMEM_LIMIT),
        cost_estimate=pl.CostEstimate(
            flops=2 * n_pad * IN_DIM * HIDDEN + 4 * n_pad * HIDDEN,
            transcendentals=0,
            bytes_accessed=n_pad * IN_DIM * 2 + IN_DIM * HIDDEN * 2
                           + 2 * n_split * HIDDEN * 4),
    )(x_bf, w1_bf)

    # ---- pass 2: in-kernel BN fold, cached h, C-tiled second matmul ---------
    w2_spec = (_const_spec((HIDDEN, tc), lambda i, j: (0, j)) if n_ctiles == 1
               else pl.BlockSpec((HIDDEN, tc), lambda i, j: (0, j)))
    b2_spec = (_const_spec((1, tc), lambda i, j: (0, j)) if n_ctiles == 1
               else pl.BlockSpec((1, tc), lambda i, j: (0, j)))
    out = pl.pallas_call(
        functools.partial(_apply_kernel, inv_n=1.0 / n),
        out_shape=jax.ShapeDtypeStruct((n_pad, c_pad), jnp.float32),
        grid=(n_tiles, n_ctiles),
        in_specs=[
            _const_spec((n_split, 1, HIDDEN), lambda i, j: (0, 0, 0)),
            _const_spec((n_split, 1, HIDDEN), lambda i, j: (0, 0, 0)),
            _const_spec((1, HIDDEN), lambda i, j: (0, 0)),
            _const_spec((1, HIDDEN), lambda i, j: (0, 0)),
            pl.BlockSpec((tm, IN_DIM), lambda i, j: (i, 0)),
            _const_spec((IN_DIM, HIDDEN), lambda i, j: (0, 0)),
            w2_spec,
            b2_spec,
        ],
        out_specs=pl.BlockSpec((tm, tc), lambda i, j: (i, j)),
        scratch_shapes=[pltpu.VMEM((tm, HIDDEN), jnp.bfloat16)],
        compiler_params=pltpu.CompilerParams(
            dimension_semantics=("parallel", "arbitrary"),
            vmem_limit_bytes=VMEM_LIMIT),
        cost_estimate=pl.CostEstimate(
            flops=2 * n_pad * IN_DIM * HIDDEN + 2 * n_pad * HIDDEN * c_pad
                  + 4 * n_pad * HIDDEN,
            transcendentals=HIDDEN,
            bytes_accessed=n_pad * IN_DIM * 2 + IN_DIM * HIDDEN * 2
                           + HIDDEN * c_pad * 2 + n_pad * c_pad * 4),
    )(col_sum, col_sq, gamma_p, beta_p, x_bf, w1_bf, w2_bf, b2_p)

    return out[:n, :c]


def init_params(key):
    """Deterministic init mimicking PyTorch nn.Linear defaults (+/- 1/sqrt(fan_in))."""
    k1, k2, k3, k4 = jax.random.split(key, 4)
    bound1 = 1.0 / (IN_DIM ** 0.5)
    w1 = jax.random.uniform(k1, (IN_DIM, HIDDEN), jnp.float32, -bound1, bound1)
    b1 = jax.random.uniform(k2, (HIDDEN,), jnp.float32, -bound1, bound1)
    bound2 = 1.0 / (HIDDEN ** 0.5)
    w2 = jax.random.uniform(k3, (HIDDEN, NUM_CLASSES), jnp.float32, -bound2, bound2)
    b2 = jax.random.uniform(k4, (NUM_CLASSES,), jnp.float32, -bound2, bound2)
    gamma = jnp.ones((HIDDEN,), jnp.float32)   # BatchNorm1d affine init
    beta = jnp.zeros((HIDDEN,), jnp.float32)
    return w1, b1, gamma, beta, w2, b2


def _reference(x, w1, b1, gamma, beta, w2, b2):
    """Pure-JAX f32 reference of the PyTorch forward (train-mode BN)."""
    xb = x.reshape(-1, IN_DIM)
    h = xb @ w1 + b1
    mean = jnp.mean(h, axis=0)
    var = jnp.mean((h - mean) ** 2, axis=0)      # biased variance
    hbn = (h - mean) * jax.lax.rsqrt(var + BN_EPS) * gamma + beta
    a = jnp.maximum(hbn, 0.0)
    return a @ w2 + b2


if __name__ == "__main__":
    key = jax.random.PRNGKey(0)
    kx, kx2, kp = jax.random.split(key, 3)

    w1, b1, gamma, beta, w2, b2 = init_params(kp)

    # small example: (batch=2, seq=4, 768) -> reshaped to (8, 768) inside.
    # Exercises the fused single-kernel fast path.
    x = jax.random.normal(kx, (2, 4, IN_DIM), jnp.float32)
    out = mlp_forward(x, w1, b1, gamma, beta, w2, b2)
    jax.block_until_ready(out)
    assert out.shape == (8, NUM_CLASSES), out.shape
    ref = _reference(x, w1, b1, gamma, beta, w2, b2)
    err = float(jnp.max(jnp.abs(out - ref)))
    assert err < 0.1, f"fused path: max abs err vs f32 reference too large: {err}"

    # moderately larger batch to exercise the two-pass (stats + apply) path.
    x2 = jax.random.normal(kx2, (2048, IN_DIM), jnp.float32)
    out2 = mlp_forward(x2, w1, b1, gamma, beta, w2, b2, force_two_pass=True)
    jax.block_until_ready(out2)
    assert out2.shape == (2048, NUM_CLASSES), out2.shape
    ref2 = _reference(x2, w1, b1, gamma, beta, w2, b2)
    err2 = float(jnp.max(jnp.abs(out2 - ref2)))
    assert err2 < 0.1, f"two-pass path: max abs err vs f32 reference too large: {err2}"

    print("KERNEL_OK")
</pallas_src>

<mosaic_0001>
module attributes {stable_mosaic.version = 11 : i64} {
  func.func @_fused_kernel(%arg0: i32, %arg1: memref<8x768xbf16, #tpu.memory_space<vmem>>, %arg2: memref<768x1024xbf16, #tpu.memory_space<vmem>>, %arg3: memref<1x1024xf32, #tpu.memory_space<vmem>>, %arg4: memref<1x1024xf32, #tpu.memory_space<vmem>>, %arg5: memref<1024x128xbf16, #tpu.memory_space<vmem>>, %arg6: memref<1x128xf32, #tpu.memory_space<vmem>>, %arg7: memref<8x128xf32, #tpu.memory_space<vmem>>) attributes {dimension_semantics = [#tpu.dimension_semantics<arbitrary>], iteration_bounds = array<i64: 1>, scalar_prefetch = 0 : i64, scratch_operands = 0 : i64, tpu.core_type = #tpu.core_type<tc>, window_params = [{pipeline_mode = #tpu.pipeline_mode<synchronous>, transform_indices = @transform_0, window_bounds = array<i64: 8, 768>}, {pipeline_mode = #tpu.pipeline_mode<synchronous>, transform_indices = @transform_1, window_bounds = array<i64: 768, 1024>}, {pipeline_mode = #tpu.pipeline_mode<synchronous>, transform_indices = @transform_2, window_bounds = array<i64: 1, 1024>}, {pipeline_mode = #tpu.pipeline_mode<synchronous>, transform_indices = @transform_3, window_bounds = array<i64: 1, 1024>}, {pipeline_mode = #tpu.pipeline_mode<synchronous>, transform_indices = @transform_4, window_bounds = array<i64: 1024, 128>}, {pipeline_mode = #tpu.pipeline_mode<synchronous>, transform_indices = @transform_5, window_bounds = array<i64: 1, 128>}, {pipeline_mode = #tpu.pipeline_mode<synchronous>, transform_indices = @transform_6, window_bounds = array<i64: 8, 128>}]} {
    %c0 = arith.constant 0 : index
    %c0_0 = arith.constant 0 : index
    %0 = vector.load %arg1[%c0, %c0_0] : memref<8x768xbf16, #tpu.memory_space<vmem>>, vector<8x768xbf16>
    %c0_1 = arith.constant 0 : index
    %c0_2 = arith.constant 0 : index
    %1 = vector.load %arg2[%c0_1, %c0_2] : memref<768x1024xbf16, #tpu.memory_space<vmem>>, vector<768x1024xbf16>
    %cst = arith.constant dense<0.000000e+00> : vector<8x1024xf32>
    %2 = tpu.matmul %0, %1, %cst {dimension_numbers = #tpu.dot_dimension_numbers<[1], [0], [0], [1], [0, 0, 1, 1], [], []>} : vector<8x768xbf16>, vector<768x1024xbf16>, vector<8x1024xf32> -> vector<8x1024xf32>
    %cst_3 = arith.constant dense<0.000000e+00> : vector<1024xf32>
    %3 = vector.multi_reduction <add>, %2, %cst_3 [0] : vector<8x1024xf32> to vector<1024xf32>
    %4 = vector.shape_cast %3 : vector<1024xf32> to vector<1x1024xf32>
    %cst_4 = arith.constant 1.250000e-01 : f32
    %5 = vector.broadcast %cst_4 : f32 to vector<1x1024xf32>
    %6 = arith.mulf %4, %5 : vector<1x1024xf32>
    %7 = vector.broadcast %6 : vector<1x1024xf32> to vector<8x1024xf32>
    %8 = arith.subf %2, %7 : vector<8x1024xf32>
    %9 = arith.mulf %8, %8 : vector<8x1024xf32>
    %cst_5 = arith.constant dense<0.000000e+00> : vector<1024xf32>
    %10 = vector.multi_reduction <add>, %9, %cst_5 [0] : vector<8x1024xf32> to vector<1024xf32>
    %11 = vector.shape_cast %10 : vector<1024xf32> to vector<1x1024xf32>
    %cst_6 = arith.constant 1.250000e-01 : f32
    %12 = vector.broadcast %cst_6 : f32 to vector<1x1024xf32>
    %13 = arith.mulf %11, %12 : vector<1x1024xf32>
    %c0_7 = arith.constant 0 : index
    %c0_8 = arith.constant 0 : index
    %14 = vector.load %arg3[%c0_7, %c0_8] : memref<1x1024xf32, #tpu.memory_space<vmem>>, vector<1x1024xf32>
    %cst_9 = arith.constant 9.99999974E-6 : f32
    %15 = vector.broadcast %cst_9 : f32 to vector<1x1024xf32>
    %16 = arith.addf %13, %15 : vector<1x1024xf32>
    %17 = math.rsqrt %16 : vector<1x1024xf32>
    %18 = arith.mulf %14, %17 : vector<1x1024xf32>
    %c0_10 = arith.constant 0 : index
    %c0_11 = arith.constant 0 : index
    %19 = vector.load %arg4[%c0_10, %c0_11] : memref<1x1024xf32, #tpu.memory_space<vmem>>, vector<1x1024xf32>
    %20 = arith.mulf %6, %18 : vector<1x1024xf32>
    %21 = arith.subf %19, %20 : vector<1x1024xf32>
    %22 = vector.broadcast %18 : vector<1x1024xf32> to vector<8x1024xf32>
    %23 = arith.mulf %2, %22 : vector<8x1024xf32>
    %24 = vector.broadcast %21 : vector<1x1024xf32> to vector<8x1024xf32>
    %25 = arith.addf %23, %24 : vector<8x1024xf32>
    %cst_12 = arith.constant 0.000000e+00 : f32
    %26 = vector.broadcast %cst_12 : f32 to vector<8x1024xf32>
    %27 = arith.maximumf %25, %26 : vector<8x1024xf32>
    %28 = arith.truncf %27 : vector<8x1024xf32> to vector<8x1024xbf16>
    %c0_13 = arith.constant 0 : index
    %c0_14 = arith.constant 0 : index
    %29 = vector.load %arg5[%c0_13, %c0_14] : memref<1024x128xbf16, #tpu.memory_space<vmem>>, vector<1024x128xbf16>
    %cst_15 = arith.constant dense<0.000000e+00> : vector<8x128xf32>
    %30 = tpu.matmul %28, %29, %cst_15 {dimension_numbers = #tpu.dot_dimension_numbers<[1], [0], [0], [1], [0, 0, 1, 1], [], []>} : vector<8x1024xbf16>, vector<1024x128xbf16>, vector<8x128xf32> -> vector<8x128xf32>
    %c0_16 = arith.constant 0 : index
    %c0_17 = arith.constant 0 : index
    %31 = vector.load %arg6[%c0_16, %c0_17] : memref<1x128xf32, #tpu.memory_space<vmem>>, vector<1x128xf32>
    %32 = vector.broadcast %31 : vector<1x128xf32> to vector<8x128xf32>
    %33 = arith.addf %30, %32 : vector<8x128xf32>
    %c0_18 = arith.constant 0 : index
    %c0_19 = arith.constant 0 : index
    %34 = vector.load %arg7[%c0_18, %c0_19] : memref<8x128xf32, #tpu.memory_space<vmem>>, vector<8x128xf32>
    tpu.vector_store %arg7[%c0_18, %c0_19], %33 {strides = array<i32>} : memref<8x128xf32, #tpu.memory_space<vmem>>, vector<8x128xf32>,
    return
  }
  func.func @transform_0(%arg0: i32) -> (i32, i32) {
    %c0_i32 = arith.constant 0 : i32
    %c0_i32_0 = arith.constant 0 : i32
    %c0_i32_1 = arith.constant 0 : i32
    return %c0_i32, %c0_i32_0 : i32, i32
  }
  func.func @transform_1(%arg0: i32) -> (i32, i32) {
    %c0_i32 = arith.constant 0 : i32
    %c0_i32_0 = arith.constant 0 : i32
    %c0_i32_1 = arith.constant 0 : i32
    return %c0_i32, %c0_i32_0 : i32, i32
  }
  func.func @transform_2(%arg0: i32) -> (i32, i32) {
    %c0_i32 = arith.constant 0 : i32
    %c0_i32_0 = arith.constant 0 : i32
    %c0_i32_1 = arith.constant 0 : i32
    return %c0_i32, %c0_i32_0 : i32, i32
  }
  func.func @transform_3(%arg0: i32) -> (i32, i32) {
    %c0_i32 = arith.constant 0 : i32
    %c0_i32_0 = arith.constant 0 : i32
    %c0_i32_1 = arith.constant 0 : i32
    return %c0_i32, %c0_i32_0 : i32, i32
  }
  func.func @transform_4(%arg0: i32) -> (i32, i32) {
    %c0_i32 = arith.constant 0 : i32
    %c0_i32_0 = arith.constant 0 : i32
    %c0_i32_1 = arith.constant 0 : i32
    return %c0_i32, %c0_i32_0 : i32, i32
  }
  func.func @transform_5(%arg0: i32) -> (i32, i32) {
    %c0_i32 = arith.constant 0 : i32
    %c0_i32_0 = arith.constant 0 : i32
    %c0_i32_1 = arith.constant 0 : i32
    return %c0_i32, %c0_i32_0 : i32, i32
  }
  func.func @transform_6(%arg0: i32) -> (i32, i32) {
    %c0_i32 = arith.constant 0 : i32
    %c0_i32_0 = arith.constant 0 : i32
    %c0_i32_1 = arith.constant 0 : i32
    return %c0_i32, %c0_i32_0 : i32, i32
  }
}

</mosaic_0001>

<llo_original>
// kernel: tpu_custom_call.1
$region0: #{tpu_custom_call.1}
  #allocation0 [shape = 'u32[]', space=smem, size = 0x4, offset = 0x4, fixed_abs, tag = 'smem constant byte address 0x4 - core index']
  #allocation1 [shape = 'u32[72,128]{1,0:T(1,128)}', space=vmem, size = 0x9000, scoped, tag = 'internal scratch']
  %s0 = inlined_call_operand.hbm [shape: bf16[8,768], index: 0, kind: input, shape index: {}]
  %s1 = inlined_call_operand.hbm [shape: bf16[768,1024], index: 1, kind: input, shape index: {}]
  %s2 = inlined_call_operand.hbm [shape: f32[1,1024], index: 2, kind: input, shape index: {}]
  %s3 = inlined_call_operand.hbm [shape: f32[1,1024], index: 3, kind: input, shape index: {}]
  %s4 = inlined_call_operand.hbm [shape: bf16[1024,128], index: 4, kind: input, shape index: {}]
  %s5 = inlined_call_operand.hbm [shape: f32[1,128], index: 5, kind: input, shape index: {}]
  %s6 = inlined_call_operand.hbm [shape: f32[8,128], index: 6, kind: output, shape index: {}]
  %s7 = sld [smem:[#allocation0]]
  $region58: #{tpu_custom_call.1} parent=0
    _
  %s9 = ssub.s32 1, %s7
  %s10 = scalar_select 0, %s9, %s7
  $region1: #{tpu_custom_call.1} parent=0
    #allocation2 [shape = 'u8[12288]{0}', space=vmem, size = 0x3000, scoped, tag = 'input window, operand 0, single buffered']
    #allocation3 [shape = 's32[1]{0}', space=sflag, size = 0x4, scoped, tag = 'scoped memory for tpu_custom_call.1']
    #allocation4 [shape = 's32[1]{0}', space=sflag, size = 0x4, scoped, tag = 'scoped memory for tpu_custom_call.1']
    #allocation5 [shape = 'u8[1572864]{0}', space=vmem, size = 0x180000, scoped, tag = 'input window, operand 1, single buffered']
    #allocation6 [shape = 's32[1]{0}', space=sflag, size = 0x4, scoped, tag = 'scoped memory for tpu_custom_call.1']
    #allocation7 [shape = 'u8[4096]{0}', space=vmem, size = 0x1000, scoped, tag = 'input window, operand 2, single buffered']
    #allocation8 [shape = 'u8[4096]{0}', space=vmem, size = 0x1000, scoped, tag = 'input window, operand 3, single buffered']
    #allocation9 [shape = 's32[1]{0}', space=sflag, size = 0x4, scoped, tag = 'scoped memory for tpu_custom_call.1']
    #allocation10 [shape = 'u8[262144]{0}', space=vmem, size = 0x40000, scoped, tag = 'input window, operand 4, single buffered']
    #allocation11 [shape = 'u8[512]{0}', space=vmem, size = 0x400, scoped, tag = 'input window, operand 5, single buffered']
    #allocation12 [shape = 's32[1]{0}', space=sflag, size = 0x4, scoped, tag = 'scoped memory for tpu_custom_call.1']
    #allocation13 [shape = 'u8[4096]{0}', space=vmem, size = 0x1000, scoped, tag = 'output window, operand 0, single buffered']
    %11 = vsyncpa [#allocation3], 0
    %12 = vsyncpa [#allocation6], 0
    %13 = vsyncpa [#allocation9], 0
    %14 = vsyncpa [#allocation12], 0
    %15 = vsyncpa [#allocation4], 0
    // Predicated region
    $region2: #{tpu_custom_call.1} parent=1 // pred_check
      _
    $region3: #{tpu_custom_call.1} parent=1 // pred_check_branch
      %17 = sbr.rel (0) target = $region5
    $region4: #{tpu_custom_call.1} parent=1 // pred_region
      %19 = vsyncadd [#allocation3], 0
      %s21 = sshll.u32 %s0, 4
      %s22 = int_to_ptr.hbm [resolvable:$true] %s21
      %s23 = sshll.u32 [#allocation2], 4
      %s24 = int_to_ptr.vmem [resolvable:$true] %s23
      %26 = dma.hbm_to_vmem [thread:$0]  %s22, 384, %s24, [#allocation3]
    $region5: #{tpu_custom_call.1} parent=1 // pred_fallthru
      _
    // Predicated region
    $region6: #{tpu_custom_call.1} parent=1 // pred_check
      _
    $region7: #{tpu_custom_call.1} parent=1 // pred_check_branch
      %28 = sbr.rel (0) target = $region9
    $region8: #{tpu_custom_call.1} parent=1 // pred_region
      %30 = vsyncadd [#allocation6], 0
      %s31 = sshll.u32 %s1, 4
      %s32 = int_to_ptr.hbm [resolvable:$true] %s31
      %s33 = sshll.u32 [#allocation5], 4
      %s34 = int_to_ptr.vmem [resolvable:$true] %s33
      %39 = dma.hbm_to_vmem [thread:$0]  %s32, 49152, %s34, [#allocation6], 512, 512, 32
    $region9: #{tpu_custom_call.1} parent=1 // pred_fallthru
      _
    // Predicated region
    $region10: #{tpu_custom_call.1} parent=1 // pred_check
      _
    $region11: #{tpu_custom_call.1} parent=1 // pred_check_branch
      %41 = sbr.rel (0) target = $region13
    $region12: #{tpu_custom_call.1} parent=1 // pred_region
      %43 = vsyncadd [#allocation6], 0
      %s45 = sshll.u32 %s2, 4
      %s46 = int_to_ptr.hbm [resolvable:$true] %s45
      %s47 = sshll.u32 [#allocation7], 4
      %s48 = int_to_ptr.vmem [resolvable:$true] %s47
      %50 = dma.hbm_to_vmem [thread:$0]  %s46, 128, %s48, [#allocation6]
    $region13: #{tpu_custom_call.1} parent=1 // pred_fallthru
      _
    // Predicated region
    $region14: #{tpu_custom_call.1} parent=1 // pred_check
      _
    $region15: #{tpu_custom_call.1} parent=1 // pred_check_branch
      %52 = sbr.rel (0) target = $region17
    $region16: #{tpu_custom_call.1} parent=1 // pred_region
      %54 = vsyncadd [#allocation9], 0
      %s56 = sshll.u32 %s3, 4
      %s57 = int_to_ptr.hbm [resolvable:$true] %s56
      %s58 = sshll.u32 [#allocation8], 4
      %s59 = int_to_ptr.vmem [resolvable:$true] %s58
      %61 = dma.hbm_to_vmem [thread:$0]  %s57, 128, %s59, [#allocation9]
    $region17: #{tpu_custom_call.1} parent=1 // pred_fallthru
      _
    // Predicated region
    $region18: #{tpu_custom_call.1} parent=1 // pred_check
      _
    $region19: #{tpu_custom_call.1} parent=1 // pred_check_branch
      %63 = sbr.rel (0) target = $region21
    $region20: #{tpu_custom_call.1} parent=1 // pred_region
      %65 = vsyncadd [#allocation9], 0
      %s66 = sshll.u32 %s4, 4
      %s67 = int_to_ptr.hbm [resolvable:$true] %s66
      %s68 = sshll.u32 [#allocation10], 4
      %s69 = int_to_ptr.vmem [resolvable:$true] %s68
      %74 = dma.hbm_to_vmem [thread:$0]  %s67, 8192, %s69, [#allocation9], 64, 64, 4
    $region21: #{tpu_custom_call.1} parent=1 // pred_fallthru
      _
    // Predicated region
    $region22: #{tpu_custom_call.1} parent=1 // pred_check
      _
    $region23: #{tpu_custom_call.1} parent=1 // pred_check_branch
      %76 = sbr.rel (0) target = $region25
    $region24: #{tpu_custom_call.1} parent=1 // pred_region
      %78 = vsyncadd [#allocation12], 0
      %s80 = sshll.u32 %s5, 4
      %s81 = int_to_ptr.hbm [resolvable:$true] %s80
      %s82 = sshll.u32 [#allocation11], 4
      %s83 = int_to_ptr.vmem [resolvable:$true] %s82
      %85 = dma.hbm_to_vmem [thread:$0]  %s81, 16, %s83, [#allocation12]
    $region25: #{tpu_custom_call.1} parent=1 // pred_fallthru
      _
    // Predicated region
    $region26: #{tpu_custom_call.1} parent=1 // pred_check
      _
    $region27: #{tpu_custom_call.1} parent=1 // pred_check_branch
      %87 = sbr.rel (0) target = $region29
    $region28: #{tpu_custom_call.1} parent=1 // pred_region
      %89 = dma.done [#allocation3], 384
    $region29: #{tpu_custom_call.1} parent=1 // pred_fallthru
      _
    // Predicated region
    $region30: #{tpu_custom_call.1} parent=1 // pred_check
      _
    $region31: #{tpu_custom_call.1} parent=1 // pred_check_branch
      %91 = sbr.rel (0) target = $region33
    $region32: #{tpu_custom_call.1} parent=1 // pred_region
      %93 = dma.done [#allocation6], 49152
    $region33: #{tpu_custom_call.1} parent=1 // pred_fallthru
      _
    // Predicated region
    $region34: #{tpu_custom_call.1} parent=1 // pred_check
      _
    $region35: #{tpu_custom_call.1} parent=1 // pred_check_branch
      %95 = sbr.rel (0) target = $region37
    $region36: #{tpu_custom_call.1} parent=1 // pred_region
      %97 = dma.done [#allocation6], 128
    $region37: #{tpu_custom_call.1} parent=1 // pred_fallthru
      _
    // Predicated region
    $region38: #{tpu_custom_call.1} parent=1 // pred_check
      _
    $region39: #{tpu_custom_call.1} parent=1 // pred_check_branch
      %99 = sbr.rel (0) target = $region41
    $region40: #{tpu_custom_call.1} parent=1 // pred_region
      %101 = dma.done [#allocation9], 128
    $region41: #{tpu_custom_call.1} parent=1 // pred_fallthru
      _
    // Predicated region
    $region42: #{tpu_custom_call.1} parent=1 // pred_check
      _
    $region43: #{tpu_custom_call.1} parent=1 // pred_check_branch
      %103 = sbr.rel (0) target = $region45
    $region44: #{tpu_custom_call.1} parent=1 // pred_region
      %105 = dma.done [#allocation9], 8192
    $region45: #{tpu_custom_call.1} parent=1 // pred_fallthru
      _
    // Predicated region
    $region46: #{tpu_custom_call.1} parent=1 // pred_check
      _
    $region47: #{tpu_custom_call.1} parent=1 // pred_check_branch
      %107 = sbr.rel (0) target = $region49
    $region48: #{tpu_custom_call.1} parent=1 // pred_region
      %109 = dma.done [#allocation12], 16
    $region49: #{tpu_custom_call.1} parent=1 // pred_fallthru
      _
    %v110 = vld [vmem:[#allocation2] sm:$0xff]
    %v111 = vld [vmem:[#allocation2 + $0x8] sm:$0xff]
    %v112 = vld [vmem:[#allocation2 + $0x10] sm:$0xff]
    %v113 = vld [vmem:[#allocation5] sm:$0xff]
    %v114 = vld [vmem:[#allocation5 + $0x8] sm:$0xff]
    %v115 = vld [vmem:[#allocation5 + $0x10] sm:$0xff]
    %v116 = vld [vmem:[#allocation5 + $0x18] sm:$0xff]
    %v117 = vld [vmem:[#allocation5 + $0x20] sm:$0xff]
    %v118 = vld [vmem:[#allocation5 + $0x28] sm:$0xff]
    %v119 = vld [vmem:[#allocation5 + $0x30] sm:$0xff]
    %v120 = vld [vmem:[#allocation5 + $0x38] sm:$0xff]
    %v121 = vld [vmem:[#allocation5 + $0x40] sm:$0xff]
    %v122 = vld [vmem:[#allocation5 + $0x48] sm:$0xff]
    %v123 = vld [vmem:[#allocation5 + $0x50] sm:$0xff]
    %v124 = vld [vmem:[#allocation5 + $0x58] sm:$0xff]
    %v125 = vld [vmem:[#allocation5 + $0x60] sm:$0xff]
    %v126 = vld [vmem:[#allocation5 + $0x68] sm:$0xff]
    %v127 = vld [vmem:[#allocation5 + $0x70] sm:$0xff]
    %v128 = vld [vmem:[#allocation5 + $0x78] sm:$0xff]
    %v129 = vld [vmem:[#allocation5 + $0x80] sm:$0xff]
    %v130 = vld [vmem:[#allocation5 + $0x88] sm:$0xff]
    %v131 = vld [vmem:[#allocation5 + $0x90] sm:$0xff]
    %v132 = vld [vmem:[#allocation5 + $0x98] sm:$0xff]
    %v133 = vld [vmem:[#allocation5 + $0xa0] sm:$0xff]
    %v134 = vld [vmem:[#allocation5 + $0xa8] sm:$0xff]
    %v135 = vld [vmem:[#allocation5 + $0xb0] sm:$0xff]
    %v136 = vld [vmem:[#allocation5 + $0xb8] sm:$0xff]
    %v137 = vld [vmem:[#allocation5 + $0xc0] sm:$0xff]
    %v138 = vld [vmem:[#allocation5 + $0xc8] sm:$0xff]
    %v139 = vld [vmem:[#allocation5 + $0xd0] sm:$0xff]
    %v140 = vld [vmem:[#allocation5 + $0xd8] sm:$0xff]
    %v141 = vld [vmem:[#allocation5 + $0xe0] sm:$0xff]
    %v142 = vld [vmem:[#allocation5 + $0xe8] sm:$0xff]
    %v143 = vld [vmem:[#allocation5 + $0xf0] sm:$0xff]
    %v144 = vld [vmem:[#allocation5 + $0xf8] sm:$0xff]
    %v145 = vld [vmem:[#allocation5 + $0x100] sm:$0xff]
    %v146 = vld [vmem:[#allocation5 + $0x108] sm:$0xff]
    %v147 = vld [vmem:[#allocation5 + $0x110] sm:$0xff]
    %v148 = vld [vmem:[#allocation5 + $0x118] sm:$0xff]
    %v149 = vld [vmem:[#allocation5 + $0x120] sm:$0xff]
    %v150 = vld [vmem:[#allocation5 + $0x128] sm:$0xff]
    %v151 = vld [vmem:[#allocation5 + $0x130] sm:$0xff]
    %v152 = vld [vmem:[#allocation5 + $0x138] sm:$0xff]
    %v153 = vld [vmem:[#allocation5 + $0x140] sm:$0xff]
    %v154 = vld [vmem:[#allocation5 + $0x148] sm:$0xff]
    %v155 = vld [vmem:[#allocation5 + $0x150] sm:$0xff]
    %v156 = vld [vmem:[#allocation5 + $0x158] sm:$0xff]
    %v157 = vld [vmem:[#allocation5 + $0x160] sm:$0xff]
    %v158 = vld [vmem:[#allocation5 + $0x168] sm:$0xff]
    %v159 = vld [vmem:[#allocation5 + $0x170] sm:$0xff]
    %v160 = vld [vmem:[#allocation5 + $0x178] sm:$0xff]
    %v161 = vld [vmem:[#allocation5 + $0x180] sm:$0xff]
    %v162 = vld [vmem:[#allocation5 + $0x188] sm:$0xff]
    %v163 = vld [vmem:[#allocation5 + $0x190] sm:$0xff]
    %v164 = vld [vmem:[#allocation5 + $0x198] sm:$0xff]
    %v165 = vld [vmem:[#allocation5 + $0x1a0] sm:$0xff]
    %v166 = vld [vmem:[#allocation5 + $0x1a8] sm:$0xff]
    %v167 = vld [vmem:[#allocation5 + $0x1b0] sm:$0xff]
    %v168 = vld [vmem:[#allocation5 + $0x1b8] sm:$0xff]
    %v169 = vld [vmem:[#allocation5 + $0x1c0] sm:$0xff]
    %v170 = vld [vmem:[#allocation5 + $0x1c8] sm:$0xff]
    %v171 = vld [vmem:[#allocation5 + $0x1d0] sm:$0xff]
    %v172 = vld [vmem:[#allocation5 + $0x1d8] sm:$0xff]
    %v173 = vld [vmem:[#allocation5 + $0x1e0] sm:$0xff]
    %v174 = vld [vmem:[#allocation5 + $0x1e8] sm:$0xff]
    %v175 = vld [vmem:[#allocation5 + $0x1f0] sm:$0xff]
    %v176 = vld [vmem:[#allocation5 + $0x1f8] sm:$0xff]
    %v177 = vld [vmem:[#allocation5 + $0x200] sm:$0xff]
    %v178 = vld [vmem:[#allocation5 + $0x208] sm:$0xff]
    %v179 = vld [vmem:[#allocation5 + $0x210] sm:$0xff]
    %v180 = vld [vmem:[#allocation5 + $0x218] sm:$0xff]
    %v181 = vld [vmem:[#allocation5 + $0x220] sm:$0xff]
    %v182 = vld [vmem:[#allocation5 + $0x228] sm:$0xff]
    %v183 = vld [vmem:[#allocation5 + $0x230] sm:$0xff]
    %v184 = vld [vmem:[#allocation5 + $0x238] sm:$0xff]
    %v185 = vld [vmem:[#allocation5 + $0x240] sm:$0xff]
    %v186 = vld [vmem:[#allocation5 + $0x248] sm:$0xff]
    %v187 = vld [vmem:[#allocation5 + $0x250] sm:$0xff]
    %v188 = vld [vmem:[#allocation5 + $0x258] sm:$0xff]
    %v189 = vld [vmem:[#allocation5 + $0x260] sm:$0xff]
    %v190 = vld [vmem:[#allocation5 + $0x268] sm:$0xff]
    %v191 = vld [vmem:[#allocation5 + $0x270] sm:$0xff]
    %v192 = vld [vmem:[#allocation5 + $0x278] sm:$0xff]
    %v193 = vld [vmem:[#allocation5 + $0x280] sm:$0xff]
    %v194 = vld [vmem:[#allocation5 + $0x288] sm:$0xff]
    %v195 = vld [vmem:[#allocation5 + $0x290] sm:$0xff]
    %v196 = vld [vmem:[#allocation5 + $0x298] sm:$0xff]
    %v197 = vld [vmem:[#allocation5 + $0x2a0] sm:$0xff]
    %v198 = vld [vmem:[#allocation5 + $0x2a8] sm:$0xff]
    %v199 = vld [vmem:[#allocation5 + $0x2b0] sm:$0xff]
    %v200 = vld [vmem:[#allocation5 + $0x2b8] sm:$0xff]
    %v201 = vld [vmem:[#allocation5 + $0x2c0] sm:$0xff]
    %v202 = vld [vmem:[#allocation5 + $0x2c8] sm:$0xff]
    %v203 = vld [vmem:[#allocation5 + $0x2d0] sm:$0xff]
    %v204 = vld [vmem:[#allocation5 + $0x2d8] sm:$0xff]
    %v205 = vld [vmem:[#allocation5 + $0x2e0] sm:$0xff]
    %v206 = vld [vmem:[#allocation5 + $0x2e8] sm:$0xff]
    %v207 = vld [vmem:[#allocation5 + $0x2f0] sm:$0xff]
    %v208 = vld [vmem:[#allocation5 + $0x2f8] sm:$0xff]
    %v209 = vld [vmem:[#allocation5 + $0x300] sm:$0xff]
    %v210 = vld [vmem:[#allocation5 + $0x308] sm:$0xff]
    %v211 = vld [vmem:[#allocation5 + $0x310] sm:$0xff]
    %v212 = vld [vmem:[#allocation5 + $0x318] sm:$0xff]
    %v213 = vld [vmem:[#allocation5 + $0x320] sm:$0xff]
    %v214 = vld [vmem:[#allocation5 + $0x328] sm:$0xff]
    %v215 = vld [vmem:[#allocation5 + $0x330] sm:$0xff]
    %v216 = vld [vmem:[#allocation5 + $0x338] sm:$0xff]
    %v217 = vld [vmem:[#allocation5 + $0x340] sm:$0xff]
    %v218 = vld [vmem:[#allocation5 + $0x348] sm:$0xff]
    %v219 = vld [vmem:[#allocation5 + $0x350] sm:$0xff]
    %v220 = vld [vmem:[#allocation5 + $0x358] sm:$0xff]
    %v221 = vld [vmem:[#allocation5 + $0x360] sm:$0xff]
    %v222 = vld [vmem:[#allocation5 + $0x368] sm:$0xff]
    %v223 = vld [vmem:[#allocation5 + $0x370] sm:$0xff]
    %v224 = vld [vmem:[#allocation5 + $0x378] sm:$0xff]
    %v225 = vld [vmem:[#allocation5 + $0x380] sm:$0xff]
    %v226 = vld [vmem:[#allocation5 + $0x388] sm:$0xff]
    %v227 = vld [vmem:[#allocation5 + $0x390] sm:$0xff]
    %v228 = vld [vmem:[#allocation5 + $0x398] sm:$0xff]
    %v229 = vld [vmem:[#allocation5 + $0x3a0] sm:$0xff]
    %v230 = vld [vmem:[#allocation5 + $0x3a8] sm:$0xff]
    %v231 = vld [vmem:[#allocation5 + $0x3b0] sm:$0xff]
    %v232 = vld [vmem:[#allocation5 + $0x3b8] sm:$0xff]
    %v233 = vld [vmem:[#allocation5 + $0x3c0] sm:$0xff]
    %v234 = vld [vmem:[#allocation5 + $0x3c8] sm:$0xff]
    %v235 = vld [vmem:[#allocation5 + $0x3d0] sm:$0xff]
    %v236 = vld [vmem:[#allocation5 + $0x3d8] sm:$0xff]
    %v237 = vld [vmem:[#allocation5 + $0x3e0] sm:$0xff]
    %v238 = vld [vmem:[#allocation5 + $0x3e8] sm:$0xff]
    %v239 = vld [vmem:[#allocation5 + $0x3f0] sm:$0xff]
    %v240 = vld [vmem:[#allocation5 + $0x3f8] sm:$0xff]
    %v241 = vld [vmem:[#allocation5 + $0x400] sm:$0xff]
    %v242 = vld [vmem:[#allocation5 + $0x408] sm:$0xff]
    %v243 = vld [vmem:[#allocation5 + $0x410] sm:$0xff]
    %v244 = vld [vmem:[#allocation5 + $0x418] sm:$0xff]
    %v245 = vld [vmem:[#allocation5 + $0x420] sm:$0xff]
    %v246 = vld [vmem:[#allocation5 + $0x428] sm:$0xff]
    %v247 = vld [vmem:[#allocation5 + $0x430] sm:$0xff]
    %v248 = vld [vmem:[#allocation5 + $0x438] sm:$0xff]
    %v249 = vld [vmem:[#allocation5 + $0x440] sm:$0xff]
    %v250 = vld [vmem:[#allocation5 + $0x448] sm:$0xff]
    %v251 = vld [vmem:[#allocation5 + $0x450] sm:$0xff]
    %v252 = vld [vmem:[#allocation5 + $0x458] sm:$0xff]
    %v253 = vld [vmem:[#allocation5 + $0x460] sm:$0xff]
    %v254 = vld [vmem:[#allocation5 + $0x468] sm:$0xff]
    %v255 = vld [vmem:[#allocation5 + $0x470] sm:$0xff]
    %v256 = vld [vmem:[#allocation5 + $0x478] sm:$0xff]
    %v257 = vld [vmem:[#allocation5 + $0x480] sm:$0xff]
    %v258 = vld [vmem:[#allocation5 + $0x488] sm:$0xff]
    %v259 = vld [vmem:[#allocation5 + $0x490] sm:$0xff]
    %v260 = vld [vmem:[#allocation5 + $0x498] sm:$0xff]
    %v261 = vld [vmem:[#allocation5 + $0x4a0] sm:$0xff]
    %v262 = vld [vmem:[#allocation5 + $0x4a8] sm:$0xff]
    %v263 = vld [vmem:[#allocation5 + $0x4b0] sm:$0xff]
    %v264 = vld [vmem:[#allocation5 + $0x4b8] sm:$0xff]
    %v265 = vld [vmem:[#allocation5 + $0x4c0] sm:$0xff]
    %v266 = vld [vmem:[#allocation5 + $0x4c8] sm:$0xff]
    %v267 = vld [vmem:[#allocation5 + $0x4d0] sm:$0xff]
    %v268 = vld [vmem:[#allocation5 + $0x4d8] sm:$0xff]
    %v269 = vld [vmem:[#allocation5 + $0x4e0] sm:$0xff]
    %v270 = vld [vmem:[#allocation5 + $0x4e8] sm:$0xff]
    %v271 = vld [vmem:[#allocation5 + $0x4f0] sm:$0xff]
    %v272 = vld [vmem:[#allocation5 + $0x4f8] sm:$0xff]
    %v273 = vld [vmem:[#allocation5 + $0x500] sm:$0xff]
    %v274 = vld [vmem:[#allocation5 + $0x508] sm:$0xff]
    %v275 = vld [vmem:[#allocation5 + $0x510] sm:$0xff]
    %v276 = vld [vmem:[#allocation5 + $0x518] sm:$0xff]
    %v277 = vld [vmem:[#allocation5 + $0x520] sm:$0xff]
    %v278 = vld [vmem:[#allocation5 + $0x528] sm:$0xff]
    %v279 = vld [vmem:[#allocation5 + $0x530] sm:$0xff]
    %v280 = vld [vmem:[#allocation5 + $0x538] sm:$0xff]
    %v281 = vld [vmem:[#allocation5 + $0x540] sm:$0xff]
    %v282 = vld [vmem:[#allocation5 + $0x548] sm:$0xff]
    %v283 = vld [vmem:[#allocation5 + $0x550] sm:$0xff]
    %v284 = vld [vmem:[#allocation5 + $0x558] sm:$0xff]
    %v285 = vld [vmem:[#allocation5 + $0x560] sm:$0xff]
    %v286 = vld [vmem:[#allocation5 + $0x568] sm:$0xff]
    %v287 = vld [vmem:[#allocation5 + $0x570] sm:$0xff]
    %v288 = vld [vmem:[#allocation5 + $0x578] sm:$0xff]
    %v289 = vld [vmem:[#allocation5 + $0x580] sm:$0xff]
    %v290 = vld [vmem:[#allocation5 + $0x588] sm:$0xff]
    %v291 = vld [vmem:[#allocation5 + $0x590] sm:$0xff]
    %v292 = vld [vmem:[#allocation5 + $0x598] sm:$0xff]
    %v293 = vld [vmem:[#allocation5 + $0x5a0] sm:$0xff]
    %v294 = vld [vmem:[#allocation5 + $0x5a8] sm:$0xff]
    %v295 = vld [vmem:[#allocation5 + $0x5b0] sm:$0xff]
    %v296 = vld [vmem:[#allocation5 + $0x5b8] sm:$0xff]
    %v297 = vld [vmem:[#allocation5 + $0x5c0] sm:$0xff]
    %v298 = vld [vmem:[#allocation5 + $0x5c8] sm:$0xff]
    %v299 = vld [vmem:[#allocation5 + $0x5d0] sm:$0xff]
    %v300 = vld [vmem:[#allocation5 + $0x5d8] sm:$0xff]
    %v301 = vld [vmem:[#allocation5 + $0x5e0] sm:$0xff]
    %v302 = vld [vmem:[#allocation5 + $0x5e8] sm:$0xff]
    %v303 = vld [vmem:[#allocation5 + $0x5f0] sm:$0xff]
    %v304 = vld [vmem:[#allocation5 + $0x5f8] sm:$0xff]
    %v305 = vld [vmem:[#allocation5 + $0x600] sm:$0xff]
    %v306 = vld [vmem:[#allocation5 + $0x608] sm:$0xff]
    %v307 = vld [vmem:[#allocation5 + $0x610] sm:$0xff]
    %v308 = vld [vmem:[#allocation5 + $0x618] sm:$0xff]
    %v309 = vld [vmem:[#allocation5 + $0x620] sm:$0xff]
    %v310 = vld [vmem:[#allocation5 + $0x628] sm:$0xff]
    %v311 = vld [vmem:[#allocation5 + $0x630] sm:$0xff]
    %v312 = vld [vmem:[#allocation5 + $0x638] sm:$0xff]
    %v313 = vld [vmem:[#allocation5 + $0x640] sm:$0xff]
    %v314 = vld [vmem:[#allocation5 + $0x648] sm:$0xff]
    %v315 = vld [vmem:[#allocation5 + $0x650] sm:$0xff]
    %v316 = vld [vmem:[#allocation5 + $0x658] sm:$0xff]
    %v317 = vld [vmem:[#allocation5 + $0x660] sm:$0xff]
    %v318 = vld [vmem:[#allocation5 + $0x668] sm:$0xff]
    %v319 = vld [vmem:[#allocation5 + $0x670] sm:$0xff]
    %v320 = vld [vmem:[#allocation5 + $0x678] sm:$0xff]
    %v321 = vld [vmem:[#allocation5 + $0x680] sm:$0xff]
    %v322 = vld [vmem:[#allocation5 + $0x688] sm:$0xff]
    %v323 = vld [vmem:[#allocation5 + $0x690] sm:$0xff]
    %v324 = vld [vmem:[#allocation5 + $0x698] sm:$0xff]
    %v325 = vld [vmem:[#allocation5 + $0x6a0] sm:$0xff]
    %v326 = vld [vmem:[#allocation5 + $0x6a8] sm:$0xff]
    %v327 = vld [vmem:[#allocation5 + $0x6b0] sm:$0xff]
    %v328 = vld [vmem:[#allocation5 + $0x6b8] sm:$0xff]
    %v329 = vld [vmem:[#allocation5 + $0x6c0] sm:$0xff]
    %v330 = vld [vmem:[#allocation5 + $0x6c8] sm:$0xff]
    %v331 = vld [vmem:[#allocation5 + $0x6d0] sm:$0xff]
    %v332 = vld [vmem:[#allocation5 + $0x6d8] sm:$0xff]
    %v333 = vld [vmem:[#allocation5 + $0x6e0] sm:$0xff]
    %v334 = vld [vmem:[#allocation5 + $0x6e8] sm:$0xff]
    %v335 = vld [vmem:[#allocation5 + $0x6f0] sm:$0xff]
    %v336 = vld [vmem:[#allocation5 + $0x6f8] sm:$0xff]
    %v337 = vld [vmem:[#allocation5 + $0x700] sm:$0xff]
    %v338 = vld [vmem:[#allocation5 + $0x708] sm:$0xff]
    %v339 = vld [vmem:[#allocation5 + $0x710] sm:$0xff]
    %v340 = vld [vmem:[#allocation5 + $0x718] sm:$0xff]
    %v341 = vld [vmem:[#allocation5 + $0x720] sm:$0xff]
    %v342 = vld [vmem:[#allocation5 + $0x728] sm:$0xff]
    %v343 = vld [vmem:[#allocation5 + $0x730] sm:$0xff]
    %v344 = vld [vmem:[#allocation5 + $0x738] sm:$0xff]
    %v345 = vld [vmem:[#allocation5 + $0x740] sm:$0xff]
    %v346 = vld [vmem:[#allocation5 + $0x748] sm:$0xff]
    %v347 = vld [vmem:[#allocation5 + $0x750] sm:$0xff]
    %v348 = vld [vmem:[#allocation5 + $0x758] sm:$0xff]
    %v349 = vld [vmem:[#allocation5 + $0x760] sm:$0xff]
    %v350 = vld [vmem:[#allocation5 + $0x768] sm:$0xff]
    %v351 = vld [vmem:[#allocation5 + $0x770] sm:$0xff]
    %v352 = vld [vmem:[#allocation5 + $0x778] sm:$0xff]
    %v353 = vld [vmem:[#allocation5 + $0x780] sm:$0xff]
    %v354 = vld [vmem:[#allocation5 + $0x788] sm:$0xff]
    %v355 = vld [vmem:[#allocation5 + $0x790] sm:$0xff]
    %v356 = vld [vmem:[#allocation5 + $0x798] sm:$0xff]
    %v357 = vld [vmem:[#allocation5 + $0x7a0] sm:$0xff]
    %v358 = vld [vmem:[#allocation5 + $0x7a8] sm:$0xff]
    %v359 = vld [vmem:[#allocation5 + $0x7b0] sm:$0xff]
    %v360 = vld [vmem:[#allocation5 + $0x7b8] sm:$0xff]
    %v361 = vld [vmem:[#allocation5 + $0x7c0] sm:$0xff]
    %v362 = vld [vmem:[#allocation5 + $0x7c8] sm:$0xff]
    %v363 = vld [vmem:[#allocation5 + $0x7d0] sm:$0xff]
    %v364 = vld [vmem:[#allocation5 + $0x7d8] sm:$0xff]
    %v365 = vld [vmem:[#allocation5 + $0x7e0] sm:$0xff]
    %v366 = vld [vmem:[#allocation5 + $0x7e8] sm:$0xff]
    %v367 = vld [vmem:[#allocation5 + $0x7f0] sm:$0xff]
    %v368 = vld [vmem:[#allocation5 + $0x7f8] sm:$0xff]
    %v369 = vld [vmem:[#allocation5 + $0x800] sm:$0xff]
    %v370 = vld [vmem:[#allocation5 + $0x808] sm:$0xff]
    %v371 = vld [vmem:[#allocation5 + $0x810] sm:$0xff]
    %v372 = vld [vmem:[#allocation5 + $0x818] sm:$0xff]
    %v373 = vld [vmem:[#allocation5 + $0x820] sm:$0xff]
    %v374 = vld [vmem:[#allocation5 + $0x828] sm:$0xff]
    %v375 = vld [vmem:[#allocation5 + $0x830] sm:$0xff]
    %v376 = vld [vmem:[#allocation5 + $0x838] sm:$0xff]
    %v377 = vld [vmem:[#allocation5 + $0x840] sm:$0xff]
    %v378 = vld [vmem:[#allocation5 + $0x848] sm:$0xff]
    %v379 = vld [vmem:[#allocation5 + $0x850] sm:$0xff]
    %v380 = vld [vmem:[#allocation5 + $0x858] sm:$0xff]
    %v381 = vld [vmem:[#allocation5 + $0x860] sm:$0xff]
    %v382 = vld [vmem:[#allocation5 + $0x868] sm:$0xff]
    %v383 = vld [vmem:[#allocation5 + $0x870] sm:$0xff]
    %v384 = vld [vmem:[#allocation5 + $0x878] sm:$0xff]
    %v385 = vld [vmem:[#allocation5 + $0x880] sm:$0xff]
    %v386 = vld [vmem:[#allocation5 + $0x888] sm:$0xff]
    %v387 = vld [vmem:[#allocation5 + $0x890] sm:$0xff]
    %v388 = vld [vmem:[#allocation5 + $0x898] sm:$0xff]
    %v389 = vld [vmem:[#allocation5 + $0x8a0] sm:$0xff]
    %v390 = vld [vmem:[#allocation5 + $0x8a8] sm:$0xff]
    %v391 = vld [vmem:[#allocation5 + $0x8b0] sm:$0xff]
    %v392 = vld [vmem:[#allocation5 + $0x8b8] sm:$0xff]
    %v393 = vld [vmem:[#allocation5 + $0x8c0] sm:$0xff]
    %v394 = vld [vmem:[#allocation5 + $0x8c8] sm:$0xff]
    %v395 = vld [vmem:[#allocation5 + $0x8d0] sm:$0xff]
    %v396 = vld [vmem:[#allocation5 + $0x8d8] sm:$0xff]
    %v397 = vld [vmem:[#allocation5 + $0x8e0] sm:$0xff]
    %v398 = vld [vmem:[#allocation5 + $0x8e8] sm:$0xff]
    %v399 = vld [vmem:[#allocation5 + $0x8f0] sm:$0xff]
    %v400 = vld [vmem:[#allocation5 + $0x8f8] sm:$0xff]
    %v401 = vld [vmem:[#allocation5 + $0x900] sm:$0xff]
    %v402 = vld [vmem:[#allocation5 + $0x908] sm:$0xff]
    %v403 = vld [vmem:[#allocation5 + $0x910] sm:$0xff]
    %v404 = vld [vmem:[#allocation5 + $0x918] sm:$0xff]
    %v405 = vld [vmem:[#allocation5 + $0x920] sm:$0xff]
    %v406 = vld [vmem:[#allocation5 + $0x928] sm:$0xff]
    %v407 = vld [vmem:[#allocation5 + $0x930] sm:$0xff]
    %v408 = vld [vmem:[#allocation5 + $0x938] sm:$0xff]
    %v409 = vld [vmem:[#allocation5 + $0x940] sm:$0xff]
    %v410 = vld [vmem:[#allocation5 + $0x948] sm:$0xff]
    %v411 = vld [vmem:[#allocation5 + $0x950] sm:$0xff]
    %v412 = vld [vmem:[#allocation5 + $0x958] sm:$0xff]
    %v413 = vld [vmem:[#allocation5 + $0x960] sm:$0xff]
    %v414 = vld [vmem:[#allocation5 + $0x968] sm:$0xff]
    %v415 = vld [vmem:[#allocation5 + $0x970] sm:$0xff]
    %v416 = vld [vmem:[#allocation5 + $0x978] sm:$0xff]
    %v417 = vld [vmem:[#allocation5 + $0x980] sm:$0xff]
    %v418 = vld [vmem:[#allocation5 + $0x988] sm:$0xff]
    %v419 = vld [vmem:[#allocation5 + $0x990] sm:$0xff]
    %v420 = vld [vmem:[#allocation5 + $0x998] sm:$0xff]
    %v421 = vld [vmem:[#allocation5 + $0x9a0] sm:$0xff]
    %v422 = vld [vmem:[#allocation5 + $0x9a8] sm:$0xff]
    %v423 = vld [vmem:[#allocation5 + $0x9b0] sm:$0xff]
    %v424 = vld [vmem:[#allocation5 + $0x9b8] sm:$0xff]
    %v425 = vld [vmem:[#allocation5 + $0x9c0] sm:$0xff]
    %v426 = vld [vmem:[#allocation5 + $0x9c8] sm:$0xff]
    %v427 = vld [vmem:[#allocation5 + $0x9d0] sm:$0xff]
    %v428 = vld [vmem:[#allocation5 + $0x9d8] sm:$0xff]
    %v429 = vld [vmem:[#allocation5 + $0x9e0] sm:$0xff]
    %v430 = vld [vmem:[#allocation5 + $0x9e8] sm:$0xff]
    %v431 = vld [vmem:[#allocation5 + $0x9f0] sm:$0xff]
    %v432 = vld [vmem:[#allocation5 + $0x9f8] sm:$0xff]
    %v433 = vld [vmem:[#allocation5 + $0xa00] sm:$0xff]
    %v434 = vld [vmem:[#allocation5 + $0xa08] sm:$0xff]
    %v435 = vld [vmem:[#allocation5 + $0xa10] sm:$0xff]
    %v436 = vld [vmem:[#allocation5 + $0xa18] sm:$0xff]
    %v437 = vld [vmem:[#allocation5 + $0xa20] sm:$0xff]
    %v438 = vld [vmem:[#allocation5 + $0xa28] sm:$0xff]
    %v439 = vld [vmem:[#allocation5 + $0xa30] sm:$0xff]
    %v440 = vld [vmem:[#allocation5 + $0xa38] sm:$0xff]
    %v441 = vld [vmem:[#allocation5 + $0xa40] sm:$0xff]
    %v442 = vld [vmem:[#allocation5 + $0xa48] sm:$0xff]
    %v443 = vld [vmem:[#allocation5 + $0xa50] sm:$0xff]
    %v444 = vld [vmem:[#allocation5 + $0xa58] sm:$0xff]
    %v445 = vld [vmem:[#allocation5 + $0xa60] sm:$0xff]
    %v446 = vld [vmem:[#allocation5 + $0xa68] sm:$0xff]
    %v447 = vld [vmem:[#allocation5 + $0xa70] sm:$0xff]
    %v448 = vld [vmem:[#allocation5 + $0xa78] sm:$0xff]
    %v449 = vld [vmem:[#allocation5 + $0xa80] sm:$0xff]
    %v450 = vld [vmem:[#allocation5 + $0xa88] sm:$0xff]
    %v451 = vld [vmem:[#allocation5 + $0xa90] sm:$0xff]
    %v452 = vld [vmem:[#allocation5 + $0xa98] sm:$0xff]
    %v453 = vld [vmem:[#allocation5 + $0xaa0] sm:$0xff]
    %v454 = vld [vmem:[#allocation5 + $0xaa8] sm:$0xff]
    %v455 = vld [vmem:[#allocation5 + $0xab0] sm:$0xff]
    %v456 = vld [vmem:[#allocation5 + $0xab8] sm:$0xff]
    %v457 = vld [vmem:[#allocation5 + $0xac0] sm:$0xff]
    %v458 = vld [vmem:[#allocation5 + $0xac8] sm:$0xff]
    %v459 = vld [vmem:[#allocation5 + $0xad0] sm:$0xff]
    %v460 = vld [vmem:[#allocation5 + $0xad8] sm:$0xff]
    %v461 = vld [vmem:[#allocation5 + $0xae0] sm:$0xff]
    %v462 = vld [vmem:[#allocation5 + $0xae8] sm:$0xff]
    %v463 = vld [vmem:[#allocation5 + $0xaf0] sm:$0xff]
    %v464 = vld [vmem:[#allocation5 + $0xaf8] sm:$0xff]
    %v465 = vld [vmem:[#allocation5 + $0xb00] sm:$0xff]
    %v466 = vld [vmem:[#allocation5 + $0xb08] sm:$0xff]
    %v467 = vld [vmem:[#allocation5 + $0xb10] sm:$0xff]
    %v468 = vld [vmem:[#allocation5 + $0xb18] sm:$0xff]
    %v469 = vld [vmem:[#allocation5 + $0xb20] sm:$0xff]
    %v470 = vld [vmem:[#allocation5 + $0xb28] sm:$0xff]
    %v471 = vld [vmem:[#allocation5 + $0xb30] sm:$0xff]
    %v472 = vld [vmem:[#allocation5 + $0xb38] sm:$0xff]
    %v473 = vld [vmem:[#allocation5 + $0xb40] sm:$0xff]
    %v474 = vld [vmem:[#allocation5 + $0xb48] sm:$0xff]
    %v475 = vld [vmem:[#allocation5 + $0xb50] sm:$0xff]
    %v476 = vld [vmem:[#allocation5 + $0xb58] sm:$0xff]
    %v477 = vld [vmem:[#allocation5 + $0xb60] sm:$0xff]
    %v478 = vld [vmem:[#allocation5 + $0xb68] sm:$0xff]
    %v479 = vld [vmem:[#allocation5 + $0xb70] sm:$0xff]
    %v480 = vld [vmem:[#allocation5 + $0xb78] sm:$0xff]
    %v481 = vld [vmem:[#allocation5 + $0xb80] sm:$0xff]
    %v482 = vld [vmem:[#allocation5 + $0xb88] sm:$0xff]
    %v483 = vld [vmem:[#allocation5 + $0xb90] sm:$0xff]
    %v484 = vld [vmem:[#allocation5 + $0xb98] sm:$0xff]
    %v485 = vld [vmem:[#allocation5 + $0xba0] sm:$0xff]
    %v486 = vld [vmem:[#allocation5 + $0xba8] sm:$0xff]
    %v487 = vld [vmem:[#allocation5 + $0xbb0] sm:$0xff]
    %v488 = vld [vmem:[#allocation5 + $0xbb8] sm:$0xff]
    %v489 = vld [vmem:[#allocation5 + $0xbc0] sm:$0xff]
    %v490 = vld [vmem:[#allocation5 + $0xbc8] sm:$0xff]
    %v491 = vld [vmem:[#allocation5 + $0xbd0] sm:$0xff]
    %v492 = vld [vmem:[#allocation5 + $0xbd8] sm:$0xff]
    %v493 = vld [vmem:[#allocation5 + $0xbe0] sm:$0xff]
    %v494 = vld [vmem:[#allocation5 + $0xbe8] sm:$0xff]
    %v495 = vld [vmem:[#allocation5 + $0xbf0] sm:$0xff]
    %v496 = vld [vmem:[#allocation5 + $0xbf8] sm:$0xff]
    %v500 = vunpack.c.l.b16 %v110
    %v501 = vunpack.c.h.b16 %v110
    %v502 = vunpack.c.l.b16 %v111
    %v503 = vunpack.c.h.b16 %v111
    %v504 = vunpack.c.l.b16 %v112
    %v505 = vunpack.c.h.b16 %v112
    %v506 = vpack.c.b16 %v500, %v500
    %v507 = vpack.c.b16 %v501, %v501
    %v508 = vpack.c.b16 %v502, %v502
    %v509 = vpack.c.b16 %v503, %v503
    %v510 = vpack.c.b16 %v504, %v504
    %v511 = vpack.c.b16 %v505, %v505
    %v902 = vunpack.c.l.b16 %v113
    %v903 = vunpack.c.h.b16 %v113
    %v904 = vunpack.c.l.b16 %v114
    %v905 = vunpack.c.h.b16 %v114
    %v906 = vunpack.c.l.b16 %v115
    %v907 = vunpack.c.h.b16 %v115
    %v908 = vunpack.c.l.b16 %v116
    %v909 = vunpack.c.h.b16 %v116
    %v910 = vunpack.c.l.b16 %v117
    %v911 = vunpack.c.h.b16 %v117
    %v912 = vunpack.c.l.b16 %v118
    %v913 = vunpack.c.h.b16 %v118
    %v914 = vunpack.c.l.b16 %v119
    %v915 = vunpack.c.h.b16 %v119
    %v916 = vunpack.c.l.b16 %v120
    %v917 = vunpack.c.h.b16 %v120
    %v918 = vunpack.c.l.b16 %v121
    %v919 = vunpack.c.h.b16 %v121
    %v920 = vunpack.c.l.b16 %v122
    %v921 = vunpack.c.h.b16 %v122
    %v922 = vunpack.c.l.b16 %v123
    %v923 = vunpack.c.h.b16 %v123
    %v924 = vunpack.c.l.b16 %v124
    %v925 = vunpack.c.h.b16 %v124
    %v926 = vunpack.c.l.b16 %v125
    %v927 = vunpack.c.h.b16 %v125
    %v928 = vunpack.c.l.b16 %v126
    %v929 = vunpack.c.h.b16 %v126
    %v930 = vunpack.c.l.b16 %v127
    %v931 = vunpack.c.h.b16 %v127
    %v932 = vunpack.c.l.b16 %v128
    %v933 = vunpack.c.h.b16 %v128
    %v934 = vunpack.c.l.b16 %v129
    %v935 = vunpack.c.h.b16 %v129
    %v936 = vunpack.c.l.b16 %v130
    %v937 = vunpack.c.h.b16 %v130
    %v938 = vunpack.c.l.b16 %v131
    %v939 = vunpack.c.h.b16 %v131
    %v940 = vunpack.c.l.b16 %v132
    %v941 = vunpack.c.h.b16 %v132
    %v942 = vunpack.c.l.b16 %v133
    %v943 = vunpack.c.h.b16 %v133
    %v944 = vunpack.c.l.b16 %v134
    %v945 = vunpack.c.h.b16 %v134
    %v946 = vunpack.c.l.b16 %v135
    %v947 = vunpack.c.h.b16 %v135
    %v948 = vunpack.c.l.b16 %v136
    %v949 = vunpack.c.h.b16 %v136
    %v950 = vunpack.c.l.b16 %v137
    %v951 = vunpack.c.h.b16 %v137
    %v952 = vunpack.c.l.b16 %v138
    %v953 = vunpack.c.h.b16 %v138
    %v954 = vunpack.c.l.b16 %v139
    %v955 = vunpack.c.h.b16 %v139
    %v956 = vunpack.c.l.b16 %v140
    %v957 = vunpack.c.h.b16 %v140
    %v958 = vunpack.c.l.b16 %v141
    %v959 = vunpack.c.h.b16 %v141
    %v960 = vunpack.c.l.b16 %v142
    %v961 = vunpack.c.h.b16 %v142
    %v962 = vunpack.c.l.b16 %v143
    %v963 = vunpack.c.h.b16 %v143
    %v964 = vunpack.c.l.b16 %v144
    %v965 = vunpack.c.h.b16 %v144
    %v966 = vunpack.c.l.b16 %v145
    %v967 = vunpack.c.h.b16 %v145
    %v968 = vunpack.c.l.b16 %v146
    %v969 = vunpack.c.h.b16 %v146
    %v970 = vunpack.c.l.b16 %v147
    %v971 = vunpack.c.h.b16 %v147
    %v972 = vunpack.c.l.b16 %v148
    %v973 = vunpack.c.h.b16 %v148
    %v974 = vunpack.c.l.b16 %v149
    %v975 = vunpack.c.h.b16 %v149
    %v976 = vunpack.c.l.b16 %v150
    %v977 = vunpack.c.h.b16 %v150
    %v978 = vunpack.c.l.b16 %v151
    %v979 = vunpack.c.h.b16 %v151
    %v980 = vunpack.c.l.b16 %v152
    %v981 = vunpack.c.h.b16 %v152
    %v982 = vunpack.c.l.b16 %v153
    %v983 = vunpack.c.h.b16 %v153
    %v984 = vunpack.c.l.b16 %v154
    %v985 = vunpack.c.h.b16 %v154
    %v986 = vunpack.c.l.b16 %v155
    %v987 = vunpack.c.h.b16 %v155
    %v988 = vunpack.c.l.b16 %v156
    %v989 = vunpack.c.h.b16 %v156
    %v990 = vunpack.c.l.b16 %v157
    %v991 = vunpack.c.h.b16 %v157
    %v992 = vunpack.c.l.b16 %v158
    %v993 = vunpack.c.h.b16 %v158
    %v994 = vunpack.c.l.b16 %v159
    %v995 = vunpack.c.h.b16 %v159
    %v996 = vunpack.c.l.b16 %v160
    %v997 = vunpack.c.h.b16 %v160
    %v998 = vunpack.c.l.b16 %v161
    %v999 = vunpack.c.h.b16 %v161
    %v1000 = vunpack.c.l.b16 %v162
    %v1001 = vunpack.c.h.b16 %v162
    %v1002 = vunpack.c.l.b16 %v163
    %v1003 = vunpack.c.h.b16 %v163
    %v1004 = vunpack.c.l.b16 %v164
    %v1005 = vunpack.c.h.b16 %v164
    %v1006 = vunpack.c.l.b16 %v165
    %v1007 = vunpack.c.h.b16 %v165
    %v1008 = vunpack.c.l.b16 %v166
    %v1009 = vunpack.c.h.b16 %v166
    %v1010 = vunpack.c.l.b16 %v167
    %v1011 = vunpack.c.h.b16 %v167
    %v1012 = vunpack.c.l.b16 %v168
    %v1013 = vunpack.c.h.b16 %v168
    %v1014 = vunpack.c.l.b16 %v169
    %v1015 = vunpack.c.h.b16 %v169
    %v1016 = vunpack.c.l.b16 %v170
    %v1017 = vunpack.c.h.b16 %v170
    %v1018 = vunpack.c.l.b16 %v171
    %v1019 = vunpack.c.h.b16 %v171
    %v1020 = vunpack.c.l.b16 %v172
    %v1021 = vunpack.c.h.b16 %v172
    %v1022 = vunpack.c.l.b16 %v173
    %v1023 = vunpack.c.h.b16 %v173
    %v1024 = vunpack.c.l.b16 %v174
    %v1025 = vunpack.c.h.b16 %v174
    %v1026 = vunpack.c.l.b16 %v175
    %v1027 = vunpack.c.h.b16 %v175
    %v1028 = vunpack.c.l.b16 %v176
    %v1029 = vunpack.c.h.b16 %v176
    %v1030 = vunpack.c.l.b16 %v177
    %v1031 = vunpack.c.h.b16 %v177
    %v1032 = vunpack.c.l.b16 %v178
    %v1033 = vunpack.c.h.b16 %v178
    %v1034 = vunpack.c.l.b16 %v179
    %v1035 = vunpack.c.h.b16 %v179
    %v1036 = vunpack.c.l.b16 %v180
    %v1037 = vunpack.c.h.b16 %v180
    %v1038 = vunpack.c.l.b16 %v181
    %v1039 = vunpack.c.h.b16 %v181
    %v1040 = vunpack.c.l.b16 %v182
    %v1041 = vunpack.c.h.b16 %v182
    %v1042 = vunpack.c.l.b16 %v183
    %v1043 = vunpack.c.h.b16 %v183
    %v1044 = vunpack.c.l.b16 %v184
    %v1045 = vunpack.c.h.b16 %v184
    %v1046 = vunpack.c.l.b16 %v185
    %v1047 = vunpack.c.h.b16 %v185
    %v1048 = vunpack.c.l.b16 %v186
    %v1049 = vunpack.c.h.b16 %v186
    %v1050 = vunpack.c.l.b16 %v187
    %v1051 = vunpack.c.h.b16 %v187
    %v1052 = vunpack.c.l.b16 %v188
    %v1053 = vunpack.c.h.b16 %v188
    %v1054 = vunpack.c.l.b16 %v189
    %v1055 = vunpack.c.h.b16 %v189
    %v1056 = vunpack.c.l.b16 %v190
    %v1057 = vunpack.c.h.b16 %v190
    %v1058 = vunpack.c.l.b16 %v191
    %v1059 = vunpack.c.h.b16 %v191
    %v1060 = vunpack.c.l.b16 %v192
    %v1061 = vunpack.c.h.b16 %v192
    %v1062 = vunpack.c.l.b16 %v193
    %v1063 = vunpack.c.h.b16 %v193
    %v1064 = vunpack.c.l.b16 %v194
    %v1065 = vunpack.c.h.b16 %v194
    %v1066 = vunpack.c.l.b16 %v195
    %v1067 = vunpack.c.h.b16 %v195
    %v1068 = vunpack.c.l.b16 %v196
    %v1069 = vunpack.c.h.b16 %v196
    %v1070 = vunpack.c.l.b16 %v197
    %v1071 = vunpack.c.h.b16 %v197
    %v1072 = vunpack.c.l.b16 %v198
    %v1073 = vunpack.c.h.b16 %v198
    %v1074 = vunpack.c.l.b16 %v199
    %v1075 = vunpack.c.h.b16 %v199
    %v1076 = vunpack.c.l.b16 %v200
    %v1077 = vunpack.c.h.b16 %v200
    %v1078 = vunpack.c.l.b16 %v201
    %v1079 = vunpack.c.h.b16 %v201
    %v1080 = vunpack.c.l.b16 %v202
    %v1081 = vunpack.c.h.b16 %v202
    %v1082 = vunpack.c.l.b16 %v203
    %v1083 = vunpack.c.h.b16 %v203
    %v1084 = vunpack.c.l.b16 %v204
    %v1085 = vunpack.c.h.b16 %v204
    %v1086 = vunpack.c.l.b16 %v205
    %v1087 = vunpack.c.h.b16 %v205
    %v1088 = vunpack.c.l.b16 %v206
    %v1089 = vunpack.c.h.b16 %v206
    %v1090 = vunpack.c.l.b16 %v207
    %v1091 = vunpack.c.h.b16 %v207
    %v1092 = vunpack.c.l.b16 %v208
    %v1093 = vunpack.c.h.b16 %v208
    %v1094 = vunpack.c.l.b16 %v209
    %v1095 = vunpack.c.h.b16 %v209
    %v1096 = vunpack.c.l.b16 %v210
    %v1097 = vunpack.c.h.b16 %v210
    %v1098 = vunpack.c.l.b16 %v211
    %v1099 = vunpack.c.h.b16 %v211
    %v1100 = vunpack.c.l.b16 %v212
    %v1101 = vunpack.c.h.b16 %v212
    %v1102 = vunpack.c.l.b16 %v213
    %v1103 = vunpack.c.h.b16 %v213
    %v1104 = vunpack.c.l.b16 %v214
    %v1105 = vunpack.c.h.b16 %v214
    %v1106 = vunpack.c.l.b16 %v215
    %v1107 = vunpack.c.h.b16 %v215
    %v1108 = vunpack.c.l.b16 %v216
    %v1109 = vunpack.c.h.b16 %v216
    %v1110 = vunpack.c.l.b16 %v217
    %v1111 = vunpack.c.h.b16 %v217
    %v1112 = vunpack.c.l.b16 %v218
    %v1113 = vunpack.c.h.b16 %v218
    %v1114 = vunpack.c.l.b16 %v219
    %v1115 = vunpack.c.h.b16 %v219
    %v1116 = vunpack.c.l.b16 %v220
    %v1117 = vunpack.c.h.b16 %v220
    %v1118 = vunpack.c.l.b16 %v221
    %v1119 = vunpack.c.h.b16 %v221
    %v1120 = vunpack.c.l.b16 %v222
    %v1121 = vunpack.c.h.b16 %v222
    %v1122 = vunpack.c.l.b16 %v223
    %v1123 = vunpack.c.h.b16 %v223
    %v1124 = vunpack.c.l.b16 %v224
    %v1125 = vunpack.c.h.b16 %v224
    %v1126 = vunpack.c.l.b16 %v225
    %v1127 = vunpack.c.h.b16 %v225
    %v1128 = vunpack.c.l.b16 %v226
    %v1129 = vunpack.c.h.b16 %v226
    %v1130 = vunpack.c.l.b16 %v227
    %v1131 = vunpack.c.h.b16 %v227
    %v1132 = vunpack.c.l.b16 %v228
    %v1133 = vunpack.c.h.b16 %v228
    %v1134 = vunpack.c.l.b16 %v229
    %v1135 = vunpack.c.h.b16 %v229
    %v1136 = vunpack.c.l.b16 %v230
    %v1137 = vunpack.c.h.b16 %v230
    %v1138 = vunpack.c.l.b16 %v231
    %v1139 = vunpack.c.h.b16 %v231
    %v1140 = vunpack.c.l.b16 %v232
    %v1141 = vunpack.c.h.b16 %v232
    %v1142 = vunpack.c.l.b16 %v233
    %v1143 = vunpack.c.h.b16 %v233
    %v1144 = vunpack.c.l.b16 %v234
    %v1145 = vunpack.c.h.b16 %v234
    %v1146 = vunpack.c.l.b16 %v235
    %v1147 = vunpack.c.h.b16 %v235
    %v1148 = vunpack.c.l.b16 %v236
    %v1149 = vunpack.c.h.b16 %v236
    %v1150 = vunpack.c.l.b16 %v237
    %v1151 = vunpack.c.h.b16 %v237
    %v1152 = vunpack.c.l.b16 %v238
    %v1153 = vunpack.c.h.b16 %v238
    %v1154 = vunpack.c.l.b16 %v239
    %v1155 = vunpack.c.h.b16 %v239
    %v1156 = vunpack.c.l.b16 %v240
    %v1157 = vunpack.c.h.b16 %v240
    %v1158 = vunpack.c.l.b16 %v241
    %v1159 = vunpack.c.h.b16 %v241
    %v1160 = vunpack.c.l.b16 %v242
    %v1161 = vunpack.c.h.b16 %v242
    %v1162 = vunpack.c.l.b16 %v243
    %v1163 = vunpack.c.h.b16 %v243
    %v1164 = vunpack.c.l.b16 %v244
    %v1165 = vunpack.c.h.b16 %v244
    %v1166 = vunpack.c.l.b16 %v245
    %v1167 = vunpack.c.h.b16 %v245
    %v1168 = vunpack.c.l.b16 %v246
    %v1169 = vunpack.c.h.b16 %v246
    %v1170 = vunpack.c.l.b16 %v247
    %v1171 = vunpack.c.h.b16 %v247
    %v1172 = vunpack.c.l.b16 %v248
    %v1173 = vunpack.c.h.b16 %v248
    %v1174 = vunpack.c.l.b16 %v249
    %v1175 = vunpack.c.h.b16 %v249
    %v1176 = vunpack.c.l.b16 %v250
    %v1177 = vunpack.c.h.b16 %v250
    %v1178 = vunpack.c.l.b16 %v251
    %v1179 = vunpack.c.h.b16 %v251
    %v1180 = vunpack.c.l.b16 %v252
    %v1181 = vunpack.c.h.b16 %v252
    %v1182 = vunpack.c.l.b16 %v253
    %v1183 = vunpack.c.h.b16 %v253
    %v1184 = vunpack.c.l.b16 %v254
    %v1185 = vunpack.c.h.b16 %v254
    %v1186 = vunpack.c.l.b16 %v255
    %v1187 = vunpack.c.h.b16 %v255
    %v1188 = vunpack.c.l.b16 %v256
    %v1189 = vunpack.c.h.b16 %v256
    %v1190 = vunpack.c.l.b16 %v257
    %v1191 = vunpack.c.h.b16 %v257
    %v1192 = vunpack.c.l.b16 %v258
    %v1193 = vunpack.c.h.b16 %v258
    %v1194 = vunpack.c.l.b16 %v259
    %v1195 = vunpack.c.h.b16 %v259
    %v1196 = vunpack.c.l.b16 %v260
    %v1197 = vunpack.c.h.b16 %v260
    %v1198 = vunpack.c.l.b16 %v261
    %v1199 = vunpack.c.h.b16 %v261
    %v1200 = vunpack.c.l.b16 %v262
    %v1201 = vunpack.c.h.b16 %v262
    %v1202 = vunpack.c.l.b16 %v263
    %v1203 = vunpack.c.h.b16 %v263
    %v1204 = vunpack.c.l.b16 %v264
    %v1205 = vunpack.c.h.b16 %v264
    %v1206 = vunpack.c.l.b16 %v265
    %v1207 = vunpack.c.h.b16 %v265
    %v1208 = vunpack.c.l.b16 %v266
    %v1209 = vunpack.c.h.b16 %v266
    %v1210 = vunpack.c.l.b16 %v267
    %v1211 = vunpack.c.h.b16 %v267
    %v1212 = vunpack.c.l.b16 %v268
    %v1213 = vunpack.c.h.b16 %v268
    %v1214 = vunpack.c.l.b16 %v269
    %v1215 = vunpack.c.h.b16 %v269
    %v1216 = vunpack.c.l.b16 %v270
    %v1217 = vunpack.c.h.b16 %v270
    %v1218 = vunpack.c.l.b16 %v271
    %v1219 = vunpack.c.h.b16 %v271
    %v1220 = vunpack.c.l.b16 %v272
    %v1221 = vunpack.c.h.b16 %v272
    %v1222 = vunpack.c.l.b16 %v273
    %v1223 = vunpack.c.h.b16 %v273
    %v1224 = vunpack.c.l.b16 %v274
    %v1225 = vunpack.c.h.b16 %v274
    %v1226 = vunpack.c.l.b16 %v275
    %v1227 = vunpack.c.h.b16 %v275
    %v1228 = vunpack.c.l.b16 %v276
    %v1229 = vunpack.c.h.b16 %v276
    %v1230 = vunpack.c.l.b16 %v277
    %v1231 = vunpack.c.h.b16 %v277
    %v1232 = vunpack.c.l.b16 %v278
    %v1233 = vunpack.c.h.b16 %v278
    %v1234 = vunpack.c.l.b16 %v279
    %v1235 = vunpack.c.h.b16 %v279
    %v1236 = vunpack.c.l.b16 %v280
    %v1237 = vunpack.c.h.b16 %v280
    %v1238 = vunpack.c.l.b16 %v281
    %v1239 = vunpack.c.h.b16 %v281
    %v1240 = vunpack.c.l.b16 %v282
    %v1241 = vunpack.c.h.b16 %v282
    %v1242 = vunpack.c.l.b16 %v283
    %v1243 = vunpack.c.h.b16 %v283
    %v1244 = vunpack.c.l.b16 %v284
    %v1245 = vunpack.c.h.b16 %v284
    %v1246 = vunpack.c.l.b16 %v285
    %v1247 = vunpack.c.h.b16 %v285
    %v1248 = vunpack.c.l.b16 %v286
    %v1249 = vunpack.c.h.b16 %v286
    %v1250 = vunpack.c.l.b16 %v287
    %v1251 = vunpack.c.h.b16 %v287
    %v1252 = vunpack.c.l.b16 %v288
    %v1253 = vunpack.c.h.b16 %v288
    %v1254 = vunpack.c.l.b16 %v289
    %v1255 = vunpack.c.h.b16 %v289
    %v1256 = vunpack.c.l.b16 %v290
    %v1257 = vunpack.c.h.b16 %v290
    %v1258 = vunpack.c.l.b16 %v291
    %v1259 = vunpack.c.h.b16 %v291
    %v1260 = vunpack.c.l.b16 %v292
    %v1261 = vunpack.c.h.b16 %v292
    %v1262 = vunpack.c.l.b16 %v293
    %v1263 = vunpack.c.h.b16 %v293
    %v1264 = vunpack.c.l.b16 %v294
    %v1265 = vunpack.c.h.b16 %v294
    %v1266 = vunpack.c.l.b16 %v295
    %v1267 = vunpack.c.h.b16 %v295
    %v1268 = vunpack.c.l.b16 %v296
    %v1269 = vunpack.c.h.b16 %v296
    %v1270 = vunpack.c.l.b16 %v297
    %v1271 = vunpack.c.h.b16 %v297
    %v1272 = vunpack.c.l.b16 %v298
    %v1273 = vunpack.c.h.b16 %v298
    %v1274 = vunpack.c.l.b16 %v299
    %v1275 = vunpack.c.h.b16 %v299
    %v1276 = vunpack.c.l.b16 %v300
    %v1277 = vunpack.c.h.b16 %v300
    %v1278 = vunpack.c.l.b16 %v301
    %v1279 = vunpack.c.h.b16 %v301
    %v1280 = vunpack.c.l.b16 %v302
    %v1281 = vunpack.c.h.b16 %v302
    %v1282 = vunpack.c.l.b16 %v303
    %v1283 = vunpack.c.h.b16 %v303
    %v1284 = vunpack.c.l.b16 %v304
    %v1285 = vunpack.c.h.b16 %v304
    %v1286 = vunpack.c.l.b16 %v305
    %v1287 = vunpack.c.h.b16 %v305
    %v1288 = vunpack.c.l.b16 %v306
    %v1289 = vunpack.c.h.b16 %v306
    %v1290 = vunpack.c.l.b16 %v307
    %v1291 = vunpack.c.h.b16 %v307
    %v1292 = vunpack.c.l.b16 %v308
    %v1293 = vunpack.c.h.b16 %v308
    %v1294 = vunpack.c.l.b16 %v309
    %v1295 = vunpack.c.h.b16 %v309
    %v1296 = vunpack.c.l.b16 %v310
    %v1297 = vunpack.c.h.b16 %v310
    %v1298 = vunpack.c.l.b16 %v311
    %v1299 = vunpack.c.h.b16 %v311
    %v1300 = vunpack.c.l.b16 %v312
    %v1301 = vunpack.c.h.b16 %v312
    %v1302 = vunpack.c.l.b16 %v313
    %v1303 = vunpack.c.h.b16 %v313
    %v1304 = vunpack.c.l.b16 %v314
    %v1305 = vunpack.c.h.b16 %v314
    %v1306 = vunpack.c.l.b16 %v315
    %v1307 = vunpack.c.h.b16 %v315
    %v1308 = vunpack.c.l.b16 %v316
    %v1309 = vunpack.c.h.b16 %v316
    %v1310 = vunpack.c.l.b16 %v317
    %v1311 = vunpack.c.h.b16 %v317
    %v1312 = vunpack.c.l.b16 %v318
    %v1313 = vunpack.c.h.b16 %v318
    %v1314 = vunpack.c.l.b16 %v319
    %v1315 = vunpack.c.h.b16 %v319
    %v1316 = vunpack.c.l.b16 %v320
    %v1317 = vunpack.c.h.b16 %v320
    %v1318 = vunpack.c.l.b16 %v321
    %v1319 = vunpack.c.h.b16 %v321
    %v1320 = vunpack.c.l.b16 %v322
    %v1321 = vunpack.c.h.b16 %v322
    %v1322 = vunpack.c.l.b16 %v323
    %v1323 = vunpack.c.h.b16 %v323
    %v1324 = vunpack.c.l.b16 %v324
    %v1325 = vunpack.c.h.b16 %v324
    %v1326 = vunpack.c.l.b16 %v325
    %v1327 = vunpack.c.h.b16 %v325
    %v1328 = vunpack.c.l.b16 %v326
    %v1329 = vunpack.c.h.b16 %v326
    %v1330 = vunpack.c.l.b16 %v327
    %v1331 = vunpack.c.h.b16 %v327
    %v1332 = vunpack.c.l.b16 %v328
    %v1333 = vunpack.c.h.b16 %v328
    %v1334 = vunpack.c.l.b16 %v329
    %v1335 = vunpack.c.h.b16 %v329
    %v1336 = vunpack.c.l.b16 %v330
    %v1337 = vunpack.c.h.b16 %v330
    %v1338 = vunpack.c.l.b16 %v331
    %v1339 = vunpack.c.h.b16 %v331
    %v1340 = vunpack.c.l.b16 %v332
    %v1341 = vunpack.c.h.b16 %v332
    %v1342 = vunpack.c.l.b16 %v333
    %v1343 = vunpack.c.h.b16 %v333
    %v1344 = vunpack.c.l.b16 %v334
    %v1345 = vunpack.c.h.b16 %v334
    %v1346 = vunpack.c.l.b16 %v335
    %v1347 = vunpack.c.h.b16 %v335
    %v1348 = vunpack.c.l.b16 %v336
    %v1349 = vunpack.c.h.b16 %v336
    %v1350 = vunpack.c.l.b16 %v337
    %v1351 = vunpack.c.h.b16 %v337
    %v1352 = vunpack.c.l.b16 %v338
    %v1353 = vunpack.c.h.b16 %v338
    %v1354 = vunpack.c.l.b16 %v339
    %v1355 = vunpack.c.h.b16 %v339
    %v1356 = vunpack.c.l.b16 %v340
    %v1357 = vunpack.c.h.b16 %v340
    %v1358 = vunpack.c.l.b16 %v341
    %v1359 = vunpack.c.h.b16 %v341
    %v1360 = vunpack.c.l.b16 %v342
    %v1361 = vunpack.c.h.b16 %v342
    %v1362 = vunpack.c.l.b16 %v343
    %v1363 = vunpack.c.h.b16 %v343
    %v1364 = vunpack.c.l.b16 %v344
    %v1365 = vunpack.c.h.b16 %v344
    %v1366 = vunpack.c.l.b16 %v345
    %v1367 = vunpack.c.h.b16 %v345
    %v1368 = vunpack.c.l.b16 %v346
    %v1369 = vunpack.c.h.b16 %v346
    %v1370 = vunpack.c.l.b16 %v347
    %v1371 = vunpack.c.h.b16 %v347
    %v1372 = vunpack.c.l.b16 %v348
    %v1373 = vunpack.c.h.b16 %v348
    %v1374 = vunpack.c.l.b16 %v349
    %v1375 = vunpack.c.h.b16 %v349
    %v1376 = vunpack.c.l.b16 %v350
    %v1377 = vunpack.c.h.b16 %v350
    %v1378 = vunpack.c.l.b16 %v351
    %v1379 = vunpack.c.h.b16 %v351
    %v1380 = vunpack.c.l.b16 %v352
    %v1381 = vunpack.c.h.b16 %v352
    %v1382 = vunpack.c.l.b16 %v353
    %v1383 = vunpack.c.h.b16 %v353
    %v1384 = vunpack.c.l.b16 %v354
    %v1385 = vunpack.c.h.b16 %v354
    %v1386 = vunpack.c.l.b16 %v355
    %v1387 = vunpack.c.h.b16 %v355
    %v1388 = vunpack.c.l.b16 %v356
    %v1389 = vunpack.c.h.b16 %v356
    %v1390 = vunpack.c.l.b16 %v357
    %v1391 = vunpack.c.h.b16 %v357
    %v1392 = vunpack.c.l.b16 %v358
    %v1393 = vunpack.c.h.b16 %v358
    %v1394 = vunpack.c.l.b16 %v359
    %v1395 = vunpack.c.h.b16 %v359
    %v1396 = vunpack.c.l.b16 %v360
    %v1397 = vunpack.c.h.b16 %v360
    %v1398 = vunpack.c.l.b16 %v361
    %v1399 = vunpack.c.h.b16 %v361
    %v1400 = vunpack.c.l.b16 %v362
    %v1401 = vunpack.c.h.b16 %v362
    %v1402 = vunpack.c.l.b16 %v363
    %v1403 = vunpack.c.h.b16 %v363
    %v1404 = vunpack.c.l.b16 %v364
    %v1405 = vunpack.c.h.b16 %v364
    %v1406 = vunpack.c.l.b16 %v365
    %v1407 = vunpack.c.h.b16 %v365
    %v1408 = vunpack.c.l.b16 %v366
    %v1409 = vunpack.c.h.b16 %v366
    %v1410 = vunpack.c.l.b16 %v367
    %v1411 = vunpack.c.h.b16 %v367
    %v1412 = vunpack.c.l.b16 %v368
    %v1413 = vunpack.c.h.b16 %v368
    %v1414 = vunpack.c.l.b16 %v369
    %v1415 = vunpack.c.h.b16 %v369
    %v1416 = vunpack.c.l.b16 %v370
    %v1417 = vunpack.c.h.b16 %v370
    %v1418 = vunpack.c.l.b16 %v371
    %v1419 = vunpack.c.h.b16 %v371
    %v1420 = vunpack.c.l.b16 %v372
    %v1421 = vunpack.c.h.b16 %v372
    %v1422 = vunpack.c.l.b16 %v373
    %v1423 = vunpack.c.h.b16 %v373
    %v1424 = vunpack.c.l.b16 %v374
    %v1425 = vunpack.c.h.b16 %v374
    %v1426 = vunpack.c.l.b16 %v375
    %v1427 = vunpack.c.h.b16 %v375
    %v1428 = vunpack.c.l.b16 %v376
    %v1429 = vunpack.c.h.b16 %v376
    %v1430 = vunpack.c.l.b16 %v377
    %v1431 = vunpack.c.h.b16 %v377
    %v1432 = vunpack.c.l.b16 %v378
    %v1433 = vunpack.c.h.b16 %v378
    %v1434 = vunpack.c.l.b16 %v379
    %v1435 = vunpack.c.h.b16 %v379
    %v1436 = vunpack.c.l.b16 %v380
    %v1437 = vunpack.c.h.b16 %v380
    %v1438 = vunpack.c.l.b16 %v381
    %v1439 = vunpack.c.h.b16 %v381
    %v1440 = vunpack.c.l.b16 %v382
    %v1441 = vunpack.c.h.b16 %v382
    %v1442 = vunpack.c.l.b16 %v383
    %v1443 = vunpack.c.h.b16 %v383
    %v1444 = vunpack.c.l.b16 %v384
    %v1445 = vunpack.c.h.b16 %v384
    %v1446 = vunpack.c.l.b16 %v385
    %v1447 = vunpack.c.h.b16 %v385
    %v1448 = vunpack.c.l.b16 %v386
    %v1449 = vunpack.c.h.b16 %v386
    %v1450 = vunpack.c.l.b16 %v387
    %v1451 = vunpack.c.h.b16 %v387
    %v1452 = vunpack.c.l.b16 %v388
    %v1453 = vunpack.c.h.b16 %v388
    %v1454 = vunpack.c.l.b16 %v389
    %v1455 = vunpack.c.h.b16 %v389
    %v1456 = vunpack.c.l.b16 %v390
    %v1457 = vunpack.c.h.b16 %v390
    %v1458 = vunpack.c.l.b16 %v391
    %v1459 = vunpack.c.h.b16 %v391
    %v1460 = vunpack.c.l.b16 %v392
    %v1461 = vunpack.c.h.b16 %v392
    %v1462 = vunpack.c.l.b16 %v393
    %v1463 = vunpack.c.h.b16 %v393
    %v1464 = vunpack.c.l.b16 %v394
    %v1465 = vunpack.c.h.b16 %v394
    %v1466 = vunpack.c.l.b16 %v395
    %v1467 = vunpack.c.h.b16 %v395
    %v1468 = vunpack.c.l.b16 %v396
    %v1469 = vunpack.c.h.b16 %v396
    %v1470 = vunpack.c.l.b16 %v397
    %v1471 = vunpack.c.h.b16 %v397
    %v1472 = vunpack.c.l.b16 %v398
    %v1473 = vunpack.c.h.b16 %v398
    %v1474 = vunpack.c.l.b16 %v399
    %v1475 = vunpack.c.h.b16 %v399
    %v1476 = vunpack.c.l.b16 %v400
    %v1477 = vunpack.c.h.b16 %v400
    %v1478 = vunpack.c.l.b16 %v401
    %v1479 = vunpack.c.h.b16 %v401
    %v1480 = vunpack.c.l.b16 %v402
    %v1481 = vunpack.c.h.b16 %v402
    %v1482 = vunpack.c.l.b16 %v403
    %v1483 = vunpack.c.h.b16 %v403
    %v1484 = vunpack.c.l.b16 %v404
    %v1485 = vunpack.c.h.b16 %v404
    %v1486 = vunpack.c.l.b16 %v405
    %v1487 = vunpack.c.h.b16 %v405
    %v1488 = vunpack.c.l.b16 %v406
    %v1489 = vunpack.c.h.b16 %v406
    %v1490 = vunpack.c.l.b16 %v407
    %v1491 = vunpack.c.h.b16 %v407
    %v1492 = vunpack.c.l.b16 %v408
    %v1493 = vunpack.c.h.b16 %v408
    %v1494 = vunpack.c.l.b16 %v409
    %v1495 = vunpack.c.h.b16 %v409
    %v1496 = vunpack.c.l.b16 %v410
    %v1497 = vunpack.c.h.b16 %v410
    %v1498 = vunpack.c.l.b16 %v411
    %v1499 = vunpack.c.h.b16 %v411
    %v1500 = vunpack.c.l.b16 %v412
    %v1501 = vunpack.c.h.b16 %v412
    %v1502 = vunpack.c.l.b16 %v413
    %v1503 = vunpack.c.h.b16 %v413
    %v1504 = vunpack.c.l.b16 %v414
    %v1505 = vunpack.c.h.b16 %v414
    %v1506 = vunpack.c.l.b16 %v415
    %v1507 = vunpack.c.h.b16 %v415
    %v1508 = vunpack.c.l.b16 %v416
    %v1509 = vunpack.c.h.b16 %v416
    %v1510 = vunpack.c.l.b16 %v417
    %v1511 = vunpack.c.h.b16 %v417
    %v1512 = vunpack.c.l.b16 %v418
    %v1513 = vunpack.c.h.b16 %v418
    %v1514 = vunpack.c.l.b16 %v419
    %v1515 = vunpack.c.h.b16 %v419
    %v1516 = vunpack.c.l.b16 %v420
    %v1517 = vunpack.c.h.b16 %v420
    %v1518 = vunpack.c.l.b16 %v421
    %v1519 = vunpack.c.h.b16 %v421
    %v1520 = vunpack.c.l.b16 %v422
    %v1521 = vunpack.c.h.b16 %v422
    %v1522 = vunpack.c.l.b16 %v423
    %v1523 = vunpack.c.h.b16 %v423
    %v1524 = vunpack.c.l.b16 %v424
    %v1525 = vunpack.c.h.b16 %v424
    %v1526 = vunpack.c.l.b16 %v425
    %v1527 = vunpack.c.h.b16 %v425
    %v1528 = vunpack.c.l.b16 %v426
    %v1529 = vunpack.c.h.b16 %v426
    %v1530 = vunpack.c.l.b16 %v427
    %v1531 = vunpack.c.h.b16 %v427
    %v1532 = vunpack.c.l.b16 %v428
    %v1533 = vunpack.c.h.b16 %v428
    %v1534 = vunpack.c.l.b16 %v429
    %v1535 = vunpack.c.h.b16 %v429
    %v1536 = vunpack.c.l.b16 %v430
    %v1537 = vunpack.c.h.b16 %v430
    %v1538 = vunpack.c.l.b16 %v431
    %v1539 = vunpack.c.h.b16 %v431
    %v1540 = vunpack.c.l.b16 %v432
    %v1541 = vunpack.c.h.b16 %v432
    %v1542 = vunpack.c.l.b16 %v433
    %v1543 = vunpack.c.h.b16 %v433
    %v1544 = vunpack.c.l.b16 %v434
    %v1545 = vunpack.c.h.b16 %v434
    %v1546 = vunpack.c.l.b16 %v435
    %v1547 = vunpack.c.h.b16 %v435
    %v1548 = vunpack.c.l.b16 %v436
    %v1549 = vunpack.c.h.b16 %v436
    %v1550 = vunpack.c.l.b16 %v437
    %v1551 = vunpack.c.h.b16 %v437
    %v1552 = vunpack.c.l.b16 %v438
    %v1553 = vunpack.c.h.b16 %v438
    %v1554 = vunpack.c.l.b16 %v439
    %v1555 = vunpack.c.h.b16 %v439
    %v1556 = vunpack.c.l.b16 %v440
    %v1557 = vunpack.c.h.b16 %v440
    %v1558 = vunpack.c.l.b16 %v441
    %v1559 = vunpack.c.h.b16 %v441
    %v1560 = vunpack.c.l.b16 %v442
    %v1561 = vunpack.c.h.b16 %v442
    %v1562 = vunpack.c.l.b16 %v443
    %v1563 = vunpack.c.h.b16 %v443
    %v1564 = vunpack.c.l.b16 %v444
    %v1565 = vunpack.c.h.b16 %v444
    %v1566 = vunpack.c.l.b16 %v445
    %v1567 = vunpack.c.h.b16 %v445
    %v1568 = vunpack.c.l.b16 %v446
    %v1569 = vunpack.c.h.b16 %v446
    %v1570 = vunpack.c.l.b16 %v447
    %v1571 = vunpack.c.h.b16 %v447
    %v1572 = vunpack.c.l.b16 %v448
    %v1573 = vunpack.c.h.b16 %v448
    %v1574 = vunpack.c.l.b16 %v449
    %v1575 = vunpack.c.h.b16 %v449
    %v1576 = vunpack.c.l.b16 %v450
    %v1577 = vunpack.c.h.b16 %v450
    %v1578 = vunpack.c.l.b16 %v451
    %v1579 = vunpack.c.h.b16 %v451
    %v1580 = vunpack.c.l.b16 %v452
    %v1581 = vunpack.c.h.b16 %v452
    %v1582 = vunpack.c.l.b16 %v453
    %v1583 = vunpack.c.h.b16 %v453
    %v1584 = vunpack.c.l.b16 %v454
    %v1585 = vunpack.c.h.b16 %v454
    %v1586 = vunpack.c.l.b16 %v455
    %v1587 = vunpack.c.h.b16 %v455
    %v1588 = vunpack.c.l.b16 %v456
    %v1589 = vunpack.c.h.b16 %v456
    %v1590 = vunpack.c.l.b16 %v457
    %v1591 = vunpack.c.h.b16 %v457
    %v1592 = vunpack.c.l.b16 %v458
    %v1593 = vunpack.c.h.b16 %v458
    %v1594 = vunpack.c.l.b16 %v459
    %v1595 = vunpack.c.h.b16 %v459
    %v1596 = vunpack.c.l.b16 %v460
    %v1597 = vunpack.c.h.b16 %v460
    %v1598 = vunpack.c.l.b16 %v461
    %v1599 = vunpack.c.h.b16 %v461
    %v1600 = vunpack.c.l.b16 %v462
    %v1601 = vunpack.c.h.b16 %v462
    %v1602 = vunpack.c.l.b16 %v463
    %v1603 = vunpack.c.h.b16 %v463
    %v1604 = vunpack.c.l.b16 %v464
    %v1605 = vunpack.c.h.b16 %v464
    %v1606 = vunpack.c.l.b16 %v465
    %v1607 = vunpack.c.h.b16 %v465
    %v1608 = vunpack.c.l.b16 %v466
    %v1609 = vunpack.c.h.b16 %v466
    %v1610 = vunpack.c.l.b16 %v467
    %v1611 = vunpack.c.h.b16 %v467
    %v1612 = vunpack.c.l.b16 %v468
    %v1613 = vunpack.c.h.b16 %v468
    %v1614 = vunpack.c.l.b16 %v469
    %v1615 = vunpack.c.h.b16 %v469
    %v1616 = vunpack.c.l.b16 %v470
    %v1617 = vunpack.c.h.b16 %v470
    %v1618 = vunpack.c.l.b16 %v471
    %v1619 = vunpack.c.h.b16 %v471
    %v1620 = vunpack.c.l.b16 %v472
    %v1621 = vunpack.c.h.b16 %v472
    %v1622 = vunpack.c.l.b16 %v473
    %v1623 = vunpack.c.h.b16 %v473
    %v1624 = vunpack.c.l.b16 %v474
    %v1625 = vunpack.c.h.b16 %v474
    %v1626 = vunpack.c.l.b16 %v475
    %v1627 = vunpack.c.h.b16 %v475
    %v1628 = vunpack.c.l.b16 %v476
    %v1629 = vunpack.c.h.b16 %v476
    %v1630 = vunpack.c.l.b16 %v477
    %v1631 = vunpack.c.h.b16 %v477
    %v1632 = vunpack.c.l.b16 %v478
    %v1633 = vunpack.c.h.b16 %v478
    %v1634 = vunpack.c.l.b16 %v479
    %v1635 = vunpack.c.h.b16 %v479
    %v1636 = vunpack.c.l.b16 %v480
    %v1637 = vunpack.c.h.b16 %v480
    %v1638 = vunpack.c.l.b16 %v481
    %v1639 = vunpack.c.h.b16 %v481
    %v1640 = vunpack.c.l.b16 %v482
    %v1641 = vunpack.c.h.b16 %v482
    %v1642 = vunpack.c.l.b16 %v483
    %v1643 = vunpack.c.h.b16 %v483
    %v1644 = vunpack.c.l.b16 %v484
    %v1645 = vunpack.c.h.b16 %v484
    %v1646 = vunpack.c.l.b16 %v485
    %v1647 = vunpack.c.h.b16 %v485
    %v1648 = vunpack.c.l.b16 %v486
    %v1649 = vunpack.c.h.b16 %v486
    %v1650 = vunpack.c.l.b16 %v487
    %v1651 = vunpack.c.h.b16 %v487
    %v1652 = vunpack.c.l.b16 %v488
    %v1653 = vunpack.c.h.b16 %v488
    %v1654 = vunpack.c.l.b16 %v489
    %v1655 = vunpack.c.h.b16 %v489
    %v1656 = vunpack.c.l.b16 %v490
    %v1657 = vunpack.c.h.b16 %v490
    %v1658 = vunpack.c.l.b16 %v491
    %v1659 = vunpack.c.h.b16 %v491
    %v1660 = vunpack.c.l.b16 %v492
    %v1661 = vunpack.c.h.b16 %v492
    %v1662 = vunpack.c.l.b16 %v493
    %v1663 = vunpack.c.h.b16 %v493
    %v1664 = vunpack.c.l.b16 %v494
    %v1665 = vunpack.c.h.b16 %v494
    %v1666 = vunpack.c.l.b16 %v495
    %v1667 = vunpack.c.h.b16 %v495
    %v1668 = vunpack.c.l.b16 %v496
    %v1669 = vunpack.c.h.b16 %v496
    %v1670 = vpack.c.b16 %v910, %v902
    %v1671 = vpack.c.b16 %v911, %v903
    %v1672 = vpack.c.b16 %v912, %v904
    %v1673 = vpack.c.b16 %v913, %v905
    %v1674 = vpack.c.b16 %v914, %v906
    %v1675 = vpack.c.b16 %v915, %v907
    %v1676 = vpack.c.b16 %v916, %v908
    %v1677 = vpack.c.b16 %v917, %v909
    %v1678 = vpack.c.b16 %v926, %v918
    %v1679 = vpack.c.b16 %v927, %v919
    %v1680 = vpack.c.b16 %v928, %v920
    %v1681 = vpack.c.b16 %v929, %v921
    %v1682 = vpack.c.b16 %v930, %v922
    %v1683 = vpack.c.b16 %v931, %v923
    %v1684 = vpack.c.b16 %v932, %v924
    %v1685 = vpack.c.b16 %v933, %v925
    %v1686 = vpack.c.b16 %v942, %v934
    %v1687 = vpack.c.b16 %v943, %v935
    %v1688 = vpack.c.b16 %v944, %v936
    %v1689 = vpack.c.b16 %v945, %v937
    %v1690 = vpack.c.b16 %v946, %v938
    %v1691 = vpack.c.b16 %v947, %v939
    %v1692 = vpack.c.b16 %v948, %v940
    %v1693 = vpack.c.b16 %v949, %v941
    %v1694 = vpack.c.b16 %v958, %v950
    %v1695 = vpack.c.b16 %v959, %v951
    %v1696 = vpack.c.b16 %v960, %v952
    %v1697 = vpack.c.b16 %v961, %v953
    %v1698 = vpack.c.b16 %v962, %v954
    %v1699 = vpack.c.b16 %v963, %v955
    %v1700 = vpack.c.b16 %v964, %v956
    %v1701 = vpack.c.b16 %v965, %v957
    %v1702 = vpack.c.b16 %v974, %v966
    %v1703 = vpack.c.b16 %v975, %v967
    %v1704 = vpack.c.b16 %v976, %v968
    %v1705 = vpack.c.b16 %v977, %v969
    %v1706 = vpack.c.b16 %v978, %v970
    %v1707 = vpack.c.b16 %v979, %v971
    %v1708 = vpack.c.b16 %v980, %v972
    %v1709 = vpack.c.b16 %v981, %v973
    %v1710 = vpack.c.b16 %v990, %v982
    %v1711 = vpack.c.b16 %v991, %v983
    %v1712 = vpack.c.b16 %v992, %v984
    %v1713 = vpack.c.b16 %v993, %v985
    %v1714 = vpack.c.b16 %v994, %v986
    %v1715 = vpack.c.b16 %v995, %v987
    %v1716 = vpack.c.b16 %v996, %v988
    %v1717 = vpack.c.b16 %v997, %v989
    %v1718 = vpack.c.b16 %v1006, %v998
    %v1719 = vpack.c.b16 %v1007, %v999
    %v1720 = vpack.c.b16 %v1008, %v1000
    %v1721 = vpack.c.b16 %v1009, %v1001
    %v1722 = vpack.c.b16 %v1010, %v1002
    %v1723 = vpack.c.b16 %v1011, %v1003
    %v1724 = vpack.c.b16 %v1012, %v1004
    %v1725 = vpack.c.b16 %v1013, %v1005
    %v1726 = vpack.c.b16 %v1022, %v1014
    %v1727 = vpack.c.b16 %v1023, %v1015
    %v1728 = vpack.c.b16 %v1024, %v1016
    %v1729 = vpack.c.b16 %v1025, %v1017
    %v1730 = vpack.c.b16 %v1026, %v1018
    %v1731 = vpack.c.b16 %v1027, %v1019
    %v1732 = vpack.c.b16 %v1028, %v1020
    %v1733 = vpack.c.b16 %v1029, %v1021
    %v1734 = vpack.c.b16 %v1038, %v1030
    %v1735 = vpack.c.b16 %v1039, %v1031
    %v1736 = vpack.c.b16 %v1040, %v1032
    %v1737 = vpack.c.b16 %v1041, %v1033
    %v1738 = vpack.c.b16 %v1042, %v1034
    %v1739 = vpack.c.b16 %v1043, %v1035
    %v1740 = vpack.c.b16 %v1044, %v1036
    %v1741 = vpack.c.b16 %v1045, %v1037
    %v1742 = vpack.c.b16 %v1054, %v1046
    %v1743 = vpack.c.b16 %v1055, %v1047
    %v1744 = vpack.c.b16 %v1056, %v1048
    %v1745 = vpack.c.b16 %v1057, %v1049
    %v1746 = vpack.c.b16 %v1058, %v1050
    %v1747 = vpack.c.b16 %v1059, %v1051
    %v1748 = vpack.c.b16 %v1060, %v1052
    %v1749 = vpack.c.b16 %v1061, %v1053
    %v1750 = vpack.c.b16 %v1070, %v1062
    %v1751 = vpack.c.b16 %v1071, %v1063
    %v1752 = vpack.c.b16 %v1072, %v1064
    %v1753 = vpack.c.b16 %v1073, %v1065
    %v1754 = vpack.c.b16 %v1074, %v1066
    %v1755 = vpack.c.b16 %v1075, %v1067
    %v1756 = vpack.c.b16 %v1076, %v1068
    %v1757 = vpack.c.b16 %v1077, %v1069
    %v1758 = vpack.c.b16 %v1086, %v1078
    %v1759 = vpack.c.b16 %v1087, %v1079
    %v1760 = vpack.c.b16 %v1088, %v1080
    %v1761 = vpack.c.b16 %v1089, %v1081
    %v1762 = vpack.c.b16 %v1090, %v1082
    %v1763 = vpack.c.b16 %v1091, %v1083
    %v1764 = vpack.c.b16 %v1092, %v1084
    %v1765 = vpack.c.b16 %v1093, %v1085
    %v1766 = vpack.c.b16 %v1102, %v1094
    %v1767 = vpack.c.b16 %v1103, %v1095
    %v1768 = vpack.c.b16 %v1104, %v1096
    %v1769 = vpack.c.b16 %v1105, %v1097
    %v1770 = vpack.c.b16 %v1106, %v1098
    %v1771 = vpack.c.b16 %v1107, %v1099
    %v1772 = vpack.c.b16 %v1108, %v1100
    %v1773 = vpack.c.b16 %v1109, %v1101
    %v1774 = vpack.c.b16 %v1118, %v1110
    %v1775 = vpack.c.b16 %v1119, %v1111
    %v1776 = vpack.c.b16 %v1120, %v1112
    %v1777 = vpack.c.b16 %v1121, %v1113
    %v1778 = vpack.c.b16 %v1122, %v1114
    %v1779 = vpack.c.b16 %v1123, %v1115
    %v1780 = vpack.c.b16 %v1124, %v1116
    %v1781 = vpack.c.b16 %v1125, %v1117
    %v1782 = vpack.c.b16 %v1134, %v1126
    %v1783 = vpack.c.b16 %v1135, %v1127
    %v1784 = vpack.c.b16 %v1136, %v1128
    %v1785 = vpack.c.b16 %v1137, %v1129
    %v1786 = vpack.c.b16 %v1138, %v1130
    %v1787 = vpack.c.b16 %v1139, %v1131
    %v1788 = vpack.c.b16 %v1140, %v1132
    %v1789 = vpack.c.b16 %v1141, %v1133
    %v1790 = vpack.c.b16 %v1150, %v1142
    %v1791 = vpack.c.b16 %v1151, %v1143
    %v1792 = vpack.c.b16 %v1152, %v1144
    %v1793 = vpack.c.b16 %v1153, %v1145
    %v1794 = vpack.c.b16 %v1154, %v1146
    %v1795 = vpack.c.b16 %v1155, %v1147
    %v1796 = vpack.c.b16 %v1156, %v1148
    %v1797 = vpack.c.b16 %v1157, %v1149
    %v1798 = vpack.c.b16 %v1166, %v1158
    %v1799 = vpack.c.b16 %v1167, %v1159
    %v1800 = vpack.c.b16 %v1168, %v1160
    %v1801 = vpack.c.b16 %v1169, %v1161
    %v1802 = vpack.c.b16 %v1170, %v1162
    %v1803 = vpack.c.b16 %v1171, %v1163
    %v1804 = vpack.c.b16 %v1172, %v1164
    %v1805 = vpack.c.b16 %v1173, %v1165
    %v1806 = vpack.c.b16 %v1182, %v1174
    %v1807 = vpack.c.b16 %v1183, %v1175
    %v1808 = vpack.c.b16 %v1184, %v1176
    %v1809 = vpack.c.b16 %v1185, %v1177
    %v1810 = vpack.c.b16 %v1186, %v1178
    %v1811 = vpack.c.b16 %v1187, %v1179
    %v1812 = vpack.c.b16 %v1188, %v1180
    %v1813 = vpack.c.b16 %v1189, %v1181
    %v1814 = vpack.c.b16 %v1198, %v1190
    %v1815 = vpack.c.b16 %v1199, %v1191
    %v1816 = vpack.c.b16 %v1200, %v1192
    %v1817 = vpack.c.b16 %v1201, %v1193
    %v1818 = vpack.c.b16 %v1202, %v1194
    %v1819 = vpack.c.b16 %v1203, %v1195
    %v1820 = vpack.c.b16 %v1204, %v1196
    %v1821 = vpack.c.b16 %v1205, %v1197
    %v1822 = vpack.c.b16 %v1214, %v1206
    %v1823 = vpack.c.b16 %v1215, %v1207
    %v1824 = vpack.c.b16 %v1216, %v1208
    %v1825 = vpack.c.b16 %v1217, %v1209
    %v1826 = vpack.c.b16 %v1218, %v1210
    %v1827 = vpack.c.b16 %v1219, %v1211
    %v1828 = vpack.c.b16 %v1220, %v1212
    %v1829 = vpack.c.b16 %v1221, %v1213
    %v1830 = vpack.c.b16 %v1230, %v1222
    %v1831 = vpack.c.b16 %v1231, %v1223
    %v1832 = vpack.c.b16 %v1232, %v1224
    %v1833 = vpack.c.b16 %v1233, %v1225
    %v1834 = vpack.c.b16 %v1234, %v1226
    %v1835 = vpack.c.b16 %v1235, %v1227
    %v1836 = vpack.c.b16 %v1236, %v1228
    %v1837 = vpack.c.b16 %v1237, %v1229
    %v1838 = vpack.c.b16 %v1246, %v1238
    %v1839 = vpack.c.b16 %v1247, %v1239
    %v1840 = vpack.c.b16 %v1248, %v1240
    %v1841 = vpack.c.b16 %v1249, %v1241
    %v1842 = vpack.c.b16 %v1250, %v1242
    %v1843 = vpack.c.b16 %v1251, %v1243
    %v1844 = vpack.c.b16 %v1252, %v1244
    %v1845 = vpack.c.b16 %v1253, %v1245
    %v1846 = vpack.c.b16 %v1262, %v1254
    %v1847 = vpack.c.b16 %v1263, %v1255
    %v1848 = vpack.c.b16 %v1264, %v1256
    %v1849 = vpack.c.b16 %v1265, %v1257
    %v1850 = vpack.c.b16 %v1266, %v1258
    %v1851 = vpack.c.b16 %v1267, %v1259
    %v1852 = vpack.c.b16 %v1268, %v1260
    %v1853 = vpack.c.b16 %v1269, %v1261
    %v1854 = vpack.c.b16 %v1278, %v1270
    %v1855 = vpack.c.b16 %v1279, %v1271
    %v1856 = vpack.c.b16 %v1280, %v1272
    %v1857 = vpack.c.b16 %v1281, %v1273
    %v1858 = vpack.c.b16 %v1282, %v1274
    %v1859 = vpack.c.b16 %v1283, %v1275
    %v1860 = vpack.c.b16 %v1284, %v1276
    %v1861 = vpack.c.b16 %v1285, %v1277
    %v1862 = vpack.c.b16 %v1294, %v1286
    %v1863 = vpack.c.b16 %v1295, %v1287
    %v1864 = vpack.c.b16 %v1296, %v1288
    %v1865 = vpack.c.b16 %v1297, %v1289
    %v1866 = vpack.c.b16 %v1298, %v1290
    %v1867 = vpack.c.b16 %v1299, %v1291
    %v1868 = vpack.c.b16 %v1300, %v1292
    %v1869 = vpack.c.b16 %v1301, %v1293
    %v1870 = vpack.c.b16 %v1310, %v1302
    %v1871 = vpack.c.b16 %v1311, %v1303
    %v1872 = vpack.c.b16 %v1312, %v1304
    %v1873 = vpack.c.b16 %v1313, %v1305
    %v1874 = vpack.c.b16 %v1314, %v1306
    %v1875 = vpack.c.b16 %v1315, %v1307
    %v1876 = vpack.c.b16 %v1316, %v1308
    %v1877 = vpack.c.b16 %v1317, %v1309
    %v1878 = vpack.c.b16 %v1326, %v1318
    %v1879 = vpack.c.b16 %v1327, %v1319
    %v1880 = vpack.c.b16 %v1328, %v1320
    %v1881 = vpack.c.b16 %v1329, %v1321
    %v1882 = vpack.c.b16 %v1330, %v1322
    %v1883 = vpack.c.b16 %v1331, %v1323
    %v1884 = vpack.c.b16 %v1332, %v1324
    %v1885 = vpack.c.b16 %v1333, %v1325
    %v1886 = vpack.c.b16 %v1342, %v1334
    %v1887 = vpack.c.b16 %v1343, %v1335
    %v1888 = vpack.c.b16 %v1344, %v1336
    %v1889 = vpack.c.b16 %v1345, %v1337
    %v1890 = vpack.c.b16 %v1346, %v1338
    %v1891 = vpack.c.b16 %v1347, %v1339
    %v1892 = vpack.c.b16 %v1348, %v1340
    %v1893 = vpack.c.b16 %v1349, %v1341
    %v1894 = vpack.c.b16 %v1358, %v1350
    %v1895 = vpack.c.b16 %v1359, %v1351
    %v1896 = vpack.c.b16 %v1360, %v1352
    %v1897 = vpack.c.b16 %v1361, %v1353
    %v1898 = vpack.c.b16 %v1362, %v1354
    %v1899 = vpack.c.b16 %v1363, %v1355
    %v1900 = vpack.c.b16 %v1364, %v1356
    %v1901 = vpack.c.b16 %v1365, %v1357
    %v1902 = vpack.c.b16 %v1374, %v1366
    %v1903 = vpack.c.b16 %v1375, %v1367
    %v1904 = vpack.c.b16 %v1376, %v1368
    %v1905 = vpack.c.b16 %v1377, %v1369
    %v1906 = vpack.c.b16 %v1378, %v1370
    %v1907 = vpack.c.b16 %v1379, %v1371
    %v1908 = vpack.c.b16 %v1380, %v1372
    %v1909 = vpack.c.b16 %v1381, %v1373
    %v1910 = vpack.c.b16 %v1390, %v1382
    %v1911 = vpack.c.b16 %v1391, %v1383
    %v1912 = vpack.c.b16 %v1392, %v1384
    %v1913 = vpack.c.b16 %v1393, %v1385
    %v1914 = vpack.c.b16 %v1394, %v1386
    %v1915 = vpack.c.b16 %v1395, %v1387
    %v1916 = vpack.c.b16 %v1396, %v1388
    %v1917 = vpack.c.b16 %v1397, %v1389
    %v1918 = vpack.c.b16 %v1406, %v1398
    %v1919 = vpack.c.b16 %v1407, %v1399
    %v1920 = vpack.c.b16 %v1408, %v1400
    %v1921 = vpack.c.b16 %v1409, %v1401
    %v1922 = vpack.c.b16 %v1410, %v1402
    %v1923 = vpack.c.b16 %v1411, %v1403
    %v1924 = vpack.c.b16 %v1412, %v1404
    %v1925 = vpack.c.b16 %v1413, %v1405
    %v1926 = vpack.c.b16 %v1422, %v1414
    %v1927 = vpack.c.b16 %v1423, %v1415
    %v1928 = vpack.c.b16 %v1424, %v1416
    %v1929 = vpack.c.b16 %v1425, %v1417
    %v1930 = vpack.c.b16 %v1426, %v1418
    %v1931 = vpack.c.b16 %v1427, %v1419
    %v1932 = vpack.c.b16 %v1428, %v1420
    %v1933 = vpack.c.b16 %v1429, %v1421
    %v1934 = vpack.c.b16 %v1438, %v1430
    %v1935 = vpack.c.b16 %v1439, %v1431
    %v1936 = vpack.c.b16 %v1440, %v1432
    %v1937 = vpack.c.b16 %v1441, %v1433
    %v1938 = vpack.c.b16 %v1442, %v1434
    %v1939 = vpack.c.b16 %v1443, %v1435
    %v1940 = vpack.c.b16 %v1444, %v1436
    %v1941 = vpack.c.b16 %v1445, %v1437
    %v1942 = vpack.c.b16 %v1454, %v1446
    %v1943 = vpack.c.b16 %v1455, %v1447
    %v1944 = vpack.c.b16 %v1456, %v1448
    %v1945 = vpack.c.b16 %v1457, %v1449
    %v1946 = vpack.c.b16 %v1458, %v1450
    %v1947 = vpack.c.b16 %v1459, %v1451
    %v1948 = vpack.c.b16 %v1460, %v1452
    %v1949 = vpack.c.b16 %v1461, %v1453
    %v1950 = vpack.c.b16 %v1470, %v1462
    %v1951 = vpack.c.b16 %v1471, %v1463
    %v1952 = vpack.c.b16 %v1472, %v1464
    %v1953 = vpack.c.b16 %v1473, %v1465
    %v1954 = vpack.c.b16 %v1474, %v1466
    %v1955 = vpack.c.b16 %v1475, %v1467
    %v1956 = vpack.c.b16 %v1476, %v1468
    %v1957 = vpack.c.b16 %v1477, %v1469
    %v1958 = vpack.c.b16 %v1486, %v1478
    %v1959 = vpack.c.b16 %v1487, %v1479
    %v1960 = vpack.c.b16 %v1488, %v1480
    %v1961 = vpack.c.b16 %v1489, %v1481
    %v1962 = vpack.c.b16 %v1490, %v1482
    %v1963 = vpack.c.b16 %v1491, %v1483
    %v1964 = vpack.c.b16 %v1492, %v1484
    %v1965 = vpack.c.b16 %v1493, %v1485
    %v1966 = vpack.c.b16 %v1502, %v1494
    %v1967 = vpack.c.b16 %v1503, %v1495
    %v1968 = vpack.c.b16 %v1504, %v1496
    %v1969 = vpack.c.b16 %v1505, %v1497
    %v1970 = vpack.c.b16 %v1506, %v1498
    %v1971 = vpack.c.b16 %v1507, %v1499
    %v1972 = vpack.c.b16 %v1508, %v1500
    %v1973 = vpack.c.b16 %v1509, %v1501
    %v1974 = vpack.c.b16 %v1518, %v1510
    %v1975 = vpack.c.b16 %v1519, %v1511
    %v1976 = vpack.c.b16 %v1520, %v1512
    %v1977 = vpack.c.b16 %v1521, %v1513
    %v1978 = vpack.c.b16 %v1522, %v1514
    %v1979 = vpack.c.b16 %v1523, %v1515
    %v1980 = vpack.c.b16 %v1524, %v1516
    %v1981 = vpack.c.b16 %v1525, %v1517
    %v1982 = vpack.c.b16 %v1534, %v1526
    %v1983 = vpack.c.b16 %v1535, %v1527
    %v1984 = vpack.c.b16 %v1536, %v1528
    %v1985 = vpack.c.b16 %v1537, %v1529
    %v1986 = vpack.c.b16 %v1538, %v1530
    %v1987 = vpack.c.b16 %v1539, %v1531
    %v1988 = vpack.c.b16 %v1540, %v1532
    %v1989 = vpack.c.b16 %v1541, %v1533
    %v1990 = vpack.c.b16 %v1550, %v1542
    %v1991 = vpack.c.b16 %v1551, %v1543
    %v1992 = vpack.c.b16 %v1552, %v1544
    %v1993 = vpack.c.b16 %v1553, %v1545
    %v1994 = vpack.c.b16 %v1554, %v1546
    %v1995 = vpack.c.b16 %v1555, %v1547
    %v1996 = vpack.c.b16 %v1556, %v1548
    %v1997 = vpack.c.b16 %v1557, %v1549
    %v1998 = vpack.c.b16 %v1566, %v1558
    %v1999 = vpack.c.b16 %v1567, %v1559
    %v2000 = vpack.c.b16 %v1568, %v1560
    %v2001 = vpack.c.b16 %v1569, %v1561
    %v2002 = vpack.c.b16 %v1570, %v1562
    %v2003 = vpack.c.b16 %v1571, %v1563
    %v2004 = vpack.c.b16 %v1572, %v1564
    %v2005 = vpack.c.b16 %v1573, %v1565
    %v2006 = vpack.c.b16 %v1582, %v1574
    %v2007 = vpack.c.b16 %v1583, %v1575
    %v2008 = vpack.c.b16 %v1584, %v1576
    %v2009 = vpack.c.b16 %v1585, %v1577
    %v2010 = vpack.c.b16 %v1586, %v1578
    %v2011 = vpack.c.b16 %v1587, %v1579
    %v2012 = vpack.c.b16 %v1588, %v1580
    %v2013 = vpack.c.b16 %v1589, %v1581
    %v2014 = vpack.c.b16 %v1598, %v1590
    %v2015 = vpack.c.b16 %v1599, %v1591
    %v2016 = vpack.c.b16 %v1600, %v1592
    %v2017 = vpack.c.b16 %v1601, %v1593
    %v2018 = vpack.c.b16 %v1602, %v1594
    %v2019 = vpack.c.b16 %v1603, %v1595
    %v2020 = vpack.c.b16 %v1604, %v1596
    %v2021 = vpack.c.b16 %v1605, %v1597
    %v2022 = vpack.c.b16 %v1614, %v1606
    %v2023 = vpack.c.b16 %v1615, %v1607
    %v2024 = vpack.c.b16 %v1616, %v1608
    %v2025 = vpack.c.b16 %v1617, %v1609
    %v2026 = vpack.c.b16 %v1618, %v1610
    %v2027 = vpack.c.b16 %v1619, %v1611
    %v2028 = vpack.c.b16 %v1620, %v1612
    %v2029 = vpack.c.b16 %v1621, %v1613
    %v2030 = vpack.c.b16 %v1630, %v1622
    %v2031 = vpack.c.b16 %v1631, %v1623
    %v2032 = vpack.c.b16 %v1632, %v1624
    %v2033 = vpack.c.b16 %v1633, %v1625
    %v2034 = vpack.c.b16 %v1634, %v1626
    %v2035 = vpack.c.b16 %v1635, %v1627
    %v2036 = vpack.c.b16 %v1636, %v1628
    %v2037 = vpack.c.b16 %v1637, %v1629
    %v2038 = vpack.c.b16 %v1646, %v1638
    %v2039 = vpack.c.b16 %v1647, %v1639
    %v2040 = vpack.c.b16 %v1648, %v1640
    %v2041 = vpack.c.b16 %v1649, %v1641
    %v2042 = vpack.c.b16 %v1650, %v1642
    %v2043 = vpack.c.b16 %v1651, %v1643
    %v2044 = vpack.c.b16 %v1652, %v1644
    %v2045 = vpack.c.b16 %v1653, %v1645
    %v2046 = vpack.c.b16 %v1662, %v1654
    %v2047 = vpack.c.b16 %v1663, %v1655
    %v2048 = vpack.c.b16 %v1664, %v1656
    %v2049 = vpack.c.b16 %v1665, %v1657
    %v2050 = vpack.c.b16 %v1666, %v1658
    %v2051 = vpack.c.b16 %v1667, %v1659
    %v2052 = vpack.c.b16 %v1668, %v1660
    %v2053 = vpack.c.b16 %v1669, %v1661
    %2438 = vmatpush.bf16.msra.mxu0 %v1726
    %2439 = vmatpush.bf16.msra.mxu0 %v1718
    %2440 = vmatpush.bf16.msra.mxu0 %v1710
    %2441 = vmatpush.bf16.msra.mxu0 %v1702
    %2442 = vmatpush.bf16.msra.mxu0 %v1694
    %2443 = vmatpush.bf16.msra.mxu0 %v1686
    %2444 = vmatpush.bf16.msra.mxu0 %v1678
    %2445 = vmatpush.bf16.msra.mxu0 %v1670
    %2446 = vmatmul.bf16.gmra.mxu0 %v506
    %v2447 = vpop.f32.mrf.mxu0
    %v2448 = vadd.f32 0.0, %v2447
    %v2449 = vpop.f32.mrf.mxu0
    %2450 = vdwg.mxu0
    %2451 = vmatpush.bf16.msra.mxu0 %v1790
    %2452 = vmatpush.bf16.msra.mxu0 %v1782
    %2453 = vmatpush.bf16.msra.mxu0 %v1774
    %2454 = vmatpush.bf16.msra.mxu0 %v1766
    %2455 = vmatpush.bf16.msra.mxu0 %v1758
    %2456 = vmatpush.bf16.msra.mxu0 %v1750
    %2457 = vmatpush.bf16.msra.mxu0 %v1742
    %2458 = vmatpush.bf16.msra.mxu0 %v1734
    %2459 = vmatmul.bf16.gmra.mxu0 %v507
    %v2460 = vpop.f32.mrf.mxu0
    %v2461 = vadd.f32 %v2448, %v2460
    %v2462 = vpop.f32.mrf.mxu0
    %2463 = vdwg.mxu0
    %2464 = vmatpush.bf16.msra.mxu0 %v1854
    %2465 = vmatpush.bf16.msra.mxu0 %v1846
    %2466 = vmatpush.bf16.msra.mxu0 %v1838
    %2467 = vmatpush.bf16.msra.mxu0 %v1830
    %2468 = vmatpush.bf16.msra.mxu0 %v1822
    %2469 = vmatpush.bf16.msra.mxu0 %v1814
    %2470 = vmatpush.bf16.msra.mxu0 %v1806
    %2471 = vmatpush.bf16.msra.mxu0 %v1798
    %2472 = vmatmul.bf16.gmra.mxu0 %v508
    %v2473 = vpop.f32.mrf.mxu0
    %v2474 = vadd.f32 %v2461, %v2473
    %v2475 = vpop.f32.mrf.mxu0
    %2476 = vdwg.mxu0
    %2477 = vmatpush.bf16.msra.mxu0 %v1918
    %2478 = vmatpush.bf16.msra.mxu0 %v1910
    %2479 = vmatpush.bf16.msra.mxu0 %v1902
    %2480 = vmatpush.bf16.msra.mxu0 %v1894
    %2481 = vmatpush.bf16.msra.mxu0 %v1886
    %2482 = vmatpush.bf16.msra.mxu0 %v1878
    %2483 = vmatpush.bf16.msra.mxu0 %v1870
    %2484 = vmatpush.bf16.msra.mxu0 %v1862
    %2485 = vmatmul.bf16.gmra.mxu0 %v509
    %v2486 = vpop.f32.mrf.mxu0
    %v2487 = vadd.f32 %v2474, %v2486
    %v2488 = vpop.f32.mrf.mxu0
    %2489 = vdwg.mxu0
    %2490 = vmatpush.bf16.msra.mxu0 %v1982
    %2491 = vmatpush.bf16.msra.mxu0 %v1974
    %2492 = vmatpush.bf16.msra.mxu0 %v1966
    %2493 = vmatpush.bf16.msra.mxu0 %v1958
    %2494 = vmatpush.bf16.msra.mxu0 %v1950
    %2495 = vmatpush.bf16.msra.mxu0 %v1942
    %2496 = vmatpush.bf16.msra.mxu0 %v1934
    %2497 = vmatpush.bf16.msra.mxu0 %v1926
    %2498 = vmatmul.bf16.gmra.mxu0 %v510
    %v2499 = vpop.f32.mrf.mxu0
    %v2500 = vadd.f32 %v2487, %v2499
    %v2501 = vpop.f32.mrf.mxu0
    %2502 = vdwg.mxu0
    %2503 = vmatpush.bf16.msra.mxu0 %v2046
    %2504 = vmatpush.bf16.msra.mxu0 %v2038
    %2505 = vmatpush.bf16.msra.mxu0 %v2030
    %2506 = vmatpush.bf16.msra.mxu0 %v2022
    %2507 = vmatpush.bf16.msra.mxu0 %v2014
    %2508 = vmatpush.bf16.msra.mxu0 %v2006
    %2509 = vmatpush.bf16.msra.mxu0 %v1998
    %2510 = vmatpush.bf16.msra.mxu0 %v1990
    %2511 = vmatmul.bf16.gmra.mxu0 %v511
    %v2512 = vpop.f32.mrf.mxu0
    %v2513 = vadd.f32 %v2500, %v2512
    %v2514 = vpop.f32.mrf.mxu0
    %2515 = vdwg.mxu0
    %2516 = vmatpush.bf16.msra.mxu0 %v1727
    %2517 = vmatpush.bf16.msra.mxu0 %v1719
    %2518 = vmatpush.bf16.msra.mxu0 %v1711
    %2519 = vmatpush.bf16.msra.mxu0 %v1703
    %2520 = vmatpush.bf16.msra.mxu0 %v1695
    %2521 = vmatpush.bf16.msra.mxu0 %v1687
    %2522 = vmatpush.bf16.msra.mxu0 %v1679
    %2523 = vmatpush.bf16.msra.mxu0 %v1671
    %2524 = vmatmul.bf16.gmra.mxu0 %v506
    %v2525 = vpop.f32.mrf.mxu0
    %v2526 = vadd.f32 0.0, %v2525
    %v2527 = vpop.f32.mrf.mxu0
    %2528 = vdwg.mxu0
    %2529 = vmatpush.bf16.msra.mxu0 %v1791
    %2530 = vmatpush.bf16.msra.mxu0 %v1783
    %2531 = vmatpush.bf16.msra.mxu0 %v1775
    %2532 = vmatpush.bf16.msra.mxu0 %v1767
    %2533 = vmatpush.bf16.msra.mxu0 %v1759
    %2534 = vmatpush.bf16.msra.mxu0 %v1751
    %2535 = vmatpush.bf16.msra.mxu0 %v1743
    %2536 = vmatpush.bf16.msra.mxu0 %v1735
    %2537 = vmatmul.bf16.gmra.mxu0 %v507
    %v2538 = vpop.f32.mrf.mxu0
    %v2539 = vadd.f32 %v2526, %v2538
    %v2540 = vpop.f32.mrf.mxu0
    %2541 = vdwg.mxu0
    %2542 = vmatpush.bf16.msra.mxu0 %v1855
    %2543 = vmatpush.bf16.msra.mxu0 %v1847
    %2544 = vmatpush.bf16.msra.mxu0 %v1839
    %2545 = vmatpush.bf16.msra.mxu0 %v1831
    %2546 = vmatpush.bf16.msra.mxu0 %v1823
    %2547 = vmatpush.bf16.msra.mxu0 %v1815
    %2548 = vmatpush.bf16.msra.mxu0 %v1807
    %2549 = vmatpush.bf16.msra.mxu0 %v1799
    %2550 = vmatmul.bf16.gmra.mxu0 %v508
    %v2551 = vpop.f32.mrf.mxu0
    %v2552 = vadd.f32 %v2539, %v2551
    %v2553 = vpop.f32.mrf.mxu0
    %2554 = vdwg.mxu0
    %2555 = vmatpush.bf16.msra.mxu0 %v1919
    %2556 = vmatpush.bf16.msra.mxu0 %v1911
    %2557 = vmatpush.bf16.msra.mxu0 %v1903
    %2558 = vmatpush.bf16.msra.mxu0 %v1895
    %2559 = vmatpush.bf16.msra.mxu0 %v1887
    %2560 = vmatpush.bf16.msra.mxu0 %v1879
    %2561 = vmatpush.bf16.msra.mxu0 %v1871
    %2562 = vmatpush.bf16.msra.mxu0 %v1863
    %2563 = vmatmul.bf16.gmra.mxu0 %v509
    %v2564 = vpop.f32.mrf.mxu0
    %v2565 = vadd.f32 %v2552, %v2564
    %v2566 = vpop.f32.mrf.mxu0
    %2567 = vdwg.mxu0
    %2568 = vmatpush.bf16.msra.mxu0 %v1983
    %2569 = vmatpush.bf16.msra.mxu0 %v1975
    %2570 = vmatpush.bf16.msra.mxu0 %v1967
    %2571 = vmatpush.bf16.msra.mxu0 %v1959
    %2572 = vmatpush.bf16.msra.mxu0 %v1951
    %2573 = vmatpush.bf16.msra.mxu0 %v1943
    %2574 = vmatpush.bf16.msra.mxu0 %v1935
    %2575 = vmatpush.bf16.msra.mxu0 %v1927
    %2576 = vmatmul.bf16.gmra.mxu0 %v510
    %v2577 = vpop.f32.mrf.mxu0
    %v2578 = vadd.f32 %v2565, %v2577
    %v2579 = vpop.f32.mrf.mxu0
    %2580 = vdwg.mxu0
    %2581 = vmatpush.bf16.msra.mxu0 %v2047
    %2582 = vmatpush.bf16.msra.mxu0 %v2039
    %2583 = vmatpush.bf16.msra.mxu0 %v2031
    %2584 = vmatpush.bf16.msra.mxu0 %v2023
    %2585 = vmatpush.bf16.msra.mxu0 %v2015
    %2586 = vmatpush.bf16.msra.mxu0 %v2007
    %2587 = vmatpush.bf16.msra.mxu0 %v1999
    %2588 = vmatpush.bf16.msra.mxu0 %v1991
    %2589 = vmatmul.bf16.gmra.mxu0 %v511
    %v2590 = vpop.f32.mrf.mxu0
    %v2591 = vadd.f32 %v2578, %v2590
    %v2592 = vpop.f32.mrf.mxu0
    %2593 = vdwg.mxu0
    %2594 = vmatpush.bf16.msra.mxu0 %v1728
    %2595 = vmatpush.bf16.msra.mxu0 %v1720
    %2596 = vmatpush.bf16.msra.mxu0 %v1712
    %2597 = vmatpush.bf16.msra.mxu0 %v1704
    %2598 = vmatpush.bf16.msra.mxu0 %v1696
    %2599 = vmatpush.bf16.msra.mxu0 %v1688
    %2600 = vmatpush.bf16.msra.mxu0 %v1680
    %2601 = vmatpush.bf16.msra.mxu0 %v1672
    %2602 = vmatmul.bf16.gmra.mxu0 %v506
    %v2603 = vpop.f32.mrf.mxu0
    %v2604 = vadd.f32 0.0, %v2603
    %v2605 = vpop.f32.mrf.mxu0
    %2606 = vdwg.mxu0
    %2607 = vmatpush.bf16.msra.mxu0 %v1792
    %2608 = vmatpush.bf16.msra.mxu0 %v1784
    %2609 = vmatpush.bf16.msra.mxu0 %v1776
    %2610 = vmatpush.bf16.msra.mxu0 %v1768
    %2611 = vmatpush.bf16.msra.mxu0 %v1760
    %2612 = vmatpush.bf16.msra.mxu0 %v1752
    %2613 = vmatpush.bf16.msra.mxu0 %v1744
    %2614 = vmatpush.bf16.msra.mxu0 %v1736
    %2615 = vmatmul.bf16.gmra.mxu0 %v507
    %v2616 = vpop.f32.mrf.mxu0
    %v2617 = vadd.f32 %v2604, %v2616
    %v2618 = vpop.f32.mrf.mxu0
    %2619 = vdwg.mxu0
    %2620 = vmatpush.bf16.msra.mxu0 %v1856
    %2621 = vmatpush.bf16.msra.mxu0 %v1848
    %2622 = vmatpush.bf16.msra.mxu0 %v1840
    %2623 = vmatpush.bf16.msra.mxu0 %v1832
    %2624 = vmatpush.bf16.msra.mxu0 %v1824
    %2625 = vmatpush.bf16.msra.mxu0 %v1816
    %2626 = vmatpush.bf16.msra.mxu0 %v1808
    %2627 = vmatpush.bf16.msra.mxu0 %v1800
    %2628 = vmatmul.bf16.gmra.mxu0 %v508
    %v2629 = vpop.f32.mrf.mxu0
    %v2630 = vadd.f32 %v2617, %v2629
    %v2631 = vpop.f32.mrf.mxu0
    %2632 = vdwg.mxu0
    %2633 = vmatpush.bf16.msra.mxu0 %v1920
    %2634 = vmatpush.bf16.msra.mxu0 %v1912
    %2635 = vmatpush.bf16.msra.mxu0 %v1904
    %2636 = vmatpush.bf16.msra.mxu0 %v1896
    %2637 = vmatpush.bf16.msra.mxu0 %v1888
    %2638 = vmatpush.bf16.msra.mxu0 %v1880
    %2639 = vmatpush.bf16.msra.mxu0 %v1872
    %2640 = vmatpush.bf16.msra.mxu0 %v1864
    %2641 = vmatmul.bf16.gmra.mxu0 %v509
    %v2642 = vpop.f32.mrf.mxu0
    %v2643 = vadd.f32 %v2630, %v2642
    %v2644 = vpop.f32.mrf.mxu0
    %2645 = vdwg.mxu0
    %2646 = vmatpush.bf16.msra.mxu0 %v1984
    %2647 = vmatpush.bf16.msra.mxu0 %v1976
    %2648 = vmatpush.bf16.msra.mxu0 %v1968
    %2649 = vmatpush.bf16.msra.mxu0 %v1960
    %2650 = vmatpush.bf16.msra.mxu0 %v1952
    %2651 = vmatpush.bf16.msra.mxu0 %v1944
    %2652 = vmatpush.bf16.msra.mxu0 %v1936
    %2653 = vmatpush.bf16.msra.mxu0 %v1928
    %2654 = vmatmul.bf16.gmra.mxu0 %v510
    %v2655 = vpop.f32.mrf.mxu0
    %v2656 = vadd.f32 %v2643, %v2655
    %v2657 = vpop.f32.mrf.mxu0
    %2658 = vdwg.mxu0
    %2659 = vmatpush.bf16.msra.mxu0 %v2048
    %2660 = vmatpush.bf16.msra.mxu0 %v2040
    %2661 = vmatpush.bf16.msra.mxu0 %v2032
    %2662 = vmatpush.bf16.msra.mxu0 %v2024
    %2663 = vmatpush.bf16.msra.mxu0 %v2016
    %2664 = vmatpush.bf16.msra.mxu0 %v2008
    %2665 = vmatpush.bf16.msra.mxu0 %v2000
    %2666 = vmatpush.bf16.msra.mxu0 %v1992
    %2667 = vmatmul.bf16.gmra.mxu0 %v511
    %v2668 = vpop.f32.mrf.mxu0
    %v2669 = vadd.f32 %v2656, %v2668
    %v2670 = vpop.f32.mrf.mxu0
    %2671 = vdwg.mxu0
    %2672 = vmatpush.bf16.msra.mxu0 %v1729
    %2673 = vmatpush.bf16.msra.mxu0 %v1721
    %2674 = vmatpush.bf16.msra.mxu0 %v1713
    %2675 = vmatpush.bf16.msra.mxu0 %v1705
    %2676 = vmatpush.bf16.msra.mxu0 %v1697
    %2677 = vmatpush.bf16.msra.mxu0 %v1689
    %2678 = vmatpush.bf16.msra.mxu0 %v1681
    %2679 = vmatpush.bf16.msra.mxu0 %v1673
    %2680 = vmatmul.bf16.gmra.mxu0 %v506
    %v2681 = vpop.f32.mrf.mxu0
    %v2682 = vadd.f32 0.0, %v2681
    %v2683 = vpop.f32.mrf.mxu0
    %2684 = vdwg.mxu0
    %2685 = vmatpush.bf16.msra.mxu0 %v1793
    %2686 = vmatpush.bf16.msra.mxu0 %v1785
    %2687 = vmatpush.bf16.msra.mxu0 %v1777
    %2688 = vmatpush.bf16.msra.mxu0 %v1769
    %2689 = vmatpush.bf16.msra.mxu0 %v1761
    %2690 = vmatpush.bf16.msra.mxu0 %v1753
    %2691 = vmatpush.bf16.msra.mxu0 %v1745
    %2692 = vmatpush.bf16.msra.mxu0 %v1737
    %2693 = vmatmul.bf16.gmra.mxu0 %v507
    %v2694 = vpop.f32.mrf.mxu0
    %v2695 = vadd.f32 %v2682, %v2694
    %v2696 = vpop.f32.mrf.mxu0
    %2697 = vdwg.mxu0
    %2698 = vmatpush.bf16.msra.mxu0 %v1857
    %2699 = vmatpush.bf16.msra.mxu0 %v1849
    %2700 = vmatpush.bf16.msra.mxu0 %v1841
    %2701 = vmatpush.bf16.msra.mxu0 %v1833
    %2702 = vmatpush.bf16.msra.mxu0 %v1825
    %2703 = vmatpush.bf16.msra.mxu0 %v1817
    %2704 = vmatpush.bf16.msra.mxu0 %v1809
    %2705 = vmatpush.bf16.msra.mxu0 %v1801
    %2706 = vmatmul.bf16.gmra.mxu0 %v508
    %v2707 = vpop.f32.mrf.mxu0
    %v2708 = vadd.f32 %v2695, %v2707
    %v2709 = vpop.f32.mrf.mxu0
    %2710 = vdwg.mxu0
    %2711 = vmatpush.bf16.msra.mxu0 %v1921
    %2712 = vmatpush.bf16.msra.mxu0 %v1913
    %2713 = vmatpush.bf16.msra.mxu0 %v1905
    %2714 = vmatpush.bf16.msra.mxu0 %v1897
    %2715 = vmatpush.bf16.msra.mxu0 %v1889
    %2716 = vmatpush.bf16.msra.mxu0 %v1881
    %2717 = vmatpush.bf16.msra.mxu0 %v1873
    %2718 = vmatpush.bf16.msra.mxu0 %v1865
    %2719 = vmatmul.bf16.gmra.mxu0 %v509
    %v2720 = vpop.f32.mrf.mxu0
    %v2721 = vadd.f32 %v2708, %v2720
    %v2722 = vpop.f32.mrf.mxu0
    %2723 = vdwg.mxu0
    %2724 = vmatpush.bf16.msra.mxu0 %v1985
    %2725 = vmatpush.bf16.msra.mxu0 %v1977
    %2726 = vmatpush.bf16.msra.mxu0 %v1969
    %2727 = vmatpush.bf16.msra.mxu0 %v1961
    %2728 = vmatpush.bf16.msra.mxu0 %v1953
    %2729 = vmatpush.bf16.msra.mxu0 %v1945
    %2730 = vmatpush.bf16.msra.mxu0 %v1937
    %2731 = vmatpush.bf16.msra.mxu0 %v1929
    %2732 = vmatmul.bf16.gmra.mxu0 %v510
    %v2733 = vpop.f32.mrf.mxu0
    %v2734 = vadd.f32 %v2721, %v2733
    %v2735 = vpop.f32.mrf.mxu0
    %2736 = vdwg.mxu0
    %2737 = vmatpush.bf16.msra.mxu0 %v2049
    %2738 = vmatpush.bf16.msra.mxu0 %v2041
    %2739 = vmatpush.bf16.msra.mxu0 %v2033
    %2740 = vmatpush.bf16.msra.mxu0 %v2025
    %2741 = vmatpush.bf16.msra.mxu0 %v2017
    %2742 = vmatpush.bf16.msra.mxu0 %v2009
    %2743 = vmatpush.bf16.msra.mxu0 %v2001
    %2744 = vmatpush.bf16.msra.mxu0 %v1993
    %2745 = vmatmul.bf16.gmra.mxu0 %v511
    %v2746 = vpop.f32.mrf.mxu0
    %v2747 = vadd.f32 %v2734, %v2746
    %v2748 = vpop.f32.mrf.mxu0
    %2749 = vdwg.mxu0
    %2750 = vmatpush.bf16.msra.mxu0 %v1730
    %2751 = vmatpush.bf16.msra.mxu0 %v1722
    %2752 = vmatpush.bf16.msra.mxu0 %v1714
    %2753 = vmatpush.bf16.msra.mxu0 %v1706
    %2754 = vmatpush.bf16.msra.mxu0 %v1698
    %2755 = vmatpush.bf16.msra.mxu0 %v1690
    %2756 = vmatpush.bf16.msra.mxu0 %v1682
    %2757 = vmatpush.bf16.msra.mxu0 %v1674
    %2758 = vmatmul.bf16.gmra.mxu0 %v506
    %v2759 = vpop.f32.mrf.mxu0
    %v2760 = vadd.f32 0.0, %v2759
    %v2761 = vpop.f32.mrf.mxu0
    %2762 = vdwg.mxu0
    %2763 = vmatpush.bf16.msra.mxu0 %v1794
    %2764 = vmatpush.bf16.msra.mxu0 %v1786
    %2765 = vmatpush.bf16.msra.mxu0 %v1778
    %2766 = vmatpush.bf16.msra.mxu0 %v1770
    %2767 = vmatpush.bf16.msra.mxu0 %v1762
    %2768 = vmatpush.bf16.msra.mxu0 %v1754
    %2769 = vmatpush.bf16.msra.mxu0 %v1746
    %2770 = vmatpush.bf16.msra.mxu0 %v1738
    %2771 = vmatmul.bf16.gmra.mxu0 %v507
    %v2772 = vpop.f32.mrf.mxu0
    %v2773 = vadd.f32 %v2760, %v2772
    %v2774 = vpop.f32.mrf.mxu0
    %2775 = vdwg.mxu0
    %2776 = vmatpush.bf16.msra.mxu0 %v1858
    %2777 = vmatpush.bf16.msra.mxu0 %v1850
    %2778 = vmatpush.bf16.msra.mxu0 %v1842
    %2779 = vmatpush.bf16.msra.mxu0 %v1834
    %2780 = vmatpush.bf16.msra.mxu0 %v1826
    %2781 = vmatpush.bf16.msra.mxu0 %v1818
    %2782 = vmatpush.bf16.msra.mxu0 %v1810
    %2783 = vmatpush.bf16.msra.mxu0 %v1802
    %2784 = vmatmul.bf16.gmra.mxu0 %v508
    %v2785 = vpop.f32.mrf.mxu0
    %v2786 = vadd.f32 %v2773, %v2785
    %v2787 = vpop.f32.mrf.mxu0
    %2788 = vdwg.mxu0
    %2789 = vmatpush.bf16.msra.mxu0 %v1922
    %2790 = vmatpush.bf16.msra.mxu0 %v1914
    %2791 = vmatpush.bf16.msra.mxu0 %v1906
    %2792 = vmatpush.bf16.msra.mxu0 %v1898
    %2793 = vmatpush.bf16.msra.mxu0 %v1890
    %2794 = vmatpush.bf16.msra.mxu0 %v1882
    %2795 = vmatpush.bf16.msra.mxu0 %v1874
    %2796 = vmatpush.bf16.msra.mxu0 %v1866
    %2797 = vmatmul.bf16.gmra.mxu0 %v509
    %v2798 = vpop.f32.mrf.mxu0
    %v2799 = vadd.f32 %v2786, %v2798
    %v2800 = vpop.f32.mrf.mxu0
    %2801 = vdwg.mxu0
    %2802 = vmatpush.bf16.msra.mxu0 %v1986
    %2803 = vmatpush.bf16.msra.mxu0 %v1978
    %2804 = vmatpush.bf16.msra.mxu0 %v1970
    %2805 = vmatpush.bf16.msra.mxu0 %v1962
    %2806 = vmatpush.bf16.msra.mxu0 %v1954
    %2807 = vmatpush.bf16.msra.mxu0 %v1946
    %2808 = vmatpush.bf16.msra.mxu0 %v1938
    %2809 = vmatpush.bf16.msra.mxu0 %v1930
    %2810 = vmatmul.bf16.gmra.mxu0 %v510
    %v2811 = vpop.f32.mrf.mxu0
    %v2812 = vadd.f32 %v2799, %v2811
    %v2813 = vpop.f32.mrf.mxu0
    %2814 = vdwg.mxu0
    %2815 = vmatpush.bf16.msra.mxu0 %v2050
    %2816 = vmatpush.bf16.msra.mxu0 %v2042
    %2817 = vmatpush.bf16.msra.mxu0 %v2034
    %2818 = vmatpush.bf16.msra.mxu0 %v2026
    %2819 = vmatpush.bf16.msra.mxu0 %v2018
    %2820 = vmatpush.bf16.msra.mxu0 %v2010
    %2821 = vmatpush.bf16.msra.mxu0 %v2002
    %2822 = vmatpush.bf16.msra.mxu0 %v1994
    %2823 = vmatmul.bf16.gmra.mxu0 %v511
    %v2824 = vpop.f32.mrf.mxu0
    %v2825 = vadd.f32 %v2812, %v2824
    %v2826 = vpop.f32.mrf.mxu0
    %2827 = vdwg.mxu0
    %2828 = vmatpush.bf16.msra.mxu0 %v1731
    %2829 = vmatpush.bf16.msra.mxu0 %v1723
    %2830 = vmatpush.bf16.msra.mxu0 %v1715
    %2831 = vmatpush.bf16.msra.mxu0 %v1707
    %2832 = vmatpush.bf16.msra.mxu0 %v1699
    %2833 = vmatpush.bf16.msra.mxu0 %v1691
    %2834 = vmatpush.bf16.msra.mxu0 %v1683
    %2835 = vmatpush.bf16.msra.mxu0 %v1675
    %2836 = vmatmul.bf16.gmra.mxu0 %v506
    %v2837 = vpop.f32.mrf.mxu0
    %v2838 = vadd.f32 0.0, %v2837
    %v2839 = vpop.f32.mrf.mxu0
    %2840 = vdwg.mxu0
    %2841 = vmatpush.bf16.msra.mxu0 %v1795
    %2842 = vmatpush.bf16.msra.mxu0 %v1787
    %2843 = vmatpush.bf16.msra.mxu0 %v1779
    %2844 = vmatpush.bf16.msra.mxu0 %v1771
    %2845 = vmatpush.bf16.msra.mxu0 %v1763
    %2846 = vmatpush.bf16.msra.mxu0 %v1755
    %2847 = vmatpush.bf16.msra.mxu0 %v1747
    %2848 = vmatpush.bf16.msra.mxu0 %v1739
    %2849 = vmatmul.bf16.gmra.mxu0 %v507
    %v2850 = vpop.f32.mrf.mxu0
    %v2851 = vadd.f32 %v2838, %v2850
    %v2852 = vpop.f32.mrf.mxu0
    %2853 = vdwg.mxu0
    %2854 = vmatpush.bf16.msra.mxu0 %v1859
    %2855 = vmatpush.bf16.msra.mxu0 %v1851
    %2856 = vmatpush.bf16.msra.mxu0 %v1843
    %2857 = vmatpush.bf16.msra.mxu0 %v1835
    %2858 = vmatpush.bf16.msra.mxu0 %v1827
    %2859 = vmatpush.bf16.msra.mxu0 %v1819
    %2860 = vmatpush.bf16.msra.mxu0 %v1811
    %2861 = vmatpush.bf16.msra.mxu0 %v1803
    %2862 = vmatmul.bf16.gmra.mxu0 %v508
    %v2863 = vpop.f32.mrf.mxu0
    %v2864 = vadd.f32 %v2851, %v2863
    %v2865 = vpop.f32.mrf.mxu0
    %2866 = vdwg.mxu0
    %2867 = vmatpush.bf16.msra.mxu0 %v1923
    %2868 = vmatpush.bf16.msra.mxu0 %v1915
    %2869 = vmatpush.bf16.msra.mxu0 %v1907
    %2870 = vmatpush.bf16.msra.mxu0 %v1899
    %2871 = vmatpush.bf16.msra.mxu0 %v1891
    %2872 = vmatpush.bf16.msra.mxu0 %v1883
    %2873 = vmatpush.bf16.msra.mxu0 %v1875
    %2874 = vmatpush.bf16.msra.mxu0 %v1867
    %2875 = vmatmul.bf16.gmra.mxu0 %v509
    %v2876 = vpop.f32.mrf.mxu0
    %v2877 = vadd.f32 %v2864, %v2876
    %v2878 = vpop.f32.mrf.mxu0
    %2879 = vdwg.mxu0
    %2880 = vmatpush.bf16.msra.mxu0 %v1987
    %2881 = vmatpush.bf16.msra.mxu0 %v1979
    %2882 = vmatpush.bf16.msra.mxu0 %v1971
    %2883 = vmatpush.bf16.msra.mxu0 %v1963
    %2884 = vmatpush.bf16.msra.mxu0 %v1955
    %2885 = vmatpush.bf16.msra.mxu0 %v1947
    %2886 = vmatpush.bf16.msra.mxu0 %v1939
    %2887 = vmatpush.bf16.msra.mxu0 %v1931
    %2888 = vmatmul.bf16.gmra.mxu0 %v510
    %v2889 = vpop.f32.mrf.mxu0
    %v2890 = vadd.f32 %v2877, %v2889
    %v2891 = vpop.f32.mrf.mxu0
    %2892 = vdwg.mxu0
    %2893 = vmatpush.bf16.msra.mxu0 %v2051
    %2894 = vmatpush.bf16.msra.mxu0 %v2043
    %2895 = vmatpush.bf16.msra.mxu0 %v2035
    %2896 = vmatpush.bf16.msra.mxu0 %v2027
    %2897 = vmatpush.bf16.msra.mxu0 %v2019
    %2898 = vmatpush.bf16.msra.mxu0 %v2011
    %2899 = vmatpush.bf16.msra.mxu0 %v2003
    %2900 = vmatpush.bf16.msra.mxu0 %v1995
    %2901 = vmatmul.bf16.gmra.mxu0 %v511
    %v2902 = vpop.f32.mrf.mxu0
    %v2903 = vadd.f32 %v2890, %v2902
    %v2904 = vpop.f32.mrf.mxu0
    %2905 = vdwg.mxu0
    %2906 = vmatpush.bf16.msra.mxu0 %v1732
    %2907 = vmatpush.bf16.msra.mxu0 %v1724
    %2908 = vmatpush.bf16.msra.mxu0 %v1716
    %2909 = vmatpush.bf16.msra.mxu0 %v1708
    %2910 = vmatpush.bf16.msra.mxu0 %v1700
    %2911 = vmatpush.bf16.msra.mxu0 %v1692
    %2912 = vmatpush.bf16.msra.mxu0 %v1684
    %2913 = vmatpush.bf16.msra.mxu0 %v1676
    %2914 = vmatmul.bf16.gmra.mxu0 %v506
    %v2915 = vpop.f32.mrf.mxu0
    %v2916 = vadd.f32 0.0, %v2915
    %v2917 = vpop.f32.mrf.mxu0
    %2918 = vdwg.mxu0
    %2919 = vmatpush.bf16.msra.mxu0 %v1796
    %2920 = vmatpush.bf16.msra.mxu0 %v1788
    %2921 = vmatpush.bf16.msra.mxu0 %v1780
    %2922 = vmatpush.bf16.msra.mxu0 %v1772
    %2923 = vmatpush.bf16.msra.mxu0 %v1764
    %2924 = vmatpush.bf16.msra.mxu0 %v1756
    %2925 = vmatpush.bf16.msra.mxu0 %v1748
    %2926 = vmatpush.bf16.msra.mxu0 %v1740
    %2927 = vmatmul.bf16.gmra.mxu0 %v507
    %v2928 = vpop.f32.mrf.mxu0
    %v2929 = vadd.f32 %v2916, %v2928
    %v2930 = vpop.f32.mrf.mxu0
    %2931 = vdwg.mxu0
    %2932 = vmatpush.bf16.msra.mxu0 %v1860
    %2933 = vmatpush.bf16.msra.mxu0 %v1852
    %2934 = vmatpush.bf16.msra.mxu0 %v1844
    %2935 = vmatpush.bf16.msra.mxu0 %v1836
    %2936 = vmatpush.bf16.msra.mxu0 %v1828
    %2937 = vmatpush.bf16.msra.mxu0 %v1820
    %2938 = vmatpush.bf16.msra.mxu0 %v1812
    %2939 = vmatpush.bf16.msra.mxu0 %v1804
    %2940 = vmatmul.bf16.gmra.mxu0 %v508
    %v2941 = vpop.f32.mrf.mxu0
    %v2942 = vadd.f32 %v2929, %v2941
    %v2943 = vpop.f32.mrf.mxu0
    %2944 = vdwg.mxu0
    %2945 = vmatpush.bf16.msra.mxu0 %v1924
    %2946 = vmatpush.bf16.msra.mxu0 %v1916
    %2947 = vmatpush.bf16.msra.mxu0 %v1908
    %2948 = vmatpush.bf16.msra.mxu0 %v1900
    %2949 = vmatpush.bf16.msra.mxu0 %v1892
    %2950 = vmatpush.bf16.msra.mxu0 %v1884
    %2951 = vmatpush.bf16.msra.mxu0 %v1876
    %2952 = vmatpush.bf16.msra.mxu0 %v1868
    %2953 = vmatmul.bf16.gmra.mxu0 %v509
    %v2954 = vpop.f32.mrf.mxu0
    %v2955 = vadd.f32 %v2942, %v2954
    %v2956 = vpop.f32.mrf.mxu0
    %2957 = vdwg.mxu0
    %2958 = vmatpush.bf16.msra.mxu0 %v1988
    %2959 = vmatpush.bf16.msra.mxu0 %v1980
    %2960 = vmatpush.bf16.msra.mxu0 %v1972
    %2961 = vmatpush.bf16.msra.mxu0 %v1964
    %2962 = vmatpush.bf16.msra.mxu0 %v1956
    %2963 = vmatpush.bf16.msra.mxu0 %v1948
    %2964 = vmatpush.bf16.msra.mxu0 %v1940
    %2965 = vmatpush.bf16.msra.mxu0 %v1932
    %2966 = vmatmul.bf16.gmra.mxu0 %v510
    %v2967 = vpop.f32.mrf.mxu0
    %v2968 = vadd.f32 %v2955, %v2967
    %v2969 = vpop.f32.mrf.mxu0
    %2970 = vdwg.mxu0
    %2971 = vmatpush.bf16.msra.mxu0 %v2052
    %2972 = vmatpush.bf16.msra.mxu0 %v2044
    %2973 = vmatpush.bf16.msra.mxu0 %v2036
    %2974 = vmatpush.bf16.msra.mxu0 %v2028
    %2975 = vmatpush.bf16.msra.mxu0 %v2020
    %2976 = vmatpush.bf16.msra.mxu0 %v2012
    %2977 = vmatpush.bf16.msra.mxu0 %v2004
    %2978 = vmatpush.bf16.msra.mxu0 %v1996
    %2979 = vmatmul.bf16.gmra.mxu0 %v511
    %v2980 = vpop.f32.mrf.mxu0
    %v2981 = vadd.f32 %v2968, %v2980
    %v2982 = vpop.f32.mrf.mxu0
    %2983 = vdwg.mxu0
    %2984 = vmatpush.bf16.msra.mxu0 %v1733
    %2985 = vmatpush.bf16.msra.mxu0 %v1725
    %2986 = vmatpush.bf16.msra.mxu0 %v1717
    %2987 = vmatpush.bf16.msra.mxu0 %v1709
    %2988 = vmatpush.bf16.msra.mxu0 %v1701
    %2989 = vmatpush.bf16.msra.mxu0 %v1693
    %2990 = vmatpush.bf16.msra.mxu0 %v1685
    %2991 = vmatpush.bf16.msra.mxu0 %v1677
    %2992 = vmatmul.bf16.gmra.mxu0 %v506
    %v2993 = vpop.f32.mrf.mxu0
    %v2994 = vadd.f32 0.0, %v2993
    %v2995 = vpop.f32.mrf.mxu0
    %2996 = vdwg.mxu0
    %2997 = vmatpush.bf16.msra.mxu0 %v1797
    %2998 = vmatpush.bf16.msra.mxu0 %v1789
    %2999 = vmatpush.bf16.msra.mxu0 %v1781
    %3000 = vmatpush.bf16.msra.mxu0 %v1773
    %3001 = vmatpush.bf16.msra.mxu0 %v1765
    %3002 = vmatpush.bf16.msra.mxu0 %v1757
    %3003 = vmatpush.bf16.msra.mxu0 %v1749
    %3004 = vmatpush.bf16.msra.mxu0 %v1741
    %3005 = vmatmul.bf16.gmra.mxu0 %v507
    %v3006 = vpop.f32.mrf.mxu0
    %v3007 = vadd.f32 %v2994, %v3006
    %v3008 = vpop.f32.mrf.mxu0
    %3009 = vdwg.mxu0
    %3010 = vmatpush.bf16.msra.mxu0 %v1861
    %3011 = vmatpush.bf16.msra.mxu0 %v1853
    %3012 = vmatpush.bf16.msra.mxu0 %v1845
    %3013 = vmatpush.bf16.msra.mxu0 %v1837
    %3014 = vmatpush.bf16.msra.mxu0 %v1829
    %3015 = vmatpush.bf16.msra.mxu0 %v1821
    %3016 = vmatpush.bf16.msra.mxu0 %v1813
    %3017 = vmatpush.bf16.msra.mxu0 %v1805
    %3018 = vmatmul.bf16.gmra.mxu0 %v508
    %v3019 = vpop.f32.mrf.mxu0
    %v3020 = vadd.f32 %v3007, %v3019
    %v3021 = vpop.f32.mrf.mxu0
    %3022 = vdwg.mxu0
    %3023 = vmatpush.bf16.msra.mxu0 %v1925
    %3024 = vmatpush.bf16.msra.mxu0 %v1917
    %3025 = vmatpush.bf16.msra.mxu0 %v1909
    %3026 = vmatpush.bf16.msra.mxu0 %v1901
    %3027 = vmatpush.bf16.msra.mxu0 %v1893
    %3028 = vmatpush.bf16.msra.mxu0 %v1885
    %3029 = vmatpush.bf16.msra.mxu0 %v1877
    %3030 = vmatpush.bf16.msra.mxu0 %v1869
    %3031 = vmatmul.bf16.gmra.mxu0 %v509
    %v3032 = vpop.f32.mrf.mxu0
    %v3033 = vadd.f32 %v3020, %v3032
    %v3034 = vpop.f32.mrf.mxu0
    %3035 = vdwg.mxu0
    %3036 = vmatpush.bf16.msra.mxu0 %v1989
    %3037 = vmatpush.bf16.msra.mxu0 %v1981
    %3038 = vmatpush.bf16.msra.mxu0 %v1973
    %3039 = vmatpush.bf16.msra.mxu0 %v1965
    %3040 = vmatpush.bf16.msra.mxu0 %v1957
    %3041 = vmatpush.bf16.msra.mxu0 %v1949
    %3042 = vmatpush.bf16.msra.mxu0 %v1941
    %3043 = vmatpush.bf16.msra.mxu0 %v1933
    %3044 = vmatmul.bf16.gmra.mxu0 %v510
    %v3045 = vpop.f32.mrf.mxu0
    %v3046 = vadd.f32 %v3033, %v3045
    %v3047 = vpop.f32.mrf.mxu0
    %3048 = vdwg.mxu0
    %3049 = vmatpush.bf16.msra.mxu0 %v2053
    %3050 = vmatpush.bf16.msra.mxu0 %v2045
    %3051 = vmatpush.bf16.msra.mxu0 %v2037
    %3052 = vmatpush.bf16.msra.mxu0 %v2029
    %3053 = vmatpush.bf16.msra.mxu0 %v2021
    %3054 = vmatpush.bf16.msra.mxu0 %v2013
    %3055 = vmatpush.bf16.msra.mxu0 %v2005
    %3056 = vmatpush.bf16.msra.mxu0 %v1997
    %3057 = vmatmul.bf16.gmra.mxu0 %v511
    %v3058 = vpop.f32.mrf.mxu0
    %v3059 = vadd.f32 %v3046, %v3058
    %v3060 = vpop.f32.mrf.mxu0
    %3061 = vdwg.mxu0
    %v3062 = vrot.slane %v2513, 4
    %v3063 = vadd.f32 %v2513, %v3062
    %v3064 = vrot.slane %v3063, 2
    %v3065 = vadd.f32 %v3063, %v3064
    %v3066 = vrot.slane %v3065, 1
    %v3067 = vadd.f32 %v3065, %v3066
    %v3068 = vrot.slane %v2591, 4
    %v3069 = vadd.f32 %v2591, %v3068
    %v3070 = vrot.slane %v3069, 2
    %v3071 = vadd.f32 %v3069, %v3070
    %v3072 = vrot.slane %v3071, 1
    %v3073 = vadd.f32 %v3071, %v3072
    %v3074 = vrot.slane %v2669, 4
    %v3075 = vadd.f32 %v2669, %v3074
    %v3076 = vrot.slane %v3075, 2
    %v3077 = vadd.f32 %v3075, %v3076
    %v3078 = vrot.slane %v3077, 1
    %v3079 = vadd.f32 %v3077, %v3078
    %v3080 = vrot.slane %v2747, 4
    %v3081 = vadd.f32 %v2747, %v3080
    %v3082 = vrot.slane %v3081, 2
    %v3083 = vadd.f32 %v3081, %v3082
    %v3084 = vrot.slane %v3083, 1
    %v3085 = vadd.f32 %v3083, %v3084
    %v3086 = vrot.slane %v2825, 4
    %v3087 = vadd.f32 %v2825, %v3086
    %v3088 = vrot.slane %v3087, 2
    %v3089 = vadd.f32 %v3087, %v3088
    %v3090 = vrot.slane %v3089, 1
    %v3091 = vadd.f32 %v3089, %v3090
    %v3092 = vrot.slane %v2903, 4
    %v3093 = vadd.f32 %v2903, %v3092
    %v3094 = vrot.slane %v3093, 2
    %v3095 = vadd.f32 %v3093, %v3094
    %v3096 = vrot.slane %v3095, 1
    %v3097 = vadd.f32 %v3095, %v3096
    %v3098 = vrot.slane %v2981, 4
    %v3099 = vadd.f32 %v2981, %v3098
    %v3100 = vrot.slane %v3099, 2
    %v3101 = vadd.f32 %v3099, %v3100
    %v3102 = vrot.slane %v3101, 1
    %v3103 = vadd.f32 %v3101, %v3102
    %v3104 = vrot.slane %v3059, 4
    %v3105 = vadd.f32 %v3059, %v3104
    %v3106 = vrot.slane %v3105, 2
    %v3107 = vadd.f32 %v3105, %v3106
    %v3108 = vrot.slane %v3107, 1
    %v3109 = vadd.f32 %v3107, %v3108
    %v3110 = vmul.f32 %v3067, 0.125
    %v3111 = vmul.f32 %v3073, 0.125
    %v3112 = vmul.f32 %v3079, 0.125
    %v3113 = vmul.f32 %v3085, 0.125
    %v3114 = vmul.f32 %v3091, 0.125
    %v3115 = vmul.f32 %v3097, 0.125
    %v3116 = vmul.f32 %v3103, 0.125
    %v3117 = vmul.f32 %v3109, 0.125
    %v3118 = vsub.f32 %v2513, %v3110
    %v3119 = vsub.f32 %v2591, %v3111
    %v3120 = vsub.f32 %v2669, %v3112
    %v3121 = vsub.f32 %v2747, %v3113
    %v3122 = vsub.f32 %v2825, %v3114
    %v3123 = vsub.f32 %v2903, %v3115
    %v3124 = vsub.f32 %v2981, %v3116
    %v3125 = vsub.f32 %v3059, %v3117
    %v3126 = vmul.f32 %v3118, %v3118
    %v3127 = vmul.f32 %v3119, %v3119
    %v3128 = vmul.f32 %v3120, %v3120
    %v3129 = vmul.f32 %v3121, %v3121
    %v3130 = vmul.f32 %v3122, %v3122
    %v3131 = vmul.f32 %v3123, %v3123
    %v3132 = vmul.f32 %v3124, %v3124
    %v3133 = vmul.f32 %v3125, %v3125
    %v3134 = vrot.slane %v3126, 4
    %v3135 = vadd.f32 %v3126, %v3134
    %v3136 = vrot.slane %v3135, 2
    %v3137 = vadd.f32 %v3135, %v3136
    %v3138 = vrot.slane %v3137, 1
    %v3139 = vadd.f32 %v3137, %v3138
    %v3140 = vrot.slane %v3127, 4
    %v3141 = vadd.f32 %v3127, %v3140
    %v3142 = vrot.slane %v3141, 2
    %v3143 = vadd.f32 %v3141, %v3142
    %v3144 = vrot.slane %v3143, 1
    %v3145 = vadd.f32 %v3143, %v3144
    %v3146 = vrot.slane %v3128, 4
    %v3147 = vadd.f32 %v3128, %v3146
    %v3148 = vrot.slane %v3147, 2
    %v3149 = vadd.f32 %v3147, %v3148
    %v3150 = vrot.slane %v3149, 1
    %v3151 = vadd.f32 %v3149, %v3150
    %v3152 = vrot.slane %v3129, 4
    %v3153 = vadd.f32 %v3129, %v3152
    %v3154 = vrot.slane %v3153, 2
    %v3155 = vadd.f32 %v3153, %v3154
    %v3156 = vrot.slane %v3155, 1
    %v3157 = vadd.f32 %v3155, %v3156
    %v3158 = vrot.slane %v3130, 4
    %v3159 = vadd.f32 %v3130, %v3158
    %v3160 = vrot.slane %v3159, 2
    %v3161 = vadd.f32 %v3159, %v3160
    %v3162 = vrot.slane %v3161, 1
    %v3163 = vadd.f32 %v3161, %v3162
    %v3164 = vrot.slane %v3131, 4
    %v3165 = vadd.f32 %v3131, %v3164
    %v3166 = vrot.slane %v3165, 2
    %v3167 = vadd.f32 %v3165, %v3166
    %v3168 = vrot.slane %v3167, 1
    %v3169 = vadd.f32 %v3167, %v3168
    %v3170 = vrot.slane %v3132, 4
    %v3171 = vadd.f32 %v3132, %v3170
    %v3172 = vrot.slane %v3171, 2
    %v3173 = vadd.f32 %v3171, %v3172
    %v3174 = vrot.slane %v3173, 1
    %v3175 = vadd.f32 %v3173, %v3174
    %v3176 = vrot.slane %v3133, 4
    %v3177 = vadd.f32 %v3133, %v3176
    %v3178 = vrot.slane %v3177, 2
    %v3179 = vadd.f32 %v3177, %v3178
    %v3180 = vrot.slane %v3179, 1
    %v3181 = vadd.f32 %v3179, %v3180
    %v3182 = vmul.f32 %v3139, 0.125
    %v3183 = vmul.f32 %v3145, 0.125
    %v3184 = vmul.f32 %v3151, 0.125
    %v3185 = vmul.f32 %v3157, 0.125
    %v3186 = vmul.f32 %v3163, 0.125
    %v3187 = vmul.f32 %v3169, 0.125
    %v3188 = vmul.f32 %v3175, 0.125
    %v3189 = vmul.f32 %v3181, 0.125
    %v3190 = vld [vmem:[#allocation7] sm:$0xff]
    %v3191 = vadd.f32 %v3182, 1e-05
    %v3192 = vadd.f32 %v3183, 1e-05
    %v3193 = vadd.f32 %v3184, 1e-05
    %v3194 = vadd.f32 %v3185, 1e-05
    %v3195 = vadd.f32 %v3186, 1e-05
    %v3196 = vadd.f32 %v3187, 1e-05
    %v3197 = vadd.f32 %v3188, 1e-05
    %v3198 = vadd.f32 %v3189, 1e-05
    %v3199 = vrsqrt.pop %v3191
    %v3200 = vmul.f32 %v3199, %v3191
    %v3201 = vmul.f32 %v3200, %v3199
    %v3202 = vmul.f32 0.5, %v3201
    %v3203 = vsub.f32 1.5, %v3202
    %v3204 = vmul.f32 %v3199, %v3203
    %vm3205 = vweird.f32 %v3191
    %vm3206 = vweird.f32 %v3199
    %vm3207 = vmor %vm3205, %vm3206
    %v3208 = vsel %vm3207, %v3199, %v3204
    %v3209 = vrsqrt.pop %v3192
    %v3210 = vmul.f32 %v3209, %v3192
    %v3211 = vmul.f32 %v3210, %v3209
    %v3212 = vmul.f32 0.5, %v3211
    %v3213 = vsub.f32 1.5, %v3212
    %v3214 = vmul.f32 %v3209, %v3213
    %vm3215 = vweird.f32 %v3192
    %vm3216 = vweird.f32 %v3209
    %vm3217 = vmor %vm3215, %vm3216
    %v3218 = vsel %vm3217, %v3209, %v3214
    %v3219 = vrsqrt.pop %v3193
    %v3220 = vmul.f32 %v3219, %v3193
    %v3221 = vmul.f32 %v3220, %v3219
    %v3222 = vmul.f32 0.5, %v3221
    %v3223 = vsub.f32 1.5, %v3222
    %v3224 = vmul.f32 %v3219, %v3223
    %vm3225 = vweird.f32 %v3193
    %vm3226 = vweird.f32 %v3219
    %vm3227 = vmor %vm3225, %vm3226
    %v3228 = vsel %vm3227, %v3219, %v3224
    %v3229 = vrsqrt.pop %v3194
    %v3230 = vmul.f32 %v3229, %v3194
    %v3231 = vmul.f32 %v3230, %v3229
    %v3232 = vmul.f32 0.5, %v3231
    %v3233 = vsub.f32 1.5, %v3232
    %v3234 = vmul.f32 %v3229, %v3233
    %vm3235 = vweird.f32 %v3194
    %vm3236 = vweird.f32 %v3229
    %vm3237 = vmor %vm3235, %vm3236
    %v3238 = vsel %vm3237, %v3229, %v3234
    %v3239 = vrsqrt.pop %v3195
    %v3240 = vmul.f32 %v3239, %v3195
    %v3241 = vmul.f32 %v3240, %v3239
    %v3242 = vmul.f32 0.5, %v3241
    %v3243 = vsub.f32 1.5, %v3242
    %v3244 = vmul.f32 %v3239, %v3243
    %vm3245 = vweird.f32 %v3195
    %vm3246 = vweird.f32 %v3239
    %vm3247 = vmor %vm3245, %vm3246
    %v3248 = vsel %vm3247, %v3239, %v3244
    %v3249 = vrsqrt.pop %v3196
    %v3250 = vmul.f32 %v3249, %v3196
    %v3251 = vmul.f32 %v3250, %v3249
    %v3252 = vmul.f32 0.5, %v3251
    %v3253 = vsub.f32 1.5, %v3252
    %v3254 = vmul.f32 %v3249, %v3253
    %vm3255 = vweird.f32 %v3196
    %vm3256 = vweird.f32 %v3249
    %vm3257 = vmor %vm3255, %vm3256
    %v3258 = vsel %vm3257, %v3249, %v3254
    %v3259 = vrsqrt.pop %v3197
    %v3260 = vmul.f32 %v3259, %v3197
    %v3261 = vmul.f32 %v3260, %v3259
    %v3262 = vmul.f32 0.5, %v3261
    %v3263 = vsub.f32 1.5, %v3262
    %v3264 = vmul.f32 %v3259, %v3263
    %vm3265 = vweird.f32 %v3197
    %vm3266 = vweird.f32 %v3259
    %vm3267 = vmor %vm3265, %vm3266
    %v3268 = vsel %vm3267, %v3259, %v3264
    %v3269 = vrsqrt.pop %v3198
    %v3270 = vmul.f32 %v3269, %v3198
    %v3271 = vmul.f32 %v3270, %v3269
    %v3272 = vmul.f32 0.5, %v3271
    %v3273 = vsub.f32 1.5, %v3272
    %v3274 = vmul.f32 %v3269, %v3273
    %vm3275 = vweird.f32 %v3198
    %vm3276 = vweird.f32 %v3269
    %vm3277 = vmor %vm3275, %vm3276
    %v3278 = vsel %vm3277, %v3269, %v3274
    %v3287 = vrot.slane %v3218, 7
    %v3288 = vrot.slane %v3228, 6
    %v3289 = vrot.slane %v3238, 5
    %v3290 = vrot.slane %v3248, 4
    %v3291 = vrot.slane %v3258, 3
    %v3292 = vrot.slane %v3268, 2
    %v3293 = vrot.slane %v3278, 1
    %vm3294 = vcmask 1040384
    %v3295 = vsel %vm3294, %v3208, %v3287
    %vm3296 = vcmask 1042434
    %v3297 = vsel %vm3296, %v3288, %v3289
    %vm3298 = vcmask 1041408
    %v3299 = vsel %vm3298, %v3295, %v3297
    %vm3300 = vcmask 1044484
    %v3301 = vsel %vm3300, %v3290, %v3291
    %vm3302 = vcmask 1046534
    %v3303 = vsel %vm3302, %v3292, %v3293
    %vm3304 = vcmask 1045508
    %v3305 = vsel %vm3304, %v3301, %v3303
    %vm3306 = vcmask 1043456
    %v3307 = vsel %vm3306, %v3299, %v3305
    %v3309 = vmul.f32 %v3190, %v3307
    %v3310 = vld [vmem:[#allocation8] sm:$0xff]
    %v3312 = vperm.slane %v3309, 0
    %v3313 = vperm.slane %v3309, 1
    %v3314 = vperm.slane %v3309, 2
    %v3315 = vperm.slane %v3309, 3
    %v3316 = vperm.slane %v3309, 4
    %v3317 = vperm.slane %v3309, 5
    %v3318 = vperm.slane %v3309, 6
    %v3319 = vperm.slane %v3309, 7
    %v3328 = vmul.f32 %v3110, %v3312
    %v3329 = vmul.f32 %v3111, %v3313
    %v3330 = vmul.f32 %v3112, %v3314
    %v3331 = vmul.f32 %v3113, %v3315
    %v3332 = vmul.f32 %v3114, %v3316
    %v3333 = vmul.f32 %v3115, %v3317
    %v3334 = vmul.f32 %v3116, %v3318
    %v3335 = vmul.f32 %v3117, %v3319
    %v3344 = vrot.slane %v3329, 7
    %v3345 = vrot.slane %v3330, 6
    %v3346 = vrot.slane %v3331, 5
    %v3347 = vrot.slane %v3332, 4
    %v3348 = vrot.slane %v3333, 3
    %v3349 = vrot.slane %v3334, 2
    %v3350 = vrot.slane %v3335, 1
    %v3351 = vsel %vm3294, %v3328, %v3344
    %v3352 = vsel %vm3296, %v3345, %v3346
    %v3353 = vsel %vm3298, %v3351, %v3352
    %v3354 = vsel %vm3300, %v3347, %v3348
    %v3355 = vsel %vm3302, %v3349, %v3350
    %v3356 = vsel %vm3304, %v3354, %v3355
    %v3357 = vsel %vm3306, %v3353, %v3356
    %v3359 = vsub.f32 %v3310, %v3357
    %v3360 = vmul.f32 %v2513, %v3312
    %v3361 = vmul.f32 %v2591, %v3313
    %v3362 = vmul.f32 %v2669, %v3314
    %v3363 = vmul.f32 %v2747, %v3315
    %v3364 = vmul.f32 %v2825, %v3316
    %v3365 = vmul.f32 %v2903, %v3317
    %v3366 = vmul.f32 %v2981, %v3318
    %v3367 = vmul.f32 %v3059, %v3319
    %v3369 = vperm.slane %v3359, 0
    %v3370 = vperm.slane %v3359, 1
    %v3371 = vperm.slane %v3359, 2
    %v3372 = vperm.slane %v3359, 3
    %v3373 = vperm.slane %v3359, 4
    %v3374 = vperm.slane %v3359, 5
    %v3375 = vperm.slane %v3359, 6
    %v3376 = vperm.slane %v3359, 7
    %v3385 = vadd.f32 %v3360, %v3369
    %v3386 = vadd.f32 %v3361, %v3370
    %v3387 = vadd.f32 %v3362, %v3371
    %v3388 = vadd.f32 %v3363, %v3372
    %v3389 = vadd.f32 %v3364, %v3373
    %v3390 = vadd.f32 %v3365, %v3374
    %v3391 = vadd.f32 %v3366, %v3375
    %v3392 = vadd.f32 %v3367, %v3376
    %v3393 = vmax.f32 %v3385, 0.0
    %v3394 = vmax.f32 %v3386, 0.0
    %v3395 = vmax.f32 %v3387, 0.0
    %v3396 = vmax.f32 %v3388, 0.0
    %v3397 = vmax.f32 %v3389, 0.0
    %v3398 = vmax.f32 %v3390, 0.0
    %v3399 = vmax.f32 %v3391, 0.0
    %v3400 = vmax.f32 %v3392, 0.0
    %v3401 = vpack.c.bf16 %v3393, %v3393
    %v3402 = vpack.c.bf16 %v3394, %v3394
    %v3403 = vpack.c.bf16 %v3395, %v3395
    %v3404 = vpack.c.bf16 %v3396, %v3396
    %v3405 = vpack.c.bf16 %v3397, %v3397
    %v3406 = vpack.c.bf16 %v3398, %v3398
    %v3407 = vpack.c.bf16 %v3399, %v3399
    %v3408 = vpack.c.bf16 %v3400, %v3400
    %v3409 = vld [vmem:[#allocation10] sm:$0xf]
    %v3410 = vld [vmem:[#allocation10 + $0x4] sm:$0xf]
    %v3411 = vld [vmem:[#allocation10 + $0x8] sm:$0xf]
    %v3412 = vld [vmem:[#allocation10 + $0xc] sm:$0xf]
    %v3413 = vld [vmem:[#allocation10 + $0x10] sm:$0xf]
    %v3414 = vld [vmem:[#allocation10 + $0x14] sm:$0xf]
    %v3415 = vld [vmem:[#allocation10 + $0x18] sm:$0xf]
    %v3416 = vld [vmem:[#allocation10 + $0x1c] sm:$0xf]
    %v3417 = vld [vmem:[#allocation10 + $0x20] sm:$0xf]
    %v3418 = vld [vmem:[#allocation10 + $0x24] sm:$0xf]
    %v3419 = vld [vmem:[#allocation10 + $0x28] sm:$0xf]
    %v3420 = vld [vmem:[#allocation10 + $0x2c] sm:$0xf]
    %v3421 = vld [vmem:[#allocation10 + $0x30] sm:$0xf]
    %v3422 = vld [vmem:[#allocation10 + $0x34] sm:$0xf]
    %v3423 = vld [vmem:[#allocation10 + $0x38] sm:$0xf]
    %v3424 = vld [vmem:[#allocation10 + $0x3c] sm:$0xf]
    %v3425 = vld [vmem:[#allocation10 + $0x40] sm:$0xf]
    %v3426 = vld [vmem:[#allocation10 + $0x44] sm:$0xf]
    %v3427 = vld [vmem:[#allocation10 + $0x48] sm:$0xf]
    %v3428 = vld [vmem:[#allocation10 + $0x4c] sm:$0xf]
    %v3429 = vld [vmem:[#allocation10 + $0x50] sm:$0xf]
    %v3430 = vld [vmem:[#allocation10 + $0x54] sm:$0xf]
    %v3431 = vld [vmem:[#allocation10 + $0x58] sm:$0xf]
    %v3432 = vld [vmem:[#allocation10 + $0x5c] sm:$0xf]
    %v3433 = vld [vmem:[#allocation10 + $0x60] sm:$0xf]
    %v3434 = vld [vmem:[#allocation10 + $0x64] sm:$0xf]
    %v3435 = vld [vmem:[#allocation10 + $0x68] sm:$0xf]
    %v3436 = vld [vmem:[#allocation10 + $0x6c] sm:$0xf]
    %v3437 = vld [vmem:[#allocation10 + $0x70] sm:$0xf]
    %v3438 = vld [vmem:[#allocation10 + $0x74] sm:$0xf]
    %v3439 = vld [vmem:[#allocation10 + $0x78] sm:$0xf]
    %v3440 = vld [vmem:[#allocation10 + $0x7c] sm:$0xf]
    %v3441 = vld [vmem:[#allocation10 + $0x80] sm:$0xf]
    %v3442 = vld [vmem:[#allocation10 + $0x84] sm:$0xf]
    %v3443 = vld [vmem:[#allocation10 + $0x88] sm:$0xf]
    %v3444 = vld [vmem:[#allocation10 + $0x8c] sm:$0xf]
    %v3445 = vld [vmem:[#allocation10 + $0x90] sm:$0xf]
    %v3446 = vld [vmem:[#allocation10 + $0x94] sm:$0xf]
    %v3447 = vld [vmem:[#allocation10 + $0x98] sm:$0xf]
    %v3448 = vld [vmem:[#allocation10 + $0x9c] sm:$0xf]
    %v3449 = vld [vmem:[#allocation10 + $0xa0] sm:$0xf]
    %v3450 = vld [vmem:[#allocation10 + $0xa4] sm:$0xf]
    %v3451 = vld [vmem:[#allocation10 + $0xa8] sm:$0xf]
    %v3452 = vld [vmem:[#allocation10 + $0xac] sm:$0xf]
    %v3453 = vld [vmem:[#allocation10 + $0xb0] sm:$0xf]
    %v3454 = vld [vmem:[#allocation10 + $0xb4] sm:$0xf]
    %v3455 = vld [vmem:[#allocation10 + $0xb8] sm:$0xf]
    %v3456 = vld [vmem:[#allocation10 + $0xbc] sm:$0xf]
    %v3457 = vld [vmem:[#allocation10 + $0xc0] sm:$0xf]
    %v3458 = vld [vmem:[#allocation10 + $0xc4] sm:$0xf]
    %v3459 = vld [vmem:[#allocation10 + $0xc8] sm:$0xf]
    %v3460 = vld [vmem:[#allocation10 + $0xcc] sm:$0xf]
    %v3461 = vld [vmem:[#allocation10 + $0xd0] sm:$0xf]
    %v3462 = vld [vmem:[#allocation10 + $0xd4] sm:$0xf]
    %v3463 = vld [vmem:[#allocation10 + $0xd8] sm:$0xf]
    %v3464 = vld [vmem:[#allocation10 + $0xdc] sm:$0xf]
    %v3465 = vld [vmem:[#allocation10 + $0xe0] sm:$0xf]
    %v3466 = vld [vmem:[#allocation10 + $0xe4] sm:$0xf]
    %v3467 = vld [vmem:[#allocation10 + $0xe8] sm:$0xf]
    %v3468 = vld [vmem:[#allocation10 + $0xec] sm:$0xf]
    %v3469 = vld [vmem:[#allocation10 + $0xf0] sm:$0xf]
    %v3470 = vld [vmem:[#allocation10 + $0xf4] sm:$0xf]
    %v3471 = vld [vmem:[#allocation10 + $0xf8] sm:$0xf]
    %v3472 = vld [vmem:[#allocation10 + $0xfc] sm:$0xf]
    %v3473 = vld [vmem:[#allocation10 + $0x100] sm:$0xf]
    %v3474 = vld [vmem:[#allocation10 + $0x104] sm:$0xf]
    %v3475 = vld [vmem:[#allocation10 + $0x108] sm:$0xf]
    %v3476 = vld [vmem:[#allocation10 + $0x10c] sm:$0xf]
    %v3477 = vld [vmem:[#allocation10 + $0x110] sm:$0xf]
    %v3478 = vld [vmem:[#allocation10 + $0x114] sm:$0xf]
    %v3479 = vld [vmem:[#allocation10 + $0x118] sm:$0xf]
    %v3480 = vld [vmem:[#allocation10 + $0x11c] sm:$0xf]
    %v3481 = vld [vmem:[#allocation10 + $0x120] sm:$0xf]
    %v3482 = vld [vmem:[#allocation10 + $0x124] sm:$0xf]
    %v3483 = vld [vmem:[#allocation10 + $0x128] sm:$0xf]
    %v3484 = vld [vmem:[#allocation10 + $0x12c] sm:$0xf]
    %v3485 = vld [vmem:[#allocation10 + $0x130] sm:$0xf]
    %v3486 = vld [vmem:[#allocation10 + $0x134] sm:$0xf]
    %v3487 = vld [vmem:[#allocation10 + $0x138] sm:$0xf]
    %v3488 = vld [vmem:[#allocation10 + $0x13c] sm:$0xf]
    %v3489 = vld [vmem:[#allocation10 + $0x140] sm:$0xf]
    %v3490 = vld [vmem:[#allocation10 + $0x144] sm:$0xf]
    %v3491 = vld [vmem:[#allocation10 + $0x148] sm:$0xf]
    %v3492 = vld [vmem:[#allocation10 + $0x14c] sm:$0xf]
    %v3493 = vld [vmem:[#allocation10 + $0x150] sm:$0xf]
    %v3494 = vld [vmem:[#allocation10 + $0x154] sm:$0xf]
    %v3495 = vld [vmem:[#allocation10 + $0x158] sm:$0xf]
    %v3496 = vld [vmem:[#allocation10 + $0x15c] sm:$0xf]
    %v3497 = vld [vmem:[#allocation10 + $0x160] sm:$0xf]
    %v3498 = vld [vmem:[#allocation10 + $0x164] sm:$0xf]
    %v3499 = vld [vmem:[#allocation10 + $0x168] sm:$0xf]
    %v3500 = vld [vmem:[#allocation10 + $0x16c] sm:$0xf]
    %v3501 = vld [vmem:[#allocation10 + $0x170] sm:$0xf]
    %v3502 = vld [vmem:[#allocation10 + $0x174] sm:$0xf]
    %v3503 = vld [vmem:[#allocation10 + $0x178] sm:$0xf]
    %v3504 = vld [vmem:[#allocation10 + $0x17c] sm:$0xf]
    %v3505 = vld [vmem:[#allocation10 + $0x180] sm:$0xf]
    %v3506 = vld [vmem:[#allocation10 + $0x184] sm:$0xf]
    %v3507 = vld [vmem:[#allocation10 + $0x188] sm:$0xf]
    %v3508 = vld [vmem:[#allocation10 + $0x18c] sm:$0xf]
    %v3509 = vld [vmem:[#allocation10 + $0x190] sm:$0xf]
    %v3510 = vld [vmem:[#allocation10 + $0x194] sm:$0xf]
    %v3511 = vld [vmem:[#allocation10 + $0x198] sm:$0xf]
    %v3512 = vld [vmem:[#allocation10 + $0x19c] sm:$0xf]
    %v3513 = vld [vmem:[#allocation10 + $0x1a0] sm:$0xf]
    %v3514 = vld [vmem:[#allocation10 + $0x1a4] sm:$0xf]
    %v3515 = vld [vmem:[#allocation10 + $0x1a8] sm:$0xf]
    %v3516 = vld [vmem:[#allocation10 + $0x1ac] sm:$0xf]
    %v3517 = vld [vmem:[#allocation10 + $0x1b0] sm:$0xf]
    %v3518 = vld [vmem:[#allocation10 + $0x1b4] sm:$0xf]
    %v3519 = vld [vmem:[#allocation10 + $0x1b8] sm:$0xf]
    %v3520 = vld [vmem:[#allocation10 + $0x1bc] sm:$0xf]
    %v3521 = vld [vmem:[#allocation10 + $0x1c0] sm:$0xf]
    %v3522 = vld [vmem:[#allocation10 + $0x1c4] sm:$0xf]
    %v3523 = vld [vmem:[#allocation10 + $0x1c8] sm:$0xf]
    %v3524 = vld [vmem:[#allocation10 + $0x1cc] sm:$0xf]
    %v3525 = vld [vmem:[#allocation10 + $0x1d0] sm:$0xf]
    %v3526 = vld [vmem:[#allocation10 + $0x1d4] sm:$0xf]
    %v3527 = vld [vmem:[#allocation10 + $0x1d8] sm:$0xf]
    %v3528 = vld [vmem:[#allocation10 + $0x1dc] sm:$0xf]
    %v3529 = vld [vmem:[#allocation10 + $0x1e0] sm:$0xf]
    %v3530 = vld [vmem:[#allocation10 + $0x1e4] sm:$0xf]
    %v3531 = vld [vmem:[#allocation10 + $0x1e8] sm:$0xf]
    %v3532 = vld [vmem:[#allocation10 + $0x1ec] sm:$0xf]
    %v3533 = vld [vmem:[#allocation10 + $0x1f0] sm:$0xf]
    %v3534 = vld [vmem:[#allocation10 + $0x1f4] sm:$0xf]
    %v3535 = vld [vmem:[#allocation10 + $0x1f8] sm:$0xf]
    %v3536 = vld [vmem:[#allocation10 + $0x1fc] sm:$0xf]
    %v3537 = vld [vmem:[#allocation11] sm:$0x1]
    %v3539 = vperm.slane %v3537, 0
    %v3669 = vunpack.c.l.b16 %v3409
    %v3670 = vunpack.c.l.b16 %v3410
    %v3671 = vunpack.c.l.b16 %v3411
    %v3672 = vunpack.c.l.b16 %v3412
    %v3673 = vunpack.c.l.b16 %v3413
    %v3674 = vunpack.c.l.b16 %v3414
    %v3675 = vunpack.c.l.b16 %v3415
    %v3676 = vunpack.c.l.b16 %v3416
    %v3677 = vunpack.c.l.b16 %v3417
    %v3678 = vunpack.c.l.b16 %v3418
    %v3679 = vunpack.c.l.b16 %v3419
    %v3680 = vunpack.c.l.b16 %v3420
    %v3681 = vunpack.c.l.b16 %v3421
    %v3682 = vunpack.c.l.b16 %v3422
    %v3683 = vunpack.c.l.b16 %v3423
    %v3684 = vunpack.c.l.b16 %v3424
    %v3685 = vunpack.c.l.b16 %v3425
    %v3686 = vunpack.c.l.b16 %v3426
    %v3687 = vunpack.c.l.b16 %v3427
    %v3688 = vunpack.c.l.b16 %v3428
    %v3689 = vunpack.c.l.b16 %v3429
    %v3690 = vunpack.c.l.b16 %v3430
    %v3691 = vunpack.c.l.b16 %v3431
    %v3692 = vunpack.c.l.b16 %v3432
    %v3693 = vunpack.c.l.b16 %v3433
    %v3694 = vunpack.c.l.b16 %v3434
    %v3695 = vunpack.c.l.b16 %v3435
    %v3696 = vunpack.c.l.b16 %v3436
    %v3697 = vunpack.c.l.b16 %v3437
    %v3698 = vunpack.c.l.b16 %v3438
    %v3699 = vunpack.c.l.b16 %v3439
    %v3700 = vunpack.c.l.b16 %v3440
    %v3701 = vunpack.c.l.b16 %v3441
    %v3702 = vunpack.c.l.b16 %v3442
    %v3703 = vunpack.c.l.b16 %v3443
    %v3704 = vunpack.c.l.b16 %v3444
    %v3705 = vunpack.c.l.b16 %v3445
    %v3706 = vunpack.c.l.b16 %v3446
    %v3707 = vunpack.c.l.b16 %v3447
    %v3708 = vunpack.c.l.b16 %v3448
    %v3709 = vunpack.c.l.b16 %v3449
    %v3710 = vunpack.c.l.b16 %v3450
    %v3711 = vunpack.c.l.b16 %v3451
    %v3712 = vunpack.c.l.b16 %v3452
    %v3713 = vunpack.c.l.b16 %v3453
    %v3714 = vunpack.c.l.b16 %v3454
    %v3715 = vunpack.c.l.b16 %v3455
    %v3716 = vunpack.c.l.b16 %v3456
    %v3717 = vunpack.c.l.b16 %v3457
    %v3718 = vunpack.c.l.b16 %v3458
    %v3719 = vunpack.c.l.b16 %v3459
    %v3720 = vunpack.c.l.b16 %v3460
    %v3721 = vunpack.c.l.b16 %v3461
    %v3722 = vunpack.c.l.b16 %v3462
    %v3723 = vunpack.c.l.b16 %v3463
    %v3724 = vunpack.c.l.b16 %v3464
    %v3725 = vunpack.c.l.b16 %v3465
    %v3726 = vunpack.c.l.b16 %v3466
    %v3727 = vunpack.c.l.b16 %v3467
    %v3728 = vunpack.c.l.b16 %v3468
    %v3729 = vunpack.c.l.b16 %v3469
    %v3730 = vunpack.c.l.b16 %v3470
    %v3731 = vunpack.c.l.b16 %v3471
    %v3732 = vunpack.c.l.b16 %v3472
    %v3733 = vunpack.c.l.b16 %v3473
    %v3734 = vunpack.c.l.b16 %v3474
    %v3735 = vunpack.c.l.b16 %v3475
    %v3736 = vunpack.c.l.b16 %v3476
    %v3737 = vunpack.c.l.b16 %v3477
    %v3738 = vunpack.c.l.b16 %v3478
    %v3739 = vunpack.c.l.b16 %v3479
    %v3740 = vunpack.c.l.b16 %v3480
    %v3741 = vunpack.c.l.b16 %v3481
    %v3742 = vunpack.c.l.b16 %v3482
    %v3743 = vunpack.c.l.b16 %v3483
    %v3744 = vunpack.c.l.b16 %v3484
    %v3745 = vunpack.c.l.b16 %v3485
    %v3746 = vunpack.c.l.b16 %v3486
    %v3747 = vunpack.c.l.b16 %v3487
    %v3748 = vunpack.c.l.b16 %v3488
    %v3749 = vunpack.c.l.b16 %v3489
    %v3750 = vunpack.c.l.b16 %v3490
    %v3751 = vunpack.c.l.b16 %v3491
    %v3752 = vunpack.c.l.b16 %v3492
    %v3753 = vunpack.c.l.b16 %v3493
    %v3754 = vunpack.c.l.b16 %v3494
    %v3755 = vunpack.c.l.b16 %v3495
    %v3756 = vunpack.c.l.b16 %v3496
    %v3757 = vunpack.c.l.b16 %v3497
    %v3758 = vunpack.c.l.b16 %v3498
    %v3759 = vunpack.c.l.b16 %v3499
    %v3760 = vunpack.c.l.b16 %v3500
    %v3761 = vunpack.c.l.b16 %v3501
    %v3762 = vunpack.c.l.b16 %v3502
    %v3763 = vunpack.c.l.b16 %v3503
    %v3764 = vunpack.c.l.b16 %v3504
    %v3765 = vunpack.c.l.b16 %v3505
    %v3766 = vunpack.c.l.b16 %v3506
    %v3767 = vunpack.c.l.b16 %v3507
    %v3768 = vunpack.c.l.b16 %v3508
    %v3769 = vunpack.c.l.b16 %v3509
    %v3770 = vunpack.c.l.b16 %v3510
    %v3771 = vunpack.c.l.b16 %v3511
    %v3772 = vunpack.c.l.b16 %v3512
    %v3773 = vunpack.c.l.b16 %v3513
    %v3774 = vunpack.c.l.b16 %v3514
    %v3775 = vunpack.c.l.b16 %v3515
    %v3776 = vunpack.c.l.b16 %v3516
    %v3777 = vunpack.c.l.b16 %v3517
    %v3778 = vunpack.c.l.b16 %v3518
    %v3779 = vunpack.c.l.b16 %v3519
    %v3780 = vunpack.c.l.b16 %v3520
    %v3781 = vunpack.c.l.b16 %v3521
    %v3782 = vunpack.c.l.b16 %v3522
    %v3783 = vunpack.c.l.b16 %v3523
    %v3784 = vunpack.c.l.b16 %v3524
    %v3785 = vunpack.c.l.b16 %v3525
    %v3786 = vunpack.c.l.b16 %v3526
    %v3787 = vunpack.c.l.b16 %v3527
    %v3788 = vunpack.c.l.b16 %v3528
    %v3789 = vunpack.c.l.b16 %v3529
    %v3790 = vunpack.c.l.b16 %v3530
    %v3791 = vunpack.c.l.b16 %v3531
    %v3792 = vunpack.c.l.b16 %v3532
    %v3793 = vunpack.c.l.b16 %v3533
    %v3794 = vunpack.c.l.b16 %v3534
    %v3795 = vunpack.c.l.b16 %v3535
    %v3796 = vunpack.c.l.b16 %v3536
    %v3797 = vpack.c.b16 %v3670, %v3669
    %v3798 = vpack.c.b16 %v3672, %v3671
    %v3799 = vpack.c.b16 %v3674, %v3673
    %v3800 = vpack.c.b16 %v3676, %v3675
    %v3801 = vpack.c.b16 %v3678, %v3677
    %v3802 = vpack.c.b16 %v3680, %v3679
    %v3803 = vpack.c.b16 %v3682, %v3681
    %v3804 = vpack.c.b16 %v3684, %v3683
    %v3805 = vpack.c.b16 %v3686, %v3685
    %v3806 = vpack.c.b16 %v3688, %v3687
    %v3807 = vpack.c.b16 %v3690, %v3689
    %v3808 = vpack.c.b16 %v3692, %v3691
    %v3809 = vpack.c.b16 %v3694, %v3693
    %v3810 = vpack.c.b16 %v3696, %v3695
    %v3811 = vpack.c.b16 %v3698, %v3697
    %v3812 = vpack.c.b16 %v3700, %v3699
    %v3813 = vpack.c.b16 %v3702, %v3701
    %v3814 = vpack.c.b16 %v3704, %v3703
    %v3815 = vpack.c.b16 %v3706, %v3705
    %v3816 = vpack.c.b16 %v3708, %v3707
    %v3817 = vpack.c.b16 %v3710, %v3709
    %v3818 = vpack.c.b16 %v3712, %v3711
    %v3819 = vpack.c.b16 %v3714, %v3713
    %v3820 = vpack.c.b16 %v3716, %v3715
    %v3821 = vpack.c.b16 %v3718, %v3717
    %v3822 = vpack.c.b16 %v3720, %v3719
    %v3823 = vpack.c.b16 %v3722, %v3721
    %v3824 = vpack.c.b16 %v3724, %v3723
    %v3825 = vpack.c.b16 %v3726, %v3725
    %v3826 = vpack.c.b16 %v3728, %v3727
    %v3827 = vpack.c.b16 %v3730, %v3729
    %v3828 = vpack.c.b16 %v3732, %v3731
    %v3829 = vpack.c.b16 %v3734, %v3733
    %v3830 = vpack.c.b16 %v3736, %v3735
    %v3831 = vpack.c.b16 %v3738, %v3737
    %v3832 = vpack.c.b16 %v3740, %v3739
    %v3833 = vpack.c.b16 %v3742, %v3741
    %v3834 = vpack.c.b16 %v3744, %v3743
    %v3835 = vpack.c.b16 %v3746, %v3745
    %v3836 = vpack.c.b16 %v3748, %v3747
    %v3837 = vpack.c.b16 %v3750, %v3749
    %v3838 = vpack.c.b16 %v3752, %v3751
    %v3839 = vpack.c.b16 %v3754, %v3753
    %v3840 = vpack.c.b16 %v3756, %v3755
    %v3841 = vpack.c.b16 %v3758, %v3757
    %v3842 = vpack.c.b16 %v3760, %v3759
    %v3843 = vpack.c.b16 %v3762, %v3761
    %v3844 = vpack.c.b16 %v3764, %v3763
    %v3845 = vpack.c.b16 %v3766, %v3765
    %v3846 = vpack.c.b16 %v3768, %v3767
    %v3847 = vpack.c.b16 %v3770, %v3769
    %v3848 = vpack.c.b16 %v3772, %v3771
    %v3849 = vpack.c.b16 %v3774, %v3773
    %v3850 = vpack.c.b16 %v3776, %v3775
    %v3851 = vpack.c.b16 %v3778, %v3777
    %v3852 = vpack.c.b16 %v3780, %v3779
    %v3853 = vpack.c.b16 %v3782, %v3781
    %v3854 = vpack.c.b16 %v3784, %v3783
    %v3855 = vpack.c.b16 %v3786, %v3785
    %v3856 = vpack.c.b16 %v3788, %v3787
    %v3857 = vpack.c.b16 %v3790, %v3789
    %v3858 = vpack.c.b16 %v3792, %v3791
    %v3859 = vpack.c.b16 %v3794, %v3793
    %v3860 = vpack.c.b16 %v3796, %v3795
    %3925 = vmatpush.bf16.msra.mxu0 %v3804
    %3926 = vmatpush.bf16.msra.mxu0 %v3803
    %3927 = vmatpush.bf16.msra.mxu0 %v3802
    %3928 = vmatpush.bf16.msra.mxu0 %v3801
    %3929 = vmatpush.bf16.msra.mxu0 %v3800
    %3930 = vmatpush.bf16.msra.mxu0 %v3799
    %3931 = vmatpush.bf16.msra.mxu0 %v3798
    %3932 = vmatpush.bf16.msra.mxu0 %v3797
    %3933 = vmatmul.bf16.gmra.mxu0 %v3401
    %v3934 = vpop.f32.mrf.mxu0
    %v3935 = vadd.f32 %v3539, %v3934
    %v3936 = vpop.f32.mrf.mxu0
    %3937 = vdwg.mxu0
    %3938 = vmatpush.bf16.msra.mxu0 %v3812
    %3939 = vmatpush.bf16.msra.mxu0 %v3811
    %3940 = vmatpush.bf16.msra.mxu0 %v3810
    %3941 = vmatpush.bf16.msra.mxu0 %v3809
    %3942 = vmatpush.bf16.msra.mxu0 %v3808
    %3943 = vmatpush.bf16.msra.mxu0 %v3807
    %3944 = vmatpush.bf16.msra.mxu0 %v3806
    %3945 = vmatpush.bf16.msra.mxu0 %v3805
    %3946 = vmatmul.bf16.gmra.mxu0 %v3402
    %v3947 = vpop.f32.mrf.mxu0
    %v3948 = vadd.f32 %v3935, %v3947
    %v3949 = vpop.f32.mrf.mxu0
    %3950 = vdwg.mxu0
    %3951 = vmatpush.bf16.msra.mxu0 %v3820
    %3952 = vmatpush.bf16.msra.mxu0 %v3819
    %3953 = vmatpush.bf16.msra.mxu0 %v3818
    %3954 = vmatpush.bf16.msra.mxu0 %v3817
    %3955 = vmatpush.bf16.msra.mxu0 %v3816
    %3956 = vmatpush.bf16.msra.mxu0 %v3815
    %3957 = vmatpush.bf16.msra.mxu0 %v3814
    %3958 = vmatpush.bf16.msra.mxu0 %v3813
    %3959 = vmatmul.bf16.gmra.mxu0 %v3403
    %v3960 = vpop.f32.mrf.mxu0
    %v3961 = vadd.f32 %v3948, %v3960
    %v3962 = vpop.f32.mrf.mxu0
    %3963 = vdwg.mxu0
    %3964 = vmatpush.bf16.msra.mxu0 %v3828
    %3965 = vmatpush.bf16.msra.mxu0 %v3827
    %3966 = vmatpush.bf16.msra.mxu0 %v3826
    %3967 = vmatpush.bf16.msra.mxu0 %v3825
    %3968 = vmatpush.bf16.msra.mxu0 %v3824
    %3969 = vmatpush.bf16.msra.mxu0 %v3823
    %3970 = vmatpush.bf16.msra.mxu0 %v3822
    %3971 = vmatpush.bf16.msra.mxu0 %v3821
    %3972 = vmatmul.bf16.gmra.mxu0 %v3404
    %v3973 = vpop.f32.mrf.mxu0
    %v3974 = vadd.f32 %v3961, %v3973
    %v3975 = vpop.f32.mrf.mxu0
    %3976 = vdwg.mxu0
    %3977 = vmatpush.bf16.msra.mxu0 %v3836
    %3978 = vmatpush.bf16.msra.mxu0 %v3835
    %3979 = vmatpush.bf16.msra.mxu0 %v3834
    %3980 = vmatpush.bf16.msra.mxu0 %v3833
    %3981 = vmatpush.bf16.msra.mxu0 %v3832
    %3982 = vmatpush.bf16.msra.mxu0 %v3831
    %3983 = vmatpush.bf16.msra.mxu0 %v3830
    %3984 = vmatpush.bf16.msra.mxu0 %v3829
    %3985 = vmatmul.bf16.gmra.mxu0 %v3405
    %v3986 = vpop.f32.mrf.mxu0
    %v3987 = vadd.f32 %v3974, %v3986
    %v3988 = vpop.f32.mrf.mxu0
    %3989 = vdwg.mxu0
    %3990 = vmatpush.bf16.msra.mxu0 %v3844
    %3991 = vmatpush.bf16.msra.mxu0 %v3843
    %3992 = vmatpush.bf16.msra.mxu0 %v3842
    %3993 = vmatpush.bf16.msra.mxu0 %v3841
    %3994 = vmatpush.bf16.msra.mxu0 %v3840
    %3995 = vmatpush.bf16.msra.mxu0 %v3839
    %3996 = vmatpush.bf16.msra.mxu0 %v3838
    %3997 = vmatpush.bf16.msra.mxu0 %v3837
    %3998 = vmatmul.bf16.gmra.mxu0 %v3406
    %v3999 = vpop.f32.mrf.mxu0
    %v4000 = vadd.f32 %v3987, %v3999
    %v4001 = vpop.f32.mrf.mxu0
    %4002 = vdwg.mxu0
    %4003 = vmatpush.bf16.msra.mxu0 %v3852
    %4004 = vmatpush.bf16.msra.mxu0 %v3851
    %4005 = vmatpush.bf16.msra.mxu0 %v3850
    %4006 = vmatpush.bf16.msra.mxu0 %v3849
    %4007 = vmatpush.bf16.msra.mxu0 %v3848
    %4008 = vmatpush.bf16.msra.mxu0 %v3847
    %4009 = vmatpush.bf16.msra.mxu0 %v3846
    %4010 = vmatpush.bf16.msra.mxu0 %v3845
    %4011 = vmatmul.bf16.gmra.mxu0 %v3407
    %v4012 = vpop.f32.mrf.mxu0
    %v4013 = vadd.f32 %v4000, %v4012
    %v4014 = vpop.f32.mrf.mxu0
    %4015 = vdwg.mxu0
    %4016 = vmatpush.bf16.msra.mxu0 %v3860
    %4017 = vmatpush.bf16.msra.mxu0 %v3859
    %4018 = vmatpush.bf16.msra.mxu0 %v3858
    %4019 = vmatpush.bf16.msra.mxu0 %v3857
    %4020 = vmatpush.bf16.msra.mxu0 %v3856
    %4021 = vmatpush.bf16.msra.mxu0 %v3855
    %4022 = vmatpush.bf16.msra.mxu0 %v3854
    %4023 = vmatpush.bf16.msra.mxu0 %v3853
    %4024 = vmatmul.bf16.gmra.mxu0 %v3408
    %v4025 = vpop.f32.mrf.mxu0
    %v4026 = vadd.f32 %v4013, %v4025
    %v4027 = vpop.f32.mrf.mxu0
    %4028 = vdwg.mxu0
    %4029 = vst [vmem:[#allocation13] sm:$0xff] %v4026
    // Predicated region
    $region50: #{tpu_custom_call.1} parent=1 // pred_check
      _
    $region51: #{tpu_custom_call.1} parent=1 // pred_check_branch
      %4031 = sbr.rel (0) target = $region53
    $region52: #{tpu_custom_call.1} parent=1 // pred_region
      %4033 = vsyncadd [#allocation4], 0
      %s4035 = sshll.u32 [#allocation13], 4
      %s4036 = int_to_ptr.vmem [resolvable:$true] %s4035
      %s4037 = sshll.u32 %s6, 4
      %s4038 = int_to_ptr.hbm [resolvable:$true] %s4037
      %4040 = dma.vmem_to_hbm [thread:$0]  %s4036, 128, %s4038, [#allocation4]
    $region53: #{tpu_custom_call.1} parent=1 // pred_fallthru
      _
    // Predicated region
    $region54: #{tpu_custom_call.1} parent=1 // pred_check
      _
    $region55: #{tpu_custom_call.1} parent=1 // pred_check_branch
      %4042 = sbr.rel (0) target = $region57
    $region56: #{tpu_custom_call.1} parent=1 // pred_region
      %4044 = dma.done [#allocation4], 128
    $region57: #{tpu_custom_call.1} parent=1 // pred_fallthru
      _
    %4045 = vsyncpa [#allocation3], 1
    %4046 = vsyncpa [#allocation6], 1
    %4047 = vsyncpa [#allocation9], 1
    %4048 = vsyncpa [#allocation12], 1
    %4049 = vsyncpa [#allocation4], 1

</llo_original>
